<compile_context>
chip_gen: v7x
topology: tpu7x:2x2x1
jax: 0.10.0
libtpu: 0.0.40
codegen_flags: <defaults>
</compile_context>

<pallas_src>
import math

import jax
import jax.numpy as jnp
from jax.experimental import pallas as pl
from jax.experimental.pallas import tpu as pltpu

# ----------------------- config (small, ALBERT-like) -----------------------
VOCAB_SIZE = 100
EMB_SIZE = 16          # ALBERT factorized embedding size
HIDDEN_SIZE = 32
NUM_HEADS = 4
HEAD_DIM = HIDDEN_SIZE // NUM_HEADS
INTERMEDIATE_SIZE = 64
NUM_LAYERS = 2         # shared ALBERT layer applied NUM_LAYERS times
MAX_POS = 16
SEQ_LEN = 8
BATCH = 2

HIDDEN_STATE_LIST = (-1, -2)
DENSE_UNITS = 16
CLASSES = 3
# DROPOUT_RATE -> identity at inference


# ------------------------ packed-parameter layouts ---------------------------

def _vec_layout():
    """Small (bias / LN gamma-beta) vectors, one 128-lane slot each (f32)."""
    H, E, I = HIDDEN_SIZE, EMB_SIZE, INTERMEDIATE_SIZE
    names_sizes = [
        ('emb_ln_g', E), ('emb_ln_b', E), ('proj_b', H),
        ('bqkv', 3 * H), ('bo', H), ('attn_ln_g', H), ('attn_ln_b', H),
        ('ffn_b1', I), ('ffn_b2', H), ('ffn_ln_g', H), ('ffn_ln_b', H),
        ('dense_b', DENSE_UNITS), ('dense2_b', CLASSES),
    ]
    layout = {n: (i * 128, s) for i, (n, s) in enumerate(names_sizes)}
    return layout, len(names_sizes) * 128


def _weight_layout():
    """Weight matrices stacked into one (rows, 128) bf16 slab, 16-row aligned."""
    H, E, I = HIDDEN_SIZE, EMB_SIZE, INTERMEDIATE_SIZE
    feat = H * len(HIDDEN_STATE_LIST)
    names_shapes = [
        ('proj_w', (E, H)), ('wqkv', (H, 3 * H)), ('wo', (H, H)),
        ('ffn_w1', (H, I)), ('ffn_w2', (I, H)),
        ('dense_w', (feat, DENSE_UNITS)), ('dense2_w', (DENSE_UNITS, CLASSES)),
    ]
    layout, off = {}, 0
    for n, (r, c) in names_shapes:
        layout[n] = (off, r, c)
        off += ((r + 15) // 16) * 16    # bf16 packs 16 rows per sublane tile
    return layout, off


VEC_LAYOUT, VEC_WIDTH = _vec_layout()     # (1, 1664) f32
W_LAYOUT, W_ROWS = _weight_layout()       # (256, 128) bf16


def _pack_vecs(params):
    slots = []
    for name, (_, n) in sorted(VEC_LAYOUT.items(), key=lambda kv: kv[1][0]):
        v = params[name].reshape(-1).astype(jnp.float32)
        slots.append(jnp.pad(v, (0, 128 - n)))
    return jnp.concatenate(slots).reshape(1, VEC_WIDTH)


def _pack_weights(params):
    blocks = []
    for name, (_, r, c) in sorted(W_LAYOUT.items(), key=lambda kv: kv[1][0]):
        rpad = ((r + 15) // 16) * 16
        w = params[name].astype(jnp.bfloat16)
        blocks.append(jnp.pad(w, ((0, rpad - r), (0, 128 - c))))
    return jnp.concatenate(blocks, axis=0)          # (W_ROWS, 128) bf16


# ------------------------------ fused kernel -------------------------------

def _albert_fused_kernel(emb_ref, mask_ref, vec_ref, w_ref, o_ref):
    H, S = HIDDEN_SIZE, SEQ_LEN
    nh, hd = NUM_HEADS, HEAD_DIM
    scale = 1.0 / math.sqrt(hd)

    def vec(name):                      # (1, n) f32, 128-lane-aligned slot
        off, n = VEC_LAYOUT[name]
        return vec_ref[:, off:off + n]

    def wt(name):                       # (r, c) bf16, 16-row-aligned slot
        off, r, c = W_LAYOUT[name]
        return w_ref[off:off + r, 0:c]

    def layernorm(x, g, b):
        mean = jnp.mean(x, axis=-1, keepdims=True)
        var = jnp.mean((x - mean) ** 2, axis=-1, keepdims=True)
        return (x - mean) * jax.lax.rsqrt(var + 1e-12) * g + b

    def mm(x, w, b):
        # bf16 operands for the MXU, f32 accumulation; weights are already bf16.
        return jnp.dot(x.astype(jnp.bfloat16), w,
                       preferred_element_type=jnp.float32) + b

    # --- hoisted: every weight / bias / LN vector is read exactly once ---
    w_proj, b_proj = wt('proj_w'), vec('proj_b')
    w_qkv, b_qkv = wt('wqkv'), vec('bqkv')
    w_o, b_o = wt('wo'), vec('bo')
    w_1, b_1 = wt('ffn_w1'), vec('ffn_b1')
    w_2, b_2 = wt('ffn_w2'), vec('ffn_b2')
    g_a, b_a = vec('attn_ln_g'), vec('attn_ln_b')
    g_f, b_f = vec('ffn_ln_g'), vec('ffn_ln_b')

    mask = mask_ref[...]                            # (1, 1, S) additive key mask

    # ----- embeddings: LayerNorm + factorized E->H projection -----
    e = layernorm(emb_ref[0], vec('emb_ln_g'), vec('emb_ln_b'))   # (S, E)
    x = mm(e, w_proj, b_proj)                       # (S, H) f32, VMEM-resident

    # seq max-pool folded into the loop (only (1,H) rows stay live).
    # Intentionally includes padded positions, like the reference.
    pooled = [jnp.max(x, axis=0, keepdims=True)]

    for _ in range(NUM_LAYERS):                     # shared ALBERT layer (unrolled)
        qkv = mm(x, w_qkv, b_qkv)                   # fused (S, 3H) projection
        q = qkv[:, 0:H].reshape(S, nh, hd).astype(jnp.bfloat16)
        k = qkv[:, H:2 * H].reshape(S, nh, hd).astype(jnp.bfloat16)
        v = qkv[:, 2 * H:3 * H].reshape(S, nh, hd).astype(jnp.bfloat16)

        # head-batched attention: no per-head loop, no concat
        s = jnp.einsum('qhd,khd->hqk', q, k,
                       preferred_element_type=jnp.float32) * scale
        s = s + mask
        s = s - jnp.max(s, axis=-1, keepdims=True)
        p = jnp.exp(s)
        p = p * pl.reciprocal(jnp.sum(p, axis=-1, keepdims=True), approx=True)
        ctx = jnp.einsum('hqk,khd->qhd', p.astype(jnp.bfloat16), v,
                         preferred_element_type=jnp.float32).reshape(S, H)

        x = layernorm(x + mm(ctx, w_o, b_o), g_a, b_a)
        mid = jax.nn.gelu(mm(x, w_1, b_1), approximate=True)     # ALBERT gelu_new
        x = layernorm(x + mm(mid, w_2, b_2), g_f, b_f)
        pooled.append(jnp.max(x, axis=0, keepdims=True))

    # ----- classification head (matches the PyTorch forward) -----
    feats = jnp.concatenate([pooled[i] for i in HIDDEN_STATE_LIST], axis=-1)  # (1, 2H)
    d = jnp.maximum(mm(feats, wt('dense_w'), vec('dense_b')), 0.0)
    o_ref[0] = mm(d, wt('dense2_w'), vec('dense2_b'))            # (1, CLASSES)


# --------------------------- parameter creation -----------------------------

def init_params(key):
    def nrm(k, shape, scale=0.02):
        return (scale * jax.random.normal(k, shape)).astype(jnp.float32)

    ks = jax.random.split(key, 16)
    H, I = HIDDEN_SIZE, INTERMEDIATE_SIZE
    p = {}
    # embeddings
    p['word_emb'] = nrm(ks[0], (VOCAB_SIZE, EMB_SIZE))
    p['pos_emb'] = nrm(ks[1], (MAX_POS, EMB_SIZE))
    p['type_emb'] = nrm(ks[2], (2, EMB_SIZE))
    p['emb_ln_g'] = jnp.ones((EMB_SIZE,), jnp.float32)
    p['emb_ln_b'] = jnp.zeros((EMB_SIZE,), jnp.float32)
    # factorized embedding projection E -> H
    p['proj_w'] = nrm(ks[3], (EMB_SIZE, H))
    p['proj_b'] = jnp.zeros((H,), jnp.float32)
    # shared ALBERT layer — QKV weights pre-concatenated for a fused matmul
    p['wqkv'] = nrm(ks[4], (H, 3 * H))
    p['bqkv'] = jnp.zeros((3 * H,), jnp.float32)
    p['wo'] = nrm(ks[5], (H, H)); p['bo'] = jnp.zeros((H,), jnp.float32)
    p['attn_ln_g'] = jnp.ones((H,), jnp.float32)
    p['attn_ln_b'] = jnp.zeros((H,), jnp.float32)
    p['ffn_w1'] = nrm(ks[6], (H, I)); p['ffn_b1'] = jnp.zeros((I,), jnp.float32)
    p['ffn_w2'] = nrm(ks[7], (I, H)); p['ffn_b2'] = jnp.zeros((H,), jnp.float32)
    p['ffn_ln_g'] = jnp.ones((H,), jnp.float32)
    p['ffn_ln_b'] = jnp.zeros((H,), jnp.float32)
    # classification head
    feat = H * len(HIDDEN_STATE_LIST)
    p['dense_w'] = nrm(ks[8], (feat, DENSE_UNITS))
    p['dense_b'] = jnp.zeros((DENSE_UNITS,), jnp.float32)
    p['dense2_w'] = nrm(ks[9], (DENSE_UNITS, CLASSES))
    p['dense2_b'] = jnp.zeros((CLASSES,), jnp.float32)
    return p


# ------------------------------ forward pass --------------------------------

def albert_forward(params, input_ids, token_type_ids, attention_mask):
    B, S = input_ids.shape
    H = HIDDEN_SIZE

    # TODO(synk): embedding-table gather has no clean Pallas equivalent at this
    # size; it stays as plain-JAX jnp.take feeding the single fused kernel.
    pos_ids = jnp.arange(S, dtype=jnp.int32)
    emb = (jnp.take(params['word_emb'], input_ids, axis=0)
           + jnp.take(params['pos_emb'], pos_ids, axis=0)[None, :, :]
           + jnp.take(params['type_emb'], token_type_ids, axis=0)
           ).astype(jnp.float32)                                  # (B, S, E)
    add_mask = ((1.0 - attention_mask.astype(jnp.float32)) * -1e9).reshape(B, 1, S)

    vec_pack = _pack_vecs(params)       # one (1, 1664) f32 input
    w_pack = _pack_weights(params)      # one (256, 128) bf16 input

    # rough advisory cost estimate for XLA scheduling around the custom call
    M = B * S
    flops = (2 * M * EMB_SIZE * H
             + NUM_LAYERS * 2 * M * (H * 3 * H + H * H + 2 * H * INTERMEDIATE_SIZE)
             + NUM_LAYERS * NUM_HEADS * 4 * B * S * S * HEAD_DIM
             + 2 * B * (2 * H * DENSE_UNITS + DENSE_UNITS * CLASSES))
    transcendentals = NUM_LAYERS * (B * NUM_HEADS * S * S + M * INTERMEDIATE_SIZE)
    bytes_accessed = (4 * (emb.size + add_mask.size + vec_pack.size + B * CLASSES)
                      + 2 * w_pack.size)

    out = pl.pallas_call(
        _albert_fused_kernel,
        out_shape=jax.ShapeDtypeStruct((B, 1, CLASSES), jnp.float32),
        grid=(B,),                                  # batch across programs / TCs
        in_specs=[
            pl.BlockSpec((1, S, EMB_SIZE), lambda b: (b, 0, 0)),
            pl.BlockSpec((1, 1, S), lambda b: (b, 0, 0)),
            pl.BlockSpec((1, VEC_WIDTH), lambda b: (0, 0)),
            pl.BlockSpec((W_ROWS, 128), lambda b: (0, 0)),
        ],
        out_specs=pl.BlockSpec((1, 1, CLASSES), lambda b: (b, 0, 0)),
        compiler_params=pltpu.CompilerParams(
            dimension_semantics=("parallel",),      # both TCs on v7x
            vmem_limit_bytes=32 * 1024 * 1024),
        cost_estimate=pl.CostEstimate(flops=flops,
                                      transcendentals=transcendentals,
                                      bytes_accessed=bytes_accessed),
    )(emb, add_mask, vec_pack, w_pack)
    return out.reshape(B, CLASSES)                  # (B, CLASSES)


# ----------------------------------- main ------------------------------------

if __name__ == "__main__":
    key = jax.random.PRNGKey(0)
    pkey, ikey = jax.random.split(key)
    params = init_params(pkey)

    input_ids = jax.random.randint(ikey, (BATCH, SEQ_LEN), 0, VOCAB_SIZE, dtype=jnp.int32)
    token_type_ids = jnp.zeros((BATCH, SEQ_LEN), dtype=jnp.int32)
    attention_mask = jnp.ones((BATCH, SEQ_LEN), dtype=jnp.int32)
    attention_mask = attention_mask.at[1, -2:].set(0)   # pad tail of 2nd example

    fwd = jax.jit(albert_forward)
    logits = fwd(params, input_ids, token_type_ids, attention_mask)
    logits = jax.block_until_ready(logits)
    assert logits.shape == (BATCH, CLASSES)
    assert bool(jnp.all(jnp.isfinite(logits)))
    print("KERNEL_OK")
</pallas_src>

<mosaic_0001>
module attributes {stable_mosaic.version = 11 : i64} {
  func.func @_albert_fused_kernel(%arg0: i32, %arg1: memref<1x8x16xf32, #tpu.memory_space<vmem>>, %arg2: memref<1x1x8xf32, #tpu.memory_space<vmem>>, %arg3: memref<1x1664xf32, #tpu.memory_space<vmem>>, %arg4: memref<256x128xbf16, #tpu.memory_space<vmem>>, %arg5: memref<1x1x3xf32, #tpu.memory_space<vmem>>) attributes {dimension_semantics = [#tpu.dimension_semantics<parallel>], iteration_bounds = array<i64: 2>, scalar_prefetch = 0 : i64, scratch_operands = 0 : i64, tpu.core_type = #tpu.core_type<tc>, window_params = [{transform_indices = @transform_0, window_bounds = array<i64: 1, 8, 16>}, {transform_indices = @transform_1, window_bounds = array<i64: 1, 1, 8>}, {pipeline_mode = #tpu.pipeline_mode<synchronous>, transform_indices = @transform_2, window_bounds = array<i64: 1, 1664>}, {pipeline_mode = #tpu.pipeline_mode<synchronous>, transform_indices = @transform_3, window_bounds = array<i64: 256, 128>}, {transform_indices = @transform_4, window_bounds = array<i64: 1, 1, 3>}]} {
    %c0 = arith.constant 0 : index
    %c0_0 = arith.constant 0 : index
    %0 = vector.load %arg4[%c0, %c0_0] : memref<256x128xbf16, #tpu.memory_space<vmem>>, vector<16x32xbf16>
    %c0_1 = arith.constant 0 : index
    %c256 = arith.constant 256 : index
    %1 = vector.load %arg3[%c0_1, %c256] : memref<1x1664xf32, #tpu.memory_space<vmem>>, vector<1x32xf32>
    %c16 = arith.constant 16 : index
    %c0_2 = arith.constant 0 : index
    %2 = vector.load %arg4[%c16, %c0_2] : memref<256x128xbf16, #tpu.memory_space<vmem>>, vector<32x96xbf16>
    %c0_3 = arith.constant 0 : index
    %c384 = arith.constant 384 : index
    %3 = vector.load %arg3[%c0_3, %c384] : memref<1x1664xf32, #tpu.memory_space<vmem>>, vector<1x96xf32>
    %c48 = arith.constant 48 : index
    %c0_4 = arith.constant 0 : index
    %4 = vector.load %arg4[%c48, %c0_4] : memref<256x128xbf16, #tpu.memory_space<vmem>>, vector<32x32xbf16>
    %c0_5 = arith.constant 0 : index
    %c512 = arith.constant 512 : index
    %5 = vector.load %arg3[%c0_5, %c512] : memref<1x1664xf32, #tpu.memory_space<vmem>>, vector<1x32xf32>
    %c80 = arith.constant 80 : index
    %c0_6 = arith.constant 0 : index
    %6 = vector.load %arg4[%c80, %c0_6] : memref<256x128xbf16, #tpu.memory_space<vmem>>, vector<32x64xbf16>
    %c0_7 = arith.constant 0 : index
    %c896 = arith.constant 896 : index
    %7 = vector.load %arg3[%c0_7, %c896] : memref<1x1664xf32, #tpu.memory_space<vmem>>, vector<1x64xf32>
    %c112 = arith.constant 112 : index
    %c0_8 = arith.constant 0 : index
    %8 = vector.load %arg4[%c112, %c0_8] : memref<256x128xbf16, #tpu.memory_space<vmem>>, vector<64x32xbf16>
    %c0_9 = arith.constant 0 : index
    %c1024 = arith.constant 1024 : index
    %9 = vector.load %arg3[%c0_9, %c1024] : memref<1x1664xf32, #tpu.memory_space<vmem>>, vector<1x32xf32>
    %c0_10 = arith.constant 0 : index
    %c640 = arith.constant 640 : index
    %10 = vector.load %arg3[%c0_10, %c640] : memref<1x1664xf32, #tpu.memory_space<vmem>>, vector<1x32xf32>
    %c0_11 = arith.constant 0 : index
    %c768 = arith.constant 768 : index
    %11 = vector.load %arg3[%c0_11, %c768] : memref<1x1664xf32, #tpu.memory_space<vmem>>, vector<1x32xf32>
    %c0_12 = arith.constant 0 : index
    %c1152 = arith.constant 1152 : index
    %12 = vector.load %arg3[%c0_12, %c1152] : memref<1x1664xf32, #tpu.memory_space<vmem>>, vector<1x32xf32>
    %c0_13 = arith.constant 0 : index
    %c1280 = arith.constant 1280 : index
    %13 = vector.load %arg3[%c0_13, %c1280] : memref<1x1664xf32, #tpu.memory_space<vmem>>, vector<1x32xf32>
    %c0_14 = arith.constant 0 : index
    %c0_15 = arith.constant 0 : index
    %c0_16 = arith.constant 0 : index
    %14 = vector.load %arg2[%c0_14, %c0_15, %c0_16] : memref<1x1x8xf32, #tpu.memory_space<vmem>>, vector<1x1x8xf32>
    %c0_17 = arith.constant 0 : index
    %c0_18 = arith.constant 0 : index
    %c0_19 = arith.constant 0 : index
    %15 = vector.load %arg1[%c0_17, %c0_18, %c0_19] : memref<1x8x16xf32, #tpu.memory_space<vmem>>, vector<1x8x16xf32>
    %16 = vector.shape_cast %15 : vector<1x8x16xf32> to vector<8x16xf32>
    %c0_20 = arith.constant 0 : index
    %c0_21 = arith.constant 0 : index
    %17 = vector.load %arg3[%c0_20, %c0_21] : memref<1x1664xf32, #tpu.memory_space<vmem>>, vector<1x16xf32>
    %c0_22 = arith.constant 0 : index
    %c128 = arith.constant 128 : index
    %18 = vector.load %arg3[%c0_22, %c128] : memref<1x1664xf32, #tpu.memory_space<vmem>>, vector<1x16xf32>
    %cst = arith.constant dense<0.000000e+00> : vector<8xf32>
    %19 = vector.multi_reduction <add>, %16, %cst [1] : vector<8x16xf32> to vector<8xf32>
    %20 = vector.shape_cast %19 : vector<8xf32> to vector<8x1xf32>
    %cst_23 = arith.constant 1.600000e+01 : f32
    %21 = vector.broadcast %cst_23 : f32 to vector<8x1xf32>
    %22 = arith.divf %20, %21 : vector<8x1xf32>
    %23 = vector.broadcast %22 : vector<8x1xf32> to vector<8x16xf32>
    %24 = arith.subf %16, %23 : vector<8x16xf32>
    %25 = arith.mulf %24, %24 : vector<8x16xf32>
    %cst_24 = arith.constant dense<0.000000e+00> : vector<8xf32>
    %26 = vector.multi_reduction <add>, %25, %cst_24 [1] : vector<8x16xf32> to vector<8xf32>
    %27 = vector.shape_cast %26 : vector<8xf32> to vector<8x1xf32>
    %cst_25 = arith.constant 1.600000e+01 : f32
    %28 = vector.broadcast %cst_25 : f32 to vector<8x1xf32>
    %29 = arith.divf %27, %28 : vector<8x1xf32>
    %30 = vector.broadcast %22 : vector<8x1xf32> to vector<8x16xf32>
    %31 = arith.subf %16, %30 : vector<8x16xf32>
    %cst_26 = arith.constant 9.99999996E-13 : f32
    %32 = vector.broadcast %cst_26 : f32 to vector<8x1xf32>
    %33 = arith.addf %29, %32 : vector<8x1xf32>
    %34 = math.rsqrt %33 : vector<8x1xf32>
    %35 = vector.broadcast %34 : vector<8x1xf32> to vector<8x16xf32>
    %36 = arith.mulf %31, %35 : vector<8x16xf32>
    %37 = vector.broadcast %17 : vector<1x16xf32> to vector<8x16xf32>
    %38 = arith.mulf %36, %37 : vector<8x16xf32>
    %39 = vector.broadcast %18 : vector<1x16xf32> to vector<8x16xf32>
    %40 = arith.addf %38, %39 : vector<8x16xf32>
    %41 = arith.truncf %40 : vector<8x16xf32> to vector<8x16xbf16>
    %cst_27 = arith.constant dense<0.000000e+00> : vector<8x32xf32>
    %42 = tpu.matmul %41, %0, %cst_27 {dimension_numbers = #tpu.dot_dimension_numbers<[1], [0], [0], [1], [0, 0, 1, 1], [], []>} : vector<8x16xbf16>, vector<16x32xbf16>, vector<8x32xf32> -> vector<8x32xf32>
    %43 = vector.broadcast %1 : vector<1x32xf32> to vector<8x32xf32>
    %44 = arith.addf %42, %43 : vector<8x32xf32>
    %45 = arith.truncf %44 : vector<8x32xf32> to vector<8x32xbf16>
    %cst_28 = arith.constant dense<0.000000e+00> : vector<8x96xf32>
    %46 = tpu.matmul %45, %2, %cst_28 {dimension_numbers = #tpu.dot_dimension_numbers<[1], [0], [0], [1], [0, 0, 1, 1], [], []>} : vector<8x32xbf16>, vector<32x96xbf16>, vector<8x96xf32> -> vector<8x96xf32>
    %47 = vector.broadcast %3 : vector<1x96xf32> to vector<8x96xf32>
    %48 = arith.addf %46, %47 : vector<8x96xf32>
    %49 = vector.extract_strided_slice %48 {offsets = [0, 0], sizes = [8, 32], strides = [1, 1]} : vector<8x96xf32> to vector<8x32xf32>
    %50 = vector.shape_cast %49 : vector<8x32xf32> to vector<8x4x8xf32>
    %51 = arith.truncf %50 : vector<8x4x8xf32> to vector<8x4x8xbf16>
    %52 = vector.extract_strided_slice %48 {offsets = [0, 32], sizes = [8, 32], strides = [1, 1]} : vector<8x96xf32> to vector<8x32xf32>
    %53 = vector.shape_cast %52 : vector<8x32xf32> to vector<8x4x8xf32>
    %54 = arith.truncf %53 : vector<8x4x8xf32> to vector<8x4x8xbf16>
    %55 = vector.extract_strided_slice %48 {offsets = [0, 64], sizes = [8, 32], strides = [1, 1]} : vector<8x96xf32> to vector<8x32xf32>
    %56 = vector.shape_cast %55 : vector<8x32xf32> to vector<8x4x8xf32>
    %57 = arith.truncf %56 : vector<8x4x8xf32> to vector<8x4x8xbf16>
    "tpu.trace_start"() <{level = 10 : i32, message = "qhd,khd->hqk"}> : () -> ()
    %cst_29 = arith.constant dense<0.000000e+00> : vector<4x8x8xf32>
    %58 = tpu.matmul %51, %54, %cst_29 {dimension_numbers = #tpu.dot_dimension_numbers<[2], [2], [0], [0], [0, 1, 0, 0, 1, 0], [1], [1]>} : vector<8x4x8xbf16>, vector<8x4x8xbf16>, vector<4x8x8xf32> -> vector<4x8x8xf32>
    "tpu.trace_stop"() : () -> ()
    %cst_30 = arith.constant 0.353553385 : f32
    %59 = vector.broadcast %cst_30 : f32 to vector<4x8x8xf32>
    %60 = arith.mulf %58, %59 : vector<4x8x8xf32>
    %61 = vector.broadcast %14 : vector<1x1x8xf32> to vector<4x8x8xf32>
    %62 = arith.addf %60, %61 : vector<4x8x8xf32>
    %cst_31 = arith.constant dense<0xFF800000> : vector<4x8xf32>
    %63 = vector.multi_reduction <maximumf>, %62, %cst_31 [2] : vector<4x8x8xf32> to vector<4x8xf32>
    %64 = vector.shape_cast %63 : vector<4x8xf32> to vector<4x8x1xf32>
    %65 = vector.broadcast %64 : vector<4x8x1xf32> to vector<4x8x8xf32>
    %66 = arith.subf %62, %65 : vector<4x8x8xf32>
    %67 = math.exp %66 : vector<4x8x8xf32>
    %cst_32 = arith.constant dense<0.000000e+00> : vector<4x8xf32>
    %68 = vector.multi_reduction <add>, %67, %cst_32 [2] : vector<4x8x8xf32> to vector<4x8xf32>
    %69 = vector.shape_cast %68 : vector<4x8xf32> to vector<4x8x1xf32>
    %70 = tpu.reciprocal %69 {approx = true} : vector<4x8x1xf32> -> vector<4x8x1xf32>
    %71 = vector.broadcast %70 : vector<4x8x1xf32> to vector<4x8x8xf32>
    %72 = arith.mulf %67, %71 : vector<4x8x8xf32>
    %73 = arith.truncf %72 : vector<4x8x8xf32> to vector<4x8x8xbf16>
    "tpu.trace_start"() <{level = 10 : i32, message = "hqk,khd->qhd"}> : () -> ()
    %cst_33 = arith.constant dense<0.000000e+00> : vector<4x8x8xf32>
    %74 = tpu.matmul %57, %73, %cst_33 {dimension_numbers = #tpu.dot_dimension_numbers<[0], [2], [2], [1], [0, 1, 0, 2, 1, 1], [1], [0]>} : vector<8x4x8xbf16>, vector<4x8x8xbf16>, vector<4x8x8xf32> -> vector<4x8x8xf32>
    %75 = tpu.transpose %74, [2, 0, 1] : vector<4x8x8xf32> -> vector<8x4x8xf32>
    "tpu.trace_stop"() : () -> ()
    %76 = vector.shape_cast %75 : vector<8x4x8xf32> to vector<8x32xf32>
    %77 = arith.truncf %76 : vector<8x32xf32> to vector<8x32xbf16>
    %cst_34 = arith.constant dense<0.000000e+00> : vector<8x32xf32>
    %78 = tpu.matmul %77, %4, %cst_34 {dimension_numbers = #tpu.dot_dimension_numbers<[1], [0], [0], [1], [0, 0, 1, 1], [], []>} : vector<8x32xbf16>, vector<32x32xbf16>, vector<8x32xf32> -> vector<8x32xf32>
    %79 = vector.broadcast %5 : vector<1x32xf32> to vector<8x32xf32>
    %80 = arith.addf %78, %79 : vector<8x32xf32>
    %81 = arith.addf %44, %80 : vector<8x32xf32>
    %cst_35 = arith.constant dense<0.000000e+00> : vector<8xf32>
    %82 = vector.multi_reduction <add>, %81, %cst_35 [1] : vector<8x32xf32> to vector<8xf32>
    %83 = vector.shape_cast %82 : vector<8xf32> to vector<8x1xf32>
    %cst_36 = arith.constant 3.200000e+01 : f32
    %84 = vector.broadcast %cst_36 : f32 to vector<8x1xf32>
    %85 = arith.divf %83, %84 : vector<8x1xf32>
    %86 = vector.broadcast %85 : vector<8x1xf32> to vector<8x32xf32>
    %87 = arith.subf %81, %86 : vector<8x32xf32>
    %88 = arith.mulf %87, %87 : vector<8x32xf32>
    %cst_37 = arith.constant dense<0.000000e+00> : vector<8xf32>
    %89 = vector.multi_reduction <add>, %88, %cst_37 [1] : vector<8x32xf32> to vector<8xf32>
    %90 = vector.shape_cast %89 : vector<8xf32> to vector<8x1xf32>
    %cst_38 = arith.constant 3.200000e+01 : f32
    %91 = vector.broadcast %cst_38 : f32 to vector<8x1xf32>
    %92 = arith.divf %90, %91 : vector<8x1xf32>
    %93 = vector.broadcast %85 : vector<8x1xf32> to vector<8x32xf32>
    %94 = arith.subf %81, %93 : vector<8x32xf32>
    %cst_39 = arith.constant 9.99999996E-13 : f32
    %95 = vector.broadcast %cst_39 : f32 to vector<8x1xf32>
    %96 = arith.addf %92, %95 : vector<8x1xf32>
    %97 = math.rsqrt %96 : vector<8x1xf32>
    %98 = vector.broadcast %97 : vector<8x1xf32> to vector<8x32xf32>
    %99 = arith.mulf %94, %98 : vector<8x32xf32>
    %100 = vector.broadcast %10 : vector<1x32xf32> to vector<8x32xf32>
    %101 = arith.mulf %99, %100 : vector<8x32xf32>
    %102 = vector.broadcast %11 : vector<1x32xf32> to vector<8x32xf32>
    %103 = arith.addf %101, %102 : vector<8x32xf32>
    %104 = arith.truncf %103 : vector<8x32xf32> to vector<8x32xbf16>
    %cst_40 = arith.constant dense<0.000000e+00> : vector<8x64xf32>
    %105 = tpu.matmul %104, %6, %cst_40 {dimension_numbers = #tpu.dot_dimension_numbers<[1], [0], [0], [1], [0, 0, 1, 1], [], []>} : vector<8x32xbf16>, vector<32x64xbf16>, vector<8x64xf32> -> vector<8x64xf32>
    %106 = vector.broadcast %7 : vector<1x64xf32> to vector<8x64xf32>
    %107 = arith.addf %105, %106 : vector<8x64xf32>
    %108 = arith.mulf %107, %107 : vector<8x64xf32>
    %109 = arith.mulf %107, %108 : vector<8x64xf32>
    %cst_41 = arith.constant 4.471500e-02 : f32
    %110 = vector.broadcast %cst_41 : f32 to vector<8x64xf32>
    %111 = arith.mulf %110, %109 : vector<8x64xf32>
    %112 = arith.addf %107, %111 : vector<8x64xf32>
    %cst_42 = arith.constant 0.797884583 : f32
    %113 = vector.broadcast %cst_42 : f32 to vector<8x64xf32>
    %114 = arith.mulf %113, %112 : vector<8x64xf32>
    %115 = math.tanh %114 : vector<8x64xf32>
    %cst_43 = arith.constant 1.000000e+00 : f32
    %116 = vector.broadcast %cst_43 : f32 to vector<8x64xf32>
    %117 = arith.addf %116, %115 : vector<8x64xf32>
    %cst_44 = arith.constant 5.000000e-01 : f32
    %118 = vector.broadcast %cst_44 : f32 to vector<8x64xf32>
    %119 = arith.mulf %118, %117 : vector<8x64xf32>
    %120 = arith.mulf %107, %119 : vector<8x64xf32>
    %121 = arith.truncf %120 : vector<8x64xf32> to vector<8x64xbf16>
    %cst_45 = arith.constant dense<0.000000e+00> : vector<8x32xf32>
    %122 = tpu.matmul %121, %8, %cst_45 {dimension_numbers = #tpu.dot_dimension_numbers<[1], [0], [0], [1], [0, 0, 1, 1], [], []>} : vector<8x64xbf16>, vector<64x32xbf16>, vector<8x32xf32> -> vector<8x32xf32>
    %123 = vector.broadcast %9 : vector<1x32xf32> to vector<8x32xf32>
    %124 = arith.addf %122, %123 : vector<8x32xf32>
    %125 = arith.addf %103, %124 : vector<8x32xf32>
    %cst_46 = arith.constant dense<0.000000e+00> : vector<8xf32>
    %126 = vector.multi_reduction <add>, %125, %cst_46 [1] : vector<8x32xf32> to vector<8xf32>
    %127 = vector.shape_cast %126 : vector<8xf32> to vector<8x1xf32>
    %cst_47 = arith.constant 3.200000e+01 : f32
    %128 = vector.broadcast %cst_47 : f32 to vector<8x1xf32>
    %129 = arith.divf %127, %128 : vector<8x1xf32>
    %130 = vector.broadcast %129 : vector<8x1xf32> to vector<8x32xf32>
    %131 = arith.subf %125, %130 : vector<8x32xf32>
    %132 = arith.mulf %131, %131 : vector<8x32xf32>
    %cst_48 = arith.constant dense<0.000000e+00> : vector<8xf32>
    %133 = vector.multi_reduction <add>, %132, %cst_48 [1] : vector<8x32xf32> to vector<8xf32>
    %134 = vector.shape_cast %133 : vector<8xf32> to vector<8x1xf32>
    %cst_49 = arith.constant 3.200000e+01 : f32
    %135 = vector.broadcast %cst_49 : f32 to vector<8x1xf32>
    %136 = arith.divf %134, %135 : vector<8x1xf32>
    %137 = vector.broadcast %129 : vector<8x1xf32> to vector<8x32xf32>
    %138 = arith.subf %125, %137 : vector<8x32xf32>
    %cst_50 = arith.constant 9.99999996E-13 : f32
    %139 = vector.broadcast %cst_50 : f32 to vector<8x1xf32>
    %140 = arith.addf %136, %139 : vector<8x1xf32>
    %141 = math.rsqrt %140 : vector<8x1xf32>
    %142 = vector.broadcast %141 : vector<8x1xf32> to vector<8x32xf32>
    %143 = arith.mulf %138, %142 : vector<8x32xf32>
    %144 = vector.broadcast %12 : vector<1x32xf32> to vector<8x32xf32>
    %145 = arith.mulf %143, %144 : vector<8x32xf32>
    %146 = vector.broadcast %13 : vector<1x32xf32> to vector<8x32xf32>
    %147 = arith.addf %145, %146 : vector<8x32xf32>
    %cst_51 = arith.constant dense<0xFF800000> : vector<32xf32>
    %148 = vector.multi_reduction <maximumf>, %147, %cst_51 [0] : vector<8x32xf32> to vector<32xf32>
    %149 = vector.shape_cast %148 : vector<32xf32> to vector<1x32xf32>
    %150 = arith.truncf %147 : vector<8x32xf32> to vector<8x32xbf16>
    %cst_52 = arith.constant dense<0.000000e+00> : vector<8x96xf32>
    %151 = tpu.matmul %150, %2, %cst_52 {dimension_numbers = #tpu.dot_dimension_numbers<[1], [0], [0], [1], [0, 0, 1, 1], [], []>} : vector<8x32xbf16>, vector<32x96xbf16>, vector<8x96xf32> -> vector<8x96xf32>
    %152 = vector.broadcast %3 : vector<1x96xf32> to vector<8x96xf32>
    %153 = arith.addf %151, %152 : vector<8x96xf32>
    %154 = vector.extract_strided_slice %153 {offsets = [0, 0], sizes = [8, 32], strides = [1, 1]} : vector<8x96xf32> to vector<8x32xf32>
    %155 = vector.shape_cast %154 : vector<8x32xf32> to vector<8x4x8xf32>
    %156 = arith.truncf %155 : vector<8x4x8xf32> to vector<8x4x8xbf16>
    %157 = vector.extract_strided_slice %153 {offsets = [0, 32], sizes = [8, 32], strides = [1, 1]} : vector<8x96xf32> to vector<8x32xf32>
    %158 = vector.shape_cast %157 : vector<8x32xf32> to vector<8x4x8xf32>
    %159 = arith.truncf %158 : vector<8x4x8xf32> to vector<8x4x8xbf16>
    %160 = vector.extract_strided_slice %153 {offsets = [0, 64], sizes = [8, 32], strides = [1, 1]} : vector<8x96xf32> to vector<8x32xf32>
    %161 = vector.shape_cast %160 : vector<8x32xf32> to vector<8x4x8xf32>
    %162 = arith.truncf %161 : vector<8x4x8xf32> to vector<8x4x8xbf16>
    "tpu.trace_start"() <{level = 10 : i32, message = "qhd,khd->hqk"}> : () -> ()
    %cst_53 = arith.constant dense<0.000000e+00> : vector<4x8x8xf32>
    %163 = tpu.matmul %156, %159, %cst_53 {dimension_numbers = #tpu.dot_dimension_numbers<[2], [2], [0], [0], [0, 1, 0, 0, 1, 0], [1], [1]>} : vector<8x4x8xbf16>, vector<8x4x8xbf16>, vector<4x8x8xf32> -> vector<4x8x8xf32>
    "tpu.trace_stop"() : () -> ()
    %cst_54 = arith.constant 0.353553385 : f32
    %164 = vector.broadcast %cst_54 : f32 to vector<4x8x8xf32>
    %165 = arith.mulf %163, %164 : vector<4x8x8xf32>
    %166 = vector.broadcast %14 : vector<1x1x8xf32> to vector<4x8x8xf32>
    %167 = arith.addf %165, %166 : vector<4x8x8xf32>
    %cst_55 = arith.constant dense<0xFF800000> : vector<4x8xf32>
    %168 = vector.multi_reduction <maximumf>, %167, %cst_55 [2] : vector<4x8x8xf32> to vector<4x8xf32>
    %169 = vector.shape_cast %168 : vector<4x8xf32> to vector<4x8x1xf32>
    %170 = vector.broadcast %169 : vector<4x8x1xf32> to vector<4x8x8xf32>
    %171 = arith.subf %167, %170 : vector<4x8x8xf32>
    %172 = math.exp %171 : vector<4x8x8xf32>
    %cst_56 = arith.constant dense<0.000000e+00> : vector<4x8xf32>
    %173 = vector.multi_reduction <add>, %172, %cst_56 [2] : vector<4x8x8xf32> to vector<4x8xf32>
    %174 = vector.shape_cast %173 : vector<4x8xf32> to vector<4x8x1xf32>
    %175 = tpu.reciprocal %174 {approx = true} : vector<4x8x1xf32> -> vector<4x8x1xf32>
    %176 = vector.broadcast %175 : vector<4x8x1xf32> to vector<4x8x8xf32>
    %177 = arith.mulf %172, %176 : vector<4x8x8xf32>
    %178 = arith.truncf %177 : vector<4x8x8xf32> to vector<4x8x8xbf16>
    "tpu.trace_start"() <{level = 10 : i32, message = "hqk,khd->qhd"}> : () -> ()
    %cst_57 = arith.constant dense<0.000000e+00> : vector<4x8x8xf32>
    %179 = tpu.matmul %162, %178, %cst_57 {dimension_numbers = #tpu.dot_dimension_numbers<[0], [2], [2], [1], [0, 1, 0, 2, 1, 1], [1], [0]>} : vector<8x4x8xbf16>, vector<4x8x8xbf16>, vector<4x8x8xf32> -> vector<4x8x8xf32>
    %180 = tpu.transpose %179, [2, 0, 1] : vector<4x8x8xf32> -> vector<8x4x8xf32>
    "tpu.trace_stop"() : () -> ()
    %181 = vector.shape_cast %180 : vector<8x4x8xf32> to vector<8x32xf32>
    %182 = arith.truncf %181 : vector<8x32xf32> to vector<8x32xbf16>
    %cst_58 = arith.constant dense<0.000000e+00> : vector<8x32xf32>
    %183 = tpu.matmul %182, %4, %cst_58 {dimension_numbers = #tpu.dot_dimension_numbers<[1], [0], [0], [1], [0, 0, 1, 1], [], []>} : vector<8x32xbf16>, vector<32x32xbf16>, vector<8x32xf32> -> vector<8x32xf32>
    %184 = vector.broadcast %5 : vector<1x32xf32> to vector<8x32xf32>
    %185 = arith.addf %183, %184 : vector<8x32xf32>
    %186 = arith.addf %147, %185 : vector<8x32xf32>
    %cst_59 = arith.constant dense<0.000000e+00> : vector<8xf32>
    %187 = vector.multi_reduction <add>, %186, %cst_59 [1] : vector<8x32xf32> to vector<8xf32>
    %188 = vector.shape_cast %187 : vector<8xf32> to vector<8x1xf32>
    %cst_60 = arith.constant 3.200000e+01 : f32
    %189 = vector.broadcast %cst_60 : f32 to vector<8x1xf32>
    %190 = arith.divf %188, %189 : vector<8x1xf32>
    %191 = vector.broadcast %190 : vector<8x1xf32> to vector<8x32xf32>
    %192 = arith.subf %186, %191 : vector<8x32xf32>
    %193 = arith.mulf %192, %192 : vector<8x32xf32>
    %cst_61 = arith.constant dense<0.000000e+00> : vector<8xf32>
    %194 = vector.multi_reduction <add>, %193, %cst_61 [1] : vector<8x32xf32> to vector<8xf32>
    %195 = vector.shape_cast %194 : vector<8xf32> to vector<8x1xf32>
    %cst_62 = arith.constant 3.200000e+01 : f32
    %196 = vector.broadcast %cst_62 : f32 to vector<8x1xf32>
    %197 = arith.divf %195, %196 : vector<8x1xf32>
    %198 = vector.broadcast %190 : vector<8x1xf32> to vector<8x32xf32>
    %199 = arith.subf %186, %198 : vector<8x32xf32>
    %cst_63 = arith.constant 9.99999996E-13 : f32
    %200 = vector.broadcast %cst_63 : f32 to vector<8x1xf32>
    %201 = arith.addf %197, %200 : vector<8x1xf32>
    %202 = math.rsqrt %201 : vector<8x1xf32>
    %203 = vector.broadcast %202 : vector<8x1xf32> to vector<8x32xf32>
    %204 = arith.mulf %199, %203 : vector<8x32xf32>
    %205 = vector.broadcast %10 : vector<1x32xf32> to vector<8x32xf32>
    %206 = arith.mulf %204, %205 : vector<8x32xf32>
    %207 = vector.broadcast %11 : vector<1x32xf32> to vector<8x32xf32>
    %208 = arith.addf %206, %207 : vector<8x32xf32>
    %209 = arith.truncf %208 : vector<8x32xf32> to vector<8x32xbf16>
    %cst_64 = arith.constant dense<0.000000e+00> : vector<8x64xf32>
    %210 = tpu.matmul %209, %6, %cst_64 {dimension_numbers = #tpu.dot_dimension_numbers<[1], [0], [0], [1], [0, 0, 1, 1], [], []>} : vector<8x32xbf16>, vector<32x64xbf16>, vector<8x64xf32> -> vector<8x64xf32>
    %211 = vector.broadcast %7 : vector<1x64xf32> to vector<8x64xf32>
    %212 = arith.addf %210, %211 : vector<8x64xf32>
    %213 = arith.mulf %212, %212 : vector<8x64xf32>
    %214 = arith.mulf %212, %213 : vector<8x64xf32>
    %cst_65 = arith.constant 4.471500e-02 : f32
    %215 = vector.broadcast %cst_65 : f32 to vector<8x64xf32>
    %216 = arith.mulf %215, %214 : vector<8x64xf32>
    %217 = arith.addf %212, %216 : vector<8x64xf32>
    %cst_66 = arith.constant 0.797884583 : f32
    %218 = vector.broadcast %cst_66 : f32 to vector<8x64xf32>
    %219 = arith.mulf %218, %217 : vector<8x64xf32>
    %220 = math.tanh %219 : vector<8x64xf32>
    %cst_67 = arith.constant 1.000000e+00 : f32
    %221 = vector.broadcast %cst_67 : f32 to vector<8x64xf32>
    %222 = arith.addf %221, %220 : vector<8x64xf32>
    %cst_68 = arith.constant 5.000000e-01 : f32
    %223 = vector.broadcast %cst_68 : f32 to vector<8x64xf32>
    %224 = arith.mulf %223, %222 : vector<8x64xf32>
    %225 = arith.mulf %212, %224 : vector<8x64xf32>
    %226 = arith.truncf %225 : vector<8x64xf32> to vector<8x64xbf16>
    %cst_69 = arith.constant dense<0.000000e+00> : vector<8x32xf32>
    %227 = tpu.matmul %226, %8, %cst_69 {dimension_numbers = #tpu.dot_dimension_numbers<[1], [0], [0], [1], [0, 0, 1, 1], [], []>} : vector<8x64xbf16>, vector<64x32xbf16>, vector<8x32xf32> -> vector<8x32xf32>
    %228 = vector.broadcast %9 : vector<1x32xf32> to vector<8x32xf32>
    %229 = arith.addf %227, %228 : vector<8x32xf32>
    %230 = arith.addf %208, %229 : vector<8x32xf32>
    %cst_70 = arith.constant dense<0.000000e+00> : vector<8xf32>
    %231 = vector.multi_reduction <add>, %230, %cst_70 [1] : vector<8x32xf32> to vector<8xf32>
    %232 = vector.shape_cast %231 : vector<8xf32> to vector<8x1xf32>
    %cst_71 = arith.constant 3.200000e+01 : f32
    %233 = vector.broadcast %cst_71 : f32 to vector<8x1xf32>
    %234 = arith.divf %232, %233 : vector<8x1xf32>
    %235 = vector.broadcast %234 : vector<8x1xf32> to vector<8x32xf32>
    %236 = arith.subf %230, %235 : vector<8x32xf32>
    %237 = arith.mulf %236, %236 : vector<8x32xf32>
    %cst_72 = arith.constant dense<0.000000e+00> : vector<8xf32>
    %238 = vector.multi_reduction <add>, %237, %cst_72 [1] : vector<8x32xf32> to vector<8xf32>
    %239 = vector.shape_cast %238 : vector<8xf32> to vector<8x1xf32>
    %cst_73 = arith.constant 3.200000e+01 : f32
    %240 = vector.broadcast %cst_73 : f32 to vector<8x1xf32>
    %241 = arith.divf %239, %240 : vector<8x1xf32>
    %242 = vector.broadcast %234 : vector<8x1xf32> to vector<8x32xf32>
    %243 = arith.subf %230, %242 : vector<8x32xf32>
    %cst_74 = arith.constant 9.99999996E-13 : f32
    %244 = vector.broadcast %cst_74 : f32 to vector<8x1xf32>
    %245 = arith.addf %241, %244 : vector<8x1xf32>
    %246 = math.rsqrt %245 : vector<8x1xf32>
    %247 = vector.broadcast %246 : vector<8x1xf32> to vector<8x32xf32>
    %248 = arith.mulf %243, %247 : vector<8x32xf32>
    %249 = vector.broadcast %12 : vector<1x32xf32> to vector<8x32xf32>
    %250 = arith.mulf %248, %249 : vector<8x32xf32>
    %251 = vector.broadcast %13 : vector<1x32xf32> to vector<8x32xf32>
    %252 = arith.addf %250, %251 : vector<8x32xf32>
    %cst_75 = arith.constant dense<0xFF800000> : vector<32xf32>
    %253 = vector.multi_reduction <maximumf>, %252, %cst_75 [0] : vector<8x32xf32> to vector<32xf32>
    %254 = vector.shape_cast %253 : vector<32xf32> to vector<1x32xf32>
    %255 = tpu.concatenate %254, %149 in 1 : vector<1x32xf32>, vector<1x32xf32> -> vector<1x64xf32>
    %c176 = arith.constant 176 : index
    %c0_76 = arith.constant 0 : index
    %256 = vector.load %arg4[%c176, %c0_76] : memref<256x128xbf16, #tpu.memory_space<vmem>>, vector<64x16xbf16>
    %c0_77 = arith.constant 0 : index
    %c1408 = arith.constant 1408 : index
    %257 = vector.load %arg3[%c0_77, %c1408] : memref<1x1664xf32, #tpu.memory_space<vmem>>, vector<1x16xf32>
    %258 = arith.truncf %255 : vector<1x64xf32> to vector<1x64xbf16>
    %cst_78 = arith.constant dense<0.000000e+00> : vector<1x16xf32>
    %259 = tpu.matmul %258, %256, %cst_78 {dimension_numbers = #tpu.dot_dimension_numbers<[1], [0], [0], [1], [0, 0, 1, 1], [], []>} : vector<1x64xbf16>, vector<64x16xbf16>, vector<1x16xf32> -> vector<1x16xf32>
    %260 = arith.addf %259, %257 : vector<1x16xf32>
    %cst_79 = arith.constant 0.000000e+00 : f32
    %261 = vector.broadcast %cst_79 : f32 to vector<1x16xf32>
    %262 = arith.maximumf %260, %261 : vector<1x16xf32>
    %c240 = arith.constant 240 : index
    %c0_80 = arith.constant 0 : index
    %263 = vector.load %arg4[%c240, %c0_80] : memref<256x128xbf16, #tpu.memory_space<vmem>>, vector<16x3xbf16>
    %c0_81 = arith.constant 0 : index
    %c1536 = arith.constant 1536 : index
    %264 = vector.load %arg3[%c0_81, %c1536] : memref<1x1664xf32, #tpu.memory_space<vmem>>, vector<1x3xf32>
    %265 = arith.truncf %262 : vector<1x16xf32> to vector<1x16xbf16>
    %cst_82 = arith.constant dense<0.000000e+00> : vector<1x3xf32>
    %266 = tpu.matmul %265, %263, %cst_82 {dimension_numbers = #tpu.dot_dimension_numbers<[1], [0], [0], [1], [0, 0, 1, 1], [], []>} : vector<1x16xbf16>, vector<16x3xbf16>, vector<1x3xf32> -> vector<1x3xf32>
    %267 = arith.addf %266, %264 : vector<1x3xf32>
    %c0_83 = arith.constant 0 : index
    %c0_84 = arith.constant 0 : index
    %c0_85 = arith.constant 0 : index
    %268 = vector.load %arg5[%c0_83, %c0_84, %c0_85] : memref<1x1x3xf32, #tpu.memory_space<vmem>>, vector<1x1x3xf32>
    %269 = vector.shape_cast %268 : vector<1x1x3xf32> to vector<1x3xf32>
    %270 = vector.shape_cast %267 : vector<1x3xf32> to vector<1x1x3xf32>
    tpu.vector_store %arg5[%c0_83, %c0_84, %c0_85], %270 {strides = array<i32>} : memref<1x1x3xf32, #tpu.memory_space<vmem>>, vector<1x1x3xf32>,
    return
  }
  func.func @transform_0(%arg0: i32) -> (i32, i32, i32) {
    %c0_i32 = arith.constant 0 : i32
    %c0_i32_0 = arith.constant 0 : i32
    %c0_i32_1 = arith.constant 0 : i32
    return %arg0, %c0_i32, %c0_i32_0 : i32, i32, i32
  }
  func.func @transform_1(%arg0: i32) -> (i32, i32, i32) {
    %c0_i32 = arith.constant 0 : i32
    %c0_i32_0 = arith.constant 0 : i32
    %c0_i32_1 = arith.constant 0 : i32
    return %arg0, %c0_i32, %c0_i32_0 : i32, i32, i32
  }
  func.func @transform_2(%arg0: i32) -> (i32, i32) {
    %c0_i32 = arith.constant 0 : i32
    %c0_i32_0 = arith.constant 0 : i32
    %c0_i32_1 = arith.constant 0 : i32
    return %c0_i32, %c0_i32_0 : i32, i32
  }
  func.func @transform_3(%arg0: i32) -> (i32, i32) {
    %c0_i32 = arith.constant 0 : i32
    %c0_i32_0 = arith.constant 0 : i32
    %c0_i32_1 = arith.constant 0 : i32
    return %c0_i32, %c0_i32_0 : i32, i32
  }
  func.func @transform_4(%arg0: i32) -> (i32, i32, i32) {
    %c0_i32 = arith.constant 0 : i32
    %c0_i32_0 = arith.constant 0 : i32
    %c0_i32_1 = arith.constant 0 : i32
    return %arg0, %c0_i32, %c0_i32_0 : i32, i32, i32
  }
}

</mosaic_0001>

<llo_original>
// kernel: custom-call.1
$region0: #{custom-call.1}
  %s0 = inlined_call_operand.vmem [shape: f32[1664], index: 0, kind: output, shape index: {}]

// kernel: albert_forward.1
$region0: #{albert_forward.1}
  #allocation0 [shape = 'u32[]', space=smem, size = 0x4, offset = 0x4, fixed_abs, tag = 'smem constant byte address 0x4 - core index']
  #allocation1 [shape = 'u32[144,128]{1,0:T(1,128)}', space=vmem, size = 0x12000, scoped, tag = 'internal scratch']
  %s0 = inlined_call_operand.vmem [shape: f32[2,8,16], index: 0, kind: input, shape index: {}]
  %s1 = inlined_call_operand.vmem [shape: f32[2,1,8], index: 1, kind: input, shape index: {}]
  %s2 = inlined_call_operand.vmem [shape: f32[1,1664], index: 2, kind: input, shape index: {}]
  %s3 = inlined_call_operand.vmem [shape: bf16[256,128], index: 3, kind: input, shape index: {}]
  %s4 = inlined_call_operand.hbm [shape: f32[2,1,3], index: 4, kind: output, shape index: {}]
  %s5 = sld [smem:[#allocation0]]
  $region49: #{albert_forward.1} parent=0
    _
  %s7 = ssub.s32 1, %s5
  %s8 = scalar_select 0, %s7, %s5
  $region1: #{albert_forward.1} parent=0
    #allocation2 [shape = 'u8[1024]{0}', space=vmem, size = 0x400, scoped, tag = 'output window, operand 0']
    #allocation3 [shape = 's32[2]{0}', space=sflag, size = 0x8, scoped, tag = 'scoped memory for albert_forward.1']
    %9 = vsyncpa [#allocation3], 0
    %s10 = scalar_lea.sflag [#allocation3], 1
    %11 = vsyncpa %s10, 0
    loop: start=0, step=1, limit=4
    $region2: #{albert_forward.1} parent=1 // loop_pre_header
      _
    $region3: #{albert_forward.1} parent=1 // loop_header
      %s13 = sphi 0, %s17
      %p14 = scmp.ge.s32.totalorder %s13, 4
      %s23 = sphi 0, %s25
      %s26 = sphi 0, %s23
      %s27 = sphi 0, %s26
      %s43 = sphi 0, %s27
      %s49 = sphi 0, %s51
      %s52 = sphi 0, %s49
      %s53 = sphi 0, %s52
      %s69 = sphi 0, %s53
      %s73 = sphi 0, %s73
      %s75 = sphi 0, %s73
      %s76 = sphi 0, %s75
      %s90 = sphi 0, %s76
      %s94 = sphi 0, %s94
      %s96 = sphi 0, %s94
      %s97 = sphi 0, %s96
      %s111 = sphi 0, %s97
      %s117 = sphi 0, %s119
      %s120 = sphi 0, %s117
      %s121 = sphi 0, %s120
      %s137 = sphi 0, %s121
    $region4: #{albert_forward.1} parent=1 // loop_header_branch
      %16 = sbr.rel (%p14) target = $region8
    $region5: #{albert_forward.1} parent=1 // loop_body
      %s18 = ssub.s32 %s13, 1
      %s19 = ssub.s32 %s13, 2
      %s20 = sadd.s32 %s13, 1
      %s21 = ssub.s32 %s13, %s20
      %p22 = scmp.eq.s32.totalorder %s21, 0
      %s24 = sadd.s32 %s23, 1
      %s25 = scalar_select %p22, %s23, %s24
      %p28 = pneg %p22
      %p29 = scmp.eq.s32.totalorder %s13, 1
      %p30 = por %p28, %p29
      %p31 = scmp.ne.s32.totalorder %s23, %s26
      %p32 = scmp.eq.s32.totalorder %s13, 0
      %p33 = por %p31, %p32
      %p34 = scmp.ne.s32.totalorder %s23, %s26
      %p35 = scmp.eq.s32.totalorder %s18, 1
      %p36 = por %p34, %p35
      %p37 = scmp.ne.s32.totalorder %s26, %s27
      %p38 = scmp.eq.s32.totalorder %s18, 0
      %p39 = por %p37, %p38
      %p40 = scmp.ne.s32.totalorder %s26, %s27
      %p41 = scmp.eq.s32.totalorder %s19, 1
      %p42 = por %p40, %p41
      %p44 = scmp.ne.s32.totalorder %s27, %s43
      %p45 = scmp.eq.s32.totalorder %s19, 0
      %p46 = por %p44, %p45
      %s47 = ssub.s32 %s13, %s20
      %p48 = scmp.eq.s32.totalorder %s47, 0
      %s50 = sadd.s32 %s49, 1
      %s51 = scalar_select %p48, %s49, %s50
      %p54 = pneg %p48
      %p55 = scmp.eq.s32.totalorder %s13, 1
      %p56 = por %p54, %p55
      %p57 = scmp.ne.s32.totalorder %s49, %s52
      %p58 = scmp.eq.s32.totalorder %s13, 0
      %p59 = por %p57, %p58
      %p60 = scmp.ne.s32.totalorder %s49, %s52
      %p61 = scmp.eq.s32.totalorder %s18, 1
      %p62 = por %p60, %p61
      %p63 = scmp.ne.s32.totalorder %s52, %s53
      %p64 = scmp.eq.s32.totalorder %s18, 0
      %p65 = por %p63, %p64
      %p66 = scmp.ne.s32.totalorder %s52, %s53
      %p67 = scmp.eq.s32.totalorder %s19, 1
      %p68 = por %p66, %p67
      %p70 = scmp.ne.s32.totalorder %s53, %s69
      %p71 = scmp.eq.s32.totalorder %s19, 0
      %p72 = por %p70, %p71
      %s74 = sadd.s32 %s73, 1
      %p77 = scmp.eq.s32.totalorder %s13, 1
      %p78 = scmp.ne.s32.totalorder %s73, %s75
      %p79 = scmp.eq.s32.totalorder %s13, 0
      %p80 = por %p78, %p79
      %p81 = scmp.ne.s32.totalorder %s73, %s75
      %p82 = scmp.eq.s32.totalorder %s18, 1
      %p83 = por %p81, %p82
      %p84 = scmp.ne.s32.totalorder %s75, %s76
      %p85 = scmp.eq.s32.totalorder %s18, 0
      %p86 = por %p84, %p85
      %p87 = scmp.ne.s32.totalorder %s75, %s76
      %p88 = scmp.eq.s32.totalorder %s19, 1
      %p89 = por %p87, %p88
      %p91 = scmp.ne.s32.totalorder %s76, %s90
      %p92 = scmp.eq.s32.totalorder %s19, 0
      %p93 = por %p91, %p92
      %s95 = sadd.s32 %s94, 1
      %p98 = scmp.eq.s32.totalorder %s13, 1
      %p99 = scmp.ne.s32.totalorder %s94, %s96
      %p100 = scmp.eq.s32.totalorder %s13, 0
      %p101 = por %p99, %p100
      %p102 = scmp.ne.s32.totalorder %s94, %s96
      %p103 = scmp.eq.s32.totalorder %s18, 1
      %p104 = por %p102, %p103
      %p105 = scmp.ne.s32.totalorder %s96, %s97
      %p106 = scmp.eq.s32.totalorder %s18, 0
      %p107 = por %p105, %p106
      %p108 = scmp.ne.s32.totalorder %s96, %s97
      %p109 = scmp.eq.s32.totalorder %s19, 1
      %p110 = por %p108, %p109
      %p112 = scmp.ne.s32.totalorder %s97, %s111
      %p113 = scmp.eq.s32.totalorder %s19, 0
      %p114 = por %p112, %p113
      %s115 = ssub.s32 %s13, %s20
      %p116 = scmp.eq.s32.totalorder %s115, 0
      %s118 = sadd.s32 %s117, 1
      %s119 = scalar_select %p116, %s117, %s118
      %p122 = pneg %p116
      %p123 = scmp.eq.s32.totalorder %s13, 1
      %p124 = por %p122, %p123
      %p125 = scmp.ne.s32.totalorder %s117, %s120
      %p126 = scmp.eq.s32.totalorder %s13, 0
      %p127 = por %p125, %p126
      %p128 = scmp.ne.s32.totalorder %s117, %s120
      %p129 = scmp.eq.s32.totalorder %s18, 1
      %p130 = por %p128, %p129
      %p131 = scmp.ne.s32.totalorder %s120, %s121
      %p132 = scmp.eq.s32.totalorder %s18, 0
      %p133 = por %p131, %p132
      %p134 = scmp.ne.s32.totalorder %s120, %s121
      %p135 = scmp.eq.s32.totalorder %s19, 1
      %p136 = por %p134, %p135
      %p138 = scmp.ne.s32.totalorder %s121, %s137
      %p139 = scmp.eq.s32.totalorder %s19, 0
      %p140 = por %p138, %p139
      %p141 = scmp.le.s32.totalorder 1, %s13
      %p142 = scmp.lt.s32.totalorder %s13, 3
      %p143 = pnand %p141, %p142
      %p144 = pneg %p143
      // Predicated region
      $region9: #{albert_forward.1} parent=5 // pred_check
        _
      $region10: #{albert_forward.1} parent=5 // pred_check_branch
        %146 = sbr.rel (%p143) target = $region12
      $region11: #{albert_forward.1} parent=5 // pred_region
        %s147 = ssub.s32 %s13, 1
        // Predicated region
        $region13: #{albert_forward.1} parent=11 // pred_check
          %p148 = pneg %p86
        $region14: #{albert_forward.1} parent=11 // pred_check_branch
          %150 = sbr.rel (%p148) target = $region16
        $region15: #{albert_forward.1} parent=11 // pred_region
          _
        $region16: #{albert_forward.1} parent=11 // pred_fallthru
          _
        // Predicated region
        $region17: #{albert_forward.1} parent=11 // pred_check
          %p151 = pneg %p107
        $region18: #{albert_forward.1} parent=11 // pred_check_branch
          %153 = sbr.rel (%p151) target = $region20
        $region19: #{albert_forward.1} parent=11 // pred_region
          _
        $region20: #{albert_forward.1} parent=11 // pred_fallthru
          _
      $region12: #{albert_forward.1} parent=5 // pred_fallthru
        _
      %p154 = scmp.lt.s32.totalorder %s13, 2
      // Predicated region
      $region21: #{albert_forward.1} parent=5 // pred_check
        %p155 = pneg %p154
      $region22: #{albert_forward.1} parent=5 // pred_check_branch
        %157 = sbr.rel (%p155) target = $region24
      $region23: #{albert_forward.1} parent=5 // pred_region
        // Predicated region
        $region25: #{albert_forward.1} parent=23 // pred_check
          %p158 = pneg %p33
        $region26: #{albert_forward.1} parent=23 // pred_check_branch
          %160 = sbr.rel (%p158) target = $region28
        $region27: #{albert_forward.1} parent=23 // pred_region
          %p161 = scmp.lt.s32.totalorder %s13, 1
          %s162 = scalar_select %p161, %s13, 1
          %s163 = smul.addr %s162, 8
          %s164 = scalar_lea.vmem %s0, %s163
        $region28: #{albert_forward.1} parent=23 // pred_fallthru
          _
        // Predicated region
        $region29: #{albert_forward.1} parent=23 // pred_check
          %p165 = pneg %p59
        $region30: #{albert_forward.1} parent=23 // pred_check_branch
          %167 = sbr.rel (%p165) target = $region32
        $region31: #{albert_forward.1} parent=23 // pred_region
          %p168 = scmp.lt.s32.totalorder %s13, 1
          %s169 = scalar_select %p168, %s13, 1
          %s170 = scalar_lea.vmem %s1, %s169
        $region32: #{albert_forward.1} parent=23 // pred_fallthru
          _
      $region24: #{albert_forward.1} parent=5 // pred_fallthru
        _
      %p171 = scmp.le.s32.totalorder 1, %s13
      %p172 = scmp.lt.s32.totalorder %s13, 3
      %p173 = pnand %p171, %p172
      %p174 = pneg %p173
      // Predicated region
      $region33: #{albert_forward.1} parent=5 // pred_check
        _
      $region34: #{albert_forward.1} parent=5 // pred_check_branch
        %176 = sbr.rel (%p173) target = $region36
      $region35: #{albert_forward.1} parent=5 // pred_region
        %s177 = ssub.s32 %s13, 1
        %p178 = scmp.lt.s32.totalorder %s18, 1
        %s179 = scalar_select %p178, %s18, 1
        %s180 = smul.addr %s179, 8
        %s181 = scalar_lea.vmem %s0, %s180
        %p182 = pneg %p39
        %p183 = pneg %p36
        %p184 = scmp.lt.s32.totalorder %s18, 1
        %s185 = scalar_select %p184, %s18, 1
        %s186 = scalar_lea.vmem %s1, %s185
        %p187 = pneg %p65
        %p188 = pneg %p62
        %p189 = pneg %p86
        %p190 = pneg %p83
        %p191 = pneg %p107
        %p192 = pneg %p104
        %p193 = pneg %p133
        %p194 = pneg %p130
        %s195 = sand.u32 %s120, 1
        %s196 = scalar_lea.sflag [#allocation3], %s195
        %s197 = sand.u32 %s120, 1
        %s198 = scalar_lea.vmem [#allocation2], %s197
        %p199 = scmp.lt.s32.totalorder %s18, 1
        %s200 = scalar_select %p199, %s18, 1
        %s201 = smul.addr %s200, 8
        %s202 = scalar_lea.vmem %s0, %s201
        %p203 = scmp.lt.s32.totalorder %s18, 1
        %s204 = scalar_select %p203, %s18, 1
        %s205 = scalar_lea.vmem %s1, %s204
        %v207 = vld [vmem:[%s3] sm:$0xf]
        %v208 = vld [vmem:[%s3 + $0x4] sm:$0xf]
        %v209 = vld [vmem:[%s2 + $0x2] sm:$0x1]
        %v210 = vld [vmem:[%s3 + $0x8] sm:$0xf]
        %v211 = vld [vmem:[%s3 + $0xc] sm:$0xf]
        %v212 = vld [vmem:[%s3 + $0x10] sm:$0xf]
        %v213 = vld [vmem:[%s3 + $0x14] sm:$0xf]
        %v214 = vld [vmem:[%s2 + $0x3] sm:$0x1]
        %v215 = vld [vmem:[%s3 + $0x18] sm:$0xf]
        %v216 = vld [vmem:[%s3 + $0x1c] sm:$0xf]
        %v217 = vld [vmem:[%s3 + $0x20] sm:$0xf]
        %v218 = vld [vmem:[%s3 + $0x24] sm:$0xf]
        %v219 = vld [vmem:[%s2 + $0x4] sm:$0x1]
        %v220 = vld [vmem:[%s3 + $0x28] sm:$0xf]
        %v221 = vld [vmem:[%s3 + $0x2c] sm:$0xf]
        %v222 = vld [vmem:[%s3 + $0x30] sm:$0xf]
        %v223 = vld [vmem:[%s3 + $0x34] sm:$0xf]
        %v224 = vld [vmem:[%s2 + $0x7] sm:$0x1]
        %v225 = vld [vmem:[%s3 + $0x38] sm:$0xf]
        %v226 = vld [vmem:[%s3 + $0x3c] sm:$0xf]
        %v227 = vld [vmem:[%s3 + $0x40] sm:$0xf]
        %v228 = vld [vmem:[%s3 + $0x44] sm:$0xf]
        %v229 = vld [vmem:[%s3 + $0x48] sm:$0xf]
        %v230 = vld [vmem:[%s3 + $0x4c] sm:$0xf]
        %v231 = vld [vmem:[%s3 + $0x50] sm:$0xf]
        %v232 = vld [vmem:[%s3 + $0x54] sm:$0xf]
        %v233 = vld [vmem:[%s2 + $0x8] sm:$0x1]
        %v234 = vld [vmem:[%s2 + $0x5] sm:$0x1]
        %v235 = vld [vmem:[%s2 + $0x6] sm:$0x1]
        %v236 = vld [vmem:[%s2 + $0x9] sm:$0x1]
        %v237 = vld [vmem:[%s2 + $0xa] sm:$0x1]
        %v238 = vld [vmem:[%s205] sm:$0x1]
        %v239 = vld [vmem:[%s202] sm:$0xff]
        %v240 = vld [vmem:[%s2] sm:$0x1]
        %v241 = vld [vmem:[%s2 + $0x1] sm:$0x1]
        %vm242 = vcmask 130048
        %v243 = vsel %vm242, %v239, 0.0
        %244 = vadd.xlane.f32.xlu0 %v243
        %v245 = vpop.xlane.xlu0 %244
        %v246 = vrcp.pop 16.0
        %v247 = vmul.f32 %v245, %v246
        %v248 = vsub.f32 %v239, %v247
        %v249 = vmul.f32 %v248, %v248
        %v250 = vsel %vm242, %v249, 0.0
        %251 = vadd.xlane.f32.xlu0 %v250
        %v252 = vpop.xlane.xlu0 %251
        %v253 = vmul.f32 %v252, %v246
        %v254 = vadd.f32 %v253, 1e-12
        %v255 = vrsqrt.pop %v254
        %v256 = vmul.f32 %v248, %v255
        %v258 = vlaneseq
        %v259 = vshrl.u32 %v258, 7
        %v260 = vsub.s32 0, %v259
        %v261 = vrot.slane %v240, %v260
        %v263 = vmul.f32 %v256, %v261
        %v265 = vlaneseq
        %v266 = vshrl.u32 %v265, 7
        %v267 = vsub.s32 0, %v266
        %v268 = vrot.slane %v241, %v267
        %v270 = vadd.f32 %v263, %v268
        %v271 = vpack.c.bf16 %v270, %v270
        %v273 = vlaneseq
        %v274 = vshrl.u32 %v273, 7
        %v275 = vsub.s32 0, %v274
        %v276 = vrot.slane %v209, %v275
        %v280 = vunpack.c.l.b16 %v207
        %v281 = vunpack.c.l.b16 %v208
        %v282 = vpack.c.b16 %v281, %v280
        %v285 = vsel %vm242, %v271, 0
        %287 = vmatprep.subr.bf16.mxu0 0
        %288 = vmatpush1.bf16.msra.mxu0 %v282
        %289 = vmatprep.subr.bf16.mxu0 0
        %290 = vmatpush1.bf16.msra.mxu0 0
        %291 = vmatprep.subr.bf16.mxu0 0
        %292 = vmatpush1.bf16.msra.mxu0 0
        %293 = vmatprep.subr.bf16.mxu0 0
        %294 = vmatpush1.bf16.msra.mxu0 0
        %295 = vmatprep.subr.bf16.mxu0 0
        %296 = vmatpush1.bf16.msra.mxu0 0
        %297 = vmatprep.subr.bf16.mxu0 0
        %298 = vmatpush1.bf16.msra.mxu0 0
        %299 = vmatprep.subr.bf16.mxu0 0
        %300 = vmatpush1.bf16.msra.mxu0 0
        %301 = vmatprep.subr.bf16.mxu0 0
        %302 = vmatpush1.bf16.msra.mxu0 0
        %303 = vmatprep.subr.bf16.mxu0 0
        %304 = vmatpush1.bf16.msra.mxu0 0
        %305 = vmatprep.subr.bf16.mxu0 0
        %306 = vmatpush1.bf16.msra.mxu0 0
        %307 = vmatprep.subr.bf16.mxu0 0
        %308 = vmatpush1.bf16.msra.mxu0 0
        %309 = vmatprep.subr.bf16.mxu0 0
        %310 = vmatpush1.bf16.msra.mxu0 0
        %311 = vmatprep.subr.bf16.mxu0 0
        %312 = vmatpush1.bf16.msra.mxu0 0
        %313 = vmatprep.subr.bf16.mxu0 0
        %314 = vmatpush1.bf16.msra.mxu0 0
        %315 = vmatprep.subr.bf16.mxu0 0
        %316 = vmatpush1.bf16.msra.mxu0 0
        %317 = vmatprep.subr.bf16.mxu0 0
        %318 = vmatpush1.bf16.msra.mxu0 0
        %319 = vmatprep.mubr.bf16.mxu0 0
        %320 = vmatmul.mubr.bf16.gmra.mrb[0].mxu0 %v285
        %v321 = vpop.f32.mrb[0].mxu0
        %v322 = vadd.f32 %v276, %v321
        %v323 = vpop.f32.mrb[0].mxu0
        %v324 = vpop.f32.mrb[0].mxu0
        %v325 = vpop.f32.mrb[0].mxu0
        %326 = vdwg.mxu0
        %v327 = vpack.c.bf16 %v322, %v322
        %v329 = vlaneseq
        %v330 = vshrl.u32 %v329, 7
        %v331 = vsub.s32 0, %v330
        %v332 = vrot.slane %v214, %v331
        %v338 = vunpack.c.l.b16 %v210
        %v339 = vunpack.c.l.b16 %v211
        %v340 = vunpack.c.l.b16 %v212
        %v341 = vunpack.c.l.b16 %v213
        %v342 = vpack.c.b16 %v339, %v338
        %v343 = vpack.c.b16 %v341, %v340
        %vm346 = vcmask 261120
        %v348 = vsel %vm346, %v327, 0
        %350 = vmatprep.subr.bf16.mxu0 0
        %351 = vmatpush1.bf16.msra.mxu0 %v342
        %352 = vmatprep.subr.bf16.mxu0 0
        %353 = vmatpush1.bf16.msra.mxu0 %v343
        %354 = vmatprep.subr.bf16.mxu0 0
        %355 = vmatpush1.bf16.msra.mxu0 0
        %356 = vmatprep.subr.bf16.mxu0 0
        %357 = vmatpush1.bf16.msra.mxu0 0
        %358 = vmatprep.subr.bf16.mxu0 0
        %359 = vmatpush1.bf16.msra.mxu0 0
        %360 = vmatprep.subr.bf16.mxu0 0
        %361 = vmatpush1.bf16.msra.mxu0 0
        %362 = vmatprep.subr.bf16.mxu0 0
        %363 = vmatpush1.bf16.msra.mxu0 0
        %364 = vmatprep.subr.bf16.mxu0 0
        %365 = vmatpush1.bf16.msra.mxu0 0
        %366 = vmatprep.subr.bf16.mxu0 0
        %367 = vmatpush1.bf16.msra.mxu0 0
        %368 = vmatprep.subr.bf16.mxu0 0
        %369 = vmatpush1.bf16.msra.mxu0 0
        %370 = vmatprep.subr.bf16.mxu0 0
        %371 = vmatpush1.bf16.msra.mxu0 0
        %372 = vmatprep.subr.bf16.mxu0 0
        %373 = vmatpush1.bf16.msra.mxu0 0
        %374 = vmatprep.subr.bf16.mxu0 0
        %375 = vmatpush1.bf16.msra.mxu0 0
        %376 = vmatprep.subr.bf16.mxu0 0
        %377 = vmatpush1.bf16.msra.mxu0 0
        %378 = vmatprep.subr.bf16.mxu0 0
        %379 = vmatpush1.bf16.msra.mxu0 0
        %380 = vmatprep.subr.bf16.mxu0 0
        %381 = vmatpush1.bf16.msra.mxu0 0
        %382 = vmatprep.mubr.bf16.mxu0 0
        %383 = vmatmul.mubr.bf16.gmra.mrb[0].mxu0 %v348
        %v384 = vpop.f32.mrb[0].mxu0
        %v385 = vadd.f32 %v332, %v384
        %v386 = vpop.f32.mrb[0].mxu0
        %v387 = vpop.f32.mrb[0].mxu0
        %v388 = vpop.f32.mrb[0].mxu0
        %389 = vdwg.mxu0
        %391 = vrot.lane.b32.xlu0 %v385, 120
        %v392 = vpop.permute.xlu0 %391
        %394 = vrot.lane.b32.xlu0 %v385, 112
        %v395 = vpop.permute.xlu0 %394
        %397 = vrot.lane.b32.xlu0 %v385, 104
        %v398 = vpop.permute.xlu0 %397
        %v400 = vcombine.low %v385, %v395
        %v401 = vcombine.high %v385, %v395
        %v403 = vunpack.c.l.s4 1983009808
        %v404 = vunpack.c.0.s8 %v403
        %v405 = vlaneseq
        %v406 = vshrl.u32 %v405, 7
        %v407 = vsub.s32 %v404, %v406
        %v408 = vrot.slane %v400, %v407
        %v410 = vunpack.c.l.s4 1983009808
        %v411 = vunpack.c.0.s8 %v410
        %v412 = vlaneseq
        %v413 = vshrl.u32 %v412, 7
        %v414 = vsub.s32 %v411, %v413
        %v415 = vrot.slane %v401, %v414
        %v416 = vcombine.low %v392, %v398
        %v417 = vcombine.high %v392, %v398
        %v419 = vunpack.c.l.s4 1983009808
        %v420 = vunpack.c.0.s8 %v419
        %v421 = vlaneseq
        %v422 = vshrl.u32 %v421, 7
        %v423 = vsub.s32 %v420, %v422
        %v424 = vrot.slane %v416, %v423
        %v426 = vunpack.c.l.s4 1983009808
        %v427 = vunpack.c.0.s8 %v426
        %v428 = vlaneseq
        %v429 = vshrl.u32 %v428, 7
        %v430 = vsub.s32 %v427, %v429
        %v431 = vrot.slane %v417, %v430
        %v432 = vcombine.low %v408, %v424
        %v433 = vcombine.high %v408, %v424
        %v435 = vunpack.c.l.s4 1934713408
        %v436 = vunpack.c.0.s8 %v435
        %v437 = vlaneseq
        %v438 = vshrl.u32 %v437, 7
        %v439 = vsub.s32 %v436, %v438
        %v440 = vrot.slane %v432, %v439
        %v442 = vunpack.c.l.s4 1934713408
        %v443 = vunpack.c.0.s8 %v442
        %v444 = vlaneseq
        %v445 = vshrl.u32 %v444, 7
        %v446 = vsub.s32 %v443, %v445
        %v447 = vrot.slane %v433, %v446
        %v448 = vcombine.low %v415, %v431
        %v449 = vcombine.high %v415, %v431
        %v451 = vunpack.c.l.s4 1934713408
        %v452 = vunpack.c.0.s8 %v451
        %v453 = vlaneseq
        %v454 = vshrl.u32 %v453, 7
        %v455 = vsub.s32 %v452, %v454
        %v456 = vrot.slane %v448, %v455
        %v458 = vunpack.c.l.s4 1934713408
        %v459 = vunpack.c.0.s8 %v458
        %v460 = vlaneseq
        %v461 = vshrl.u32 %v460, 7
        %v462 = vsub.s32 %v459, %v461
        %v463 = vrot.slane %v449, %v462
        %v464 = vcombine.high %v440, 0.0
        %v465 = vcombine.high %v447, 0.0
        %v466 = vcombine.high %v456, 0.0
        %v467 = vcombine.high %v463, 0.0
        %v468 = vpack.c.bf16 %v440, %v440
        %v469 = vpack.c.bf16 %v464, %v464
        %v470 = vpack.c.bf16 %v447, %v447
        %v471 = vpack.c.bf16 %v465, %v465
        %v472 = vpack.c.bf16 %v456, %v456
        %v473 = vpack.c.bf16 %v466, %v466
        %v474 = vpack.c.bf16 %v463, %v463
        %v475 = vpack.c.bf16 %v467, %v467
        %476 = vrot.lane.b32.xlu0 %v385, 96
        %v477 = vpop.permute.xlu0 %476
        %478 = vrot.lane.b32.xlu0 %v392, 96
        %v479 = vpop.permute.xlu0 %478
        %480 = vrot.lane.b32.xlu0 %v395, 96
        %v481 = vpop.permute.xlu0 %480
        %482 = vrot.lane.b32.xlu0 %v398, 96
        %v483 = vpop.permute.xlu0 %482
        %v488 = vcombine.low %v477, %v481
        %v489 = vcombine.high %v477, %v481
        %v491 = vunpack.c.l.s4 1983009808
        %v492 = vunpack.c.0.s8 %v491
        %v493 = vlaneseq
        %v494 = vshrl.u32 %v493, 7
        %v495 = vsub.s32 %v492, %v494
        %v496 = vrot.slane %v488, %v495
        %v498 = vunpack.c.l.s4 1983009808
        %v499 = vunpack.c.0.s8 %v498
        %v500 = vlaneseq
        %v501 = vshrl.u32 %v500, 7
        %v502 = vsub.s32 %v499, %v501
        %v503 = vrot.slane %v489, %v502
        %v504 = vcombine.low %v479, %v483
        %v505 = vcombine.high %v479, %v483
        %v507 = vunpack.c.l.s4 1983009808
        %v508 = vunpack.c.0.s8 %v507
        %v509 = vlaneseq
        %v510 = vshrl.u32 %v509, 7
        %v511 = vsub.s32 %v508, %v510
        %v512 = vrot.slane %v504, %v511
        %v514 = vunpack.c.l.s4 1983009808
        %v515 = vunpack.c.0.s8 %v514
        %v516 = vlaneseq
        %v517 = vshrl.u32 %v516, 7
        %v518 = vsub.s32 %v515, %v517
        %v519 = vrot.slane %v505, %v518
        %v520 = vcombine.low %v496, %v512
        %v521 = vcombine.high %v496, %v512
        %v523 = vunpack.c.l.s4 1934713408
        %v524 = vunpack.c.0.s8 %v523
        %v525 = vlaneseq
        %v526 = vshrl.u32 %v525, 7
        %v527 = vsub.s32 %v524, %v526
        %v528 = vrot.slane %v520, %v527
        %v530 = vunpack.c.l.s4 1934713408
        %v531 = vunpack.c.0.s8 %v530
        %v532 = vlaneseq
        %v533 = vshrl.u32 %v532, 7
        %v534 = vsub.s32 %v531, %v533
        %v535 = vrot.slane %v521, %v534
        %v536 = vcombine.low %v503, %v519
        %v537 = vcombine.high %v503, %v519
        %v539 = vunpack.c.l.s4 1934713408
        %v540 = vunpack.c.0.s8 %v539
        %v541 = vlaneseq
        %v542 = vshrl.u32 %v541, 7
        %v543 = vsub.s32 %v540, %v542
        %v544 = vrot.slane %v536, %v543
        %v546 = vunpack.c.l.s4 1934713408
        %v547 = vunpack.c.0.s8 %v546
        %v548 = vlaneseq
        %v549 = vshrl.u32 %v548, 7
        %v550 = vsub.s32 %v547, %v549
        %v551 = vrot.slane %v537, %v550
        %v552 = vcombine.high %v528, 0.0
        %v553 = vcombine.high %v535, 0.0
        %v554 = vcombine.high %v544, 0.0
        %v555 = vcombine.high %v551, 0.0
        %v556 = vpack.c.bf16 %v528, %v528
        %v557 = vpack.c.bf16 %v552, %v552
        %v558 = vpack.c.bf16 %v535, %v535
        %v559 = vpack.c.bf16 %v553, %v553
        %v560 = vpack.c.bf16 %v544, %v544
        %v561 = vpack.c.bf16 %v554, %v554
        %v562 = vpack.c.bf16 %v551, %v551
        %v563 = vpack.c.bf16 %v555, %v555
        %564 = vrot.lane.b32.xlu0 %v385, 64
        %v565 = vpop.permute.xlu0 %564
        %566 = vrot.lane.b32.xlu0 %v392, 64
        %v567 = vpop.permute.xlu0 %566
        %568 = vrot.lane.b32.xlu0 %v395, 64
        %v569 = vpop.permute.xlu0 %568
        %570 = vrot.lane.b32.xlu0 %v398, 64
        %v571 = vpop.permute.xlu0 %570
        %v576 = vcombine.low %v565, %v569
        %v577 = vcombine.high %v565, %v569
        %v579 = vunpack.c.l.s4 1983009808
        %v580 = vunpack.c.0.s8 %v579
        %v581 = vlaneseq
        %v582 = vshrl.u32 %v581, 7
        %v583 = vsub.s32 %v580, %v582
        %v584 = vrot.slane %v576, %v583
        %v586 = vunpack.c.l.s4 1983009808
        %v587 = vunpack.c.0.s8 %v586
        %v588 = vlaneseq
        %v589 = vshrl.u32 %v588, 7
        %v590 = vsub.s32 %v587, %v589
        %v591 = vrot.slane %v577, %v590
        %v592 = vcombine.low %v567, %v571
        %v593 = vcombine.high %v567, %v571
        %v595 = vunpack.c.l.s4 1983009808
        %v596 = vunpack.c.0.s8 %v595
        %v597 = vlaneseq
        %v598 = vshrl.u32 %v597, 7
        %v599 = vsub.s32 %v596, %v598
        %v600 = vrot.slane %v592, %v599
        %v602 = vunpack.c.l.s4 1983009808
        %v603 = vunpack.c.0.s8 %v602
        %v604 = vlaneseq
        %v605 = vshrl.u32 %v604, 7
        %v606 = vsub.s32 %v603, %v605
        %v607 = vrot.slane %v593, %v606
        %v608 = vcombine.low %v584, %v600
        %v609 = vcombine.high %v584, %v600
        %v611 = vunpack.c.l.s4 1934713408
        %v612 = vunpack.c.0.s8 %v611
        %v613 = vlaneseq
        %v614 = vshrl.u32 %v613, 7
        %v615 = vsub.s32 %v612, %v614
        %v616 = vrot.slane %v608, %v615
        %v618 = vunpack.c.l.s4 1934713408
        %v619 = vunpack.c.0.s8 %v618
        %v620 = vlaneseq
        %v621 = vshrl.u32 %v620, 7
        %v622 = vsub.s32 %v619, %v621
        %v623 = vrot.slane %v609, %v622
        %v624 = vcombine.low %v591, %v607
        %v625 = vcombine.high %v591, %v607
        %v627 = vunpack.c.l.s4 1934713408
        %v628 = vunpack.c.0.s8 %v627
        %v629 = vlaneseq
        %v630 = vshrl.u32 %v629, 7
        %v631 = vsub.s32 %v628, %v630
        %v632 = vrot.slane %v624, %v631
        %v634 = vunpack.c.l.s4 1934713408
        %v635 = vunpack.c.0.s8 %v634
        %v636 = vlaneseq
        %v637 = vshrl.u32 %v636, 7
        %v638 = vsub.s32 %v635, %v637
        %v639 = vrot.slane %v625, %v638
        %v640 = vcombine.high %v616, 0.0
        %v641 = vcombine.high %v623, 0.0
        %v642 = vcombine.high %v632, 0.0
        %v643 = vcombine.high %v639, 0.0
        %v644 = vpack.c.bf16 %v616, %v616
        %v645 = vpack.c.bf16 %v640, %v640
        %v646 = vpack.c.bf16 %v623, %v623
        %v647 = vpack.c.bf16 %v641, %v641
        %v648 = vpack.c.bf16 %v632, %v632
        %v649 = vpack.c.bf16 %v642, %v642
        %v650 = vpack.c.bf16 %v639, %v639
        %v651 = vpack.c.bf16 %v643, %v643
        %v652 = vcombine.low %v468, %v472
        %v654 = vunpack.c.l.s4 1983009808
        %v655 = vunpack.c.0.s8 %v654
        %v656 = vlaneseq
        %v657 = vshrl.u32 %v656, 7
        %v658 = vsub.s32 %v655, %v657
        %v659 = vrot.slane %v652, %v658
        %v660 = vcombine.low %v470, %v474
        %v662 = vunpack.c.l.s4 1983009808
        %v663 = vunpack.c.0.s8 %v662
        %v664 = vlaneseq
        %v665 = vshrl.u32 %v664, 7
        %v666 = vsub.s32 %v663, %v665
        %v667 = vrot.slane %v660, %v666
        %v668 = vcombine.low %v659, %v667
        %v670 = vunpack.c.l.s4 1934713408
        %v671 = vunpack.c.0.s8 %v670
        %v672 = vlaneseq
        %v673 = vshrl.u32 %v672, 7
        %v674 = vsub.s32 %v671, %v673
        %v675 = vrot.slane %v668, %v674
        %v676 = vcombine.high %v675, 0
        %v677 = vcombine.low %v469, %v473
        %v679 = vunpack.c.l.s4 1983009808
        %v680 = vunpack.c.0.s8 %v679
        %v681 = vlaneseq
        %v682 = vshrl.u32 %v681, 7
        %v683 = vsub.s32 %v680, %v682
        %v684 = vrot.slane %v677, %v683
        %v685 = vcombine.low %v471, %v475
        %v687 = vunpack.c.l.s4 1983009808
        %v688 = vunpack.c.0.s8 %v687
        %v689 = vlaneseq
        %v690 = vshrl.u32 %v689, 7
        %v691 = vsub.s32 %v688, %v690
        %v692 = vrot.slane %v685, %v691
        %v693 = vcombine.low %v684, %v692
        %v695 = vunpack.c.l.s4 1934713408
        %v696 = vunpack.c.0.s8 %v695
        %v697 = vlaneseq
        %v698 = vshrl.u32 %v697, 7
        %v699 = vsub.s32 %v696, %v698
        %v700 = vrot.slane %v693, %v699
        %v701 = vcombine.high %v700, 0
        %v704 = vpack.i.b16 %v700, %v675
        %v705 = vshrl.u32 %v675, 16
        %v706 = vshrl.u32 %v700, 16
        %v707 = vpack.i.b16 %v706, %v705
        %v710 = vpack.i.b16 %v701, %v676
        %v711 = vshrl.u32 %v676, 16
        %v712 = vshrl.u32 %v701, 16
        %v713 = vpack.i.b16 %v712, %v711
        %714 = vxpose.xlu0.c.b16.start [1/8] %v556, 128
        %715 = vxpose.xlu0.c.b16.cont [2/8] 0, 128
        %716 = vxpose.xlu0.c.b16.cont [3/8] 0, 128
        %717 = vxpose.xlu0.c.b16.cont [4/8] 0, 128
        %718 = vxpose.xlu0.c.b16.cont [5/8] 0, 128
        %719 = vxpose.xlu0.c.b16.cont [6/8] 0, 128
        %720 = vxpose.xlu0.c.b16.cont [7/8] 0, 128
        %721 = vxpose.xlu0.c.b16.end [8/8] 0, 128
        %v722 = vpop.trf.xlu0
        %v723 = vpop.trf.xlu0
        %v724 = vpop.trf.xlu0
        %v725 = vpop.trf.xlu0
        %v726 = vpop.trf.xlu0
        %v727 = vpop.trf.xlu0
        %v728 = vpop.trf.xlu0
        %v729 = vpop.trf.xlu0
        %730 = vxpose.xlu0.c.b16.start [1/8] %v557, 128
        %731 = vxpose.xlu0.c.b16.cont [2/8] 0, 128
        %732 = vxpose.xlu0.c.b16.cont [3/8] 0, 128
        %733 = vxpose.xlu0.c.b16.cont [4/8] 0, 128
        %734 = vxpose.xlu0.c.b16.cont [5/8] 0, 128
        %735 = vxpose.xlu0.c.b16.cont [6/8] 0, 128
        %736 = vxpose.xlu0.c.b16.cont [7/8] 0, 128
        %737 = vxpose.xlu0.c.b16.end [8/8] 0, 128
        %v738 = vpop.trf.xlu0
        %v739 = vpop.trf.xlu0
        %v740 = vpop.trf.xlu0
        %v741 = vpop.trf.xlu0
        %v742 = vpop.trf.xlu0
        %v743 = vpop.trf.xlu0
        %v744 = vpop.trf.xlu0
        %v745 = vpop.trf.xlu0
        %746 = vxpose.xlu0.c.b16.start [1/8] %v558, 128
        %747 = vxpose.xlu0.c.b16.cont [2/8] 0, 128
        %748 = vxpose.xlu0.c.b16.cont [3/8] 0, 128
        %749 = vxpose.xlu0.c.b16.cont [4/8] 0, 128
        %750 = vxpose.xlu0.c.b16.cont [5/8] 0, 128
        %751 = vxpose.xlu0.c.b16.cont [6/8] 0, 128
        %752 = vxpose.xlu0.c.b16.cont [7/8] 0, 128
        %753 = vxpose.xlu0.c.b16.end [8/8] 0, 128
        %v754 = vpop.trf.xlu0
        %v755 = vpop.trf.xlu0
        %v756 = vpop.trf.xlu0
        %v757 = vpop.trf.xlu0
        %v758 = vpop.trf.xlu0
        %v759 = vpop.trf.xlu0
        %v760 = vpop.trf.xlu0
        %v761 = vpop.trf.xlu0
        %762 = vxpose.xlu0.c.b16.start [1/8] %v559, 128
        %763 = vxpose.xlu0.c.b16.cont [2/8] 0, 128
        %764 = vxpose.xlu0.c.b16.cont [3/8] 0, 128
        %765 = vxpose.xlu0.c.b16.cont [4/8] 0, 128
        %766 = vxpose.xlu0.c.b16.cont [5/8] 0, 128
        %767 = vxpose.xlu0.c.b16.cont [6/8] 0, 128
        %768 = vxpose.xlu0.c.b16.cont [7/8] 0, 128
        %769 = vxpose.xlu0.c.b16.end [8/8] 0, 128
        %v770 = vpop.trf.xlu0
        %v771 = vpop.trf.xlu0
        %v772 = vpop.trf.xlu0
        %v773 = vpop.trf.xlu0
        %v774 = vpop.trf.xlu0
        %v775 = vpop.trf.xlu0
        %v776 = vpop.trf.xlu0
        %v777 = vpop.trf.xlu0
        %778 = vxpose.xlu0.c.b16.start [1/8] %v560, 128
        %779 = vxpose.xlu0.c.b16.cont [2/8] 0, 128
        %780 = vxpose.xlu0.c.b16.cont [3/8] 0, 128
        %781 = vxpose.xlu0.c.b16.cont [4/8] 0, 128
        %782 = vxpose.xlu0.c.b16.cont [5/8] 0, 128
        %783 = vxpose.xlu0.c.b16.cont [6/8] 0, 128
        %784 = vxpose.xlu0.c.b16.cont [7/8] 0, 128
        %785 = vxpose.xlu0.c.b16.end [8/8] 0, 128
        %v786 = vpop.trf.xlu0
        %v787 = vpop.trf.xlu0
        %v788 = vpop.trf.xlu0
        %v789 = vpop.trf.xlu0
        %v790 = vpop.trf.xlu0
        %v791 = vpop.trf.xlu0
        %v792 = vpop.trf.xlu0
        %v793 = vpop.trf.xlu0
        %794 = vxpose.xlu0.c.b16.start [1/8] %v561, 128
        %795 = vxpose.xlu0.c.b16.cont [2/8] 0, 128
        %796 = vxpose.xlu0.c.b16.cont [3/8] 0, 128
        %797 = vxpose.xlu0.c.b16.cont [4/8] 0, 128
        %798 = vxpose.xlu0.c.b16.cont [5/8] 0, 128
        %799 = vxpose.xlu0.c.b16.cont [6/8] 0, 128
        %800 = vxpose.xlu0.c.b16.cont [7/8] 0, 128
        %801 = vxpose.xlu0.c.b16.end [8/8] 0, 128
        %v802 = vpop.trf.xlu0
        %v803 = vpop.trf.xlu0
        %v804 = vpop.trf.xlu0
        %v805 = vpop.trf.xlu0
        %v806 = vpop.trf.xlu0
        %v807 = vpop.trf.xlu0
        %v808 = vpop.trf.xlu0
        %v809 = vpop.trf.xlu0
        %810 = vxpose.xlu0.c.b16.start [1/8] %v562, 128
        %811 = vxpose.xlu0.c.b16.cont [2/8] 0, 128
        %812 = vxpose.xlu0.c.b16.cont [3/8] 0, 128
        %813 = vxpose.xlu0.c.b16.cont [4/8] 0, 128
        %814 = vxpose.xlu0.c.b16.cont [5/8] 0, 128
        %815 = vxpose.xlu0.c.b16.cont [6/8] 0, 128
        %816 = vxpose.xlu0.c.b16.cont [7/8] 0, 128
        %817 = vxpose.xlu0.c.b16.end [8/8] 0, 128
        %v818 = vpop.trf.xlu0
        %v819 = vpop.trf.xlu0
        %v820 = vpop.trf.xlu0
        %v821 = vpop.trf.xlu0
        %v822 = vpop.trf.xlu0
        %v823 = vpop.trf.xlu0
        %v824 = vpop.trf.xlu0
        %v825 = vpop.trf.xlu0
        %826 = vxpose.xlu0.c.b16.start [1/8] %v563, 128
        %827 = vxpose.xlu0.c.b16.cont [2/8] 0, 128
        %828 = vxpose.xlu0.c.b16.cont [3/8] 0, 128
        %829 = vxpose.xlu0.c.b16.cont [4/8] 0, 128
        %830 = vxpose.xlu0.c.b16.cont [5/8] 0, 128
        %831 = vxpose.xlu0.c.b16.cont [6/8] 0, 128
        %832 = vxpose.xlu0.c.b16.cont [7/8] 0, 128
        %833 = vxpose.xlu0.c.b16.end [8/8] 0, 128
        %v834 = vpop.trf.xlu0
        %v835 = vpop.trf.xlu0
        %v836 = vpop.trf.xlu0
        %v837 = vpop.trf.xlu0
        %v838 = vpop.trf.xlu0
        %v839 = vpop.trf.xlu0
        %v840 = vpop.trf.xlu0
        %v841 = vpop.trf.xlu0
        %v842 = vcombine.low %v722, %v786
        %v844 = vunpack.c.l.s4 1983009808
        %v845 = vunpack.c.0.s8 %v844
        %v846 = vlaneseq
        %v847 = vshrl.u32 %v846, 7
        %v848 = vsub.s32 %v845, %v847
        %v849 = vrot.slane %v842, %v848
        %v850 = vcombine.low %v754, %v818
        %v852 = vunpack.c.l.s4 1983009808
        %v853 = vunpack.c.0.s8 %v852
        %v854 = vlaneseq
        %v855 = vshrl.u32 %v854, 7
        %v856 = vsub.s32 %v853, %v855
        %v857 = vrot.slane %v850, %v856
        %v858 = vcombine.low %v849, %v857
        %v859 = vcombine.high %v849, %v857
        %v861 = vunpack.c.l.s4 1934713408
        %v862 = vunpack.c.0.s8 %v861
        %v863 = vlaneseq
        %v864 = vshrl.u32 %v863, 7
        %v865 = vsub.s32 %v862, %v864
        %v866 = vrot.slane %v858, %v865
        %v868 = vunpack.c.l.s4 1934713408
        %v869 = vunpack.c.0.s8 %v868
        %v870 = vlaneseq
        %v871 = vshrl.u32 %v870, 7
        %v872 = vsub.s32 %v869, %v871
        %v873 = vrot.slane %v859, %v872
        %v874 = vcombine.high %v866, 0
        %v875 = vcombine.high %v873, 0
        %v876 = vcombine.low %v738, %v802
        %v878 = vunpack.c.l.s4 1983009808
        %v879 = vunpack.c.0.s8 %v878
        %v880 = vlaneseq
        %v881 = vshrl.u32 %v880, 7
        %v882 = vsub.s32 %v879, %v881
        %v883 = vrot.slane %v876, %v882
        %v884 = vcombine.low %v770, %v834
        %v886 = vunpack.c.l.s4 1983009808
        %v887 = vunpack.c.0.s8 %v886
        %v888 = vlaneseq
        %v889 = vshrl.u32 %v888, 7
        %v890 = vsub.s32 %v887, %v889
        %v891 = vrot.slane %v884, %v890
        %v892 = vcombine.low %v883, %v891
        %v893 = vcombine.high %v883, %v891
        %v895 = vunpack.c.l.s4 1934713408
        %v896 = vunpack.c.0.s8 %v895
        %v897 = vlaneseq
        %v898 = vshrl.u32 %v897, 7
        %v899 = vsub.s32 %v896, %v898
        %v900 = vrot.slane %v892, %v899
        %v902 = vunpack.c.l.s4 1934713408
        %v903 = vunpack.c.0.s8 %v902
        %v904 = vlaneseq
        %v905 = vshrl.u32 %v904, 7
        %v906 = vsub.s32 %v903, %v905
        %v907 = vrot.slane %v893, %v906
        %v908 = vcombine.high %v900, 0
        %v909 = vcombine.high %v907, 0
        %v912 = vpack.i.b16 %v900, %v866
        %v914 = vshrl.u32 %v866, 16
        %v915 = vshrl.u32 %v900, 16
        %v916 = vpack.i.b16 %v915, %v914
        %v920 = vpack.i.b16 %v908, %v874
        %v922 = vshrl.u32 %v874, 16
        %v923 = vshrl.u32 %v908, 16
        %v924 = vpack.i.b16 %v923, %v922
        %v928 = vpack.i.b16 %v907, %v873
        %v930 = vshrl.u32 %v873, 16
        %v931 = vshrl.u32 %v907, 16
        %v932 = vpack.i.b16 %v931, %v930
        %v936 = vpack.i.b16 %v909, %v875
        %v938 = vshrl.u32 %v875, 16
        %v939 = vshrl.u32 %v909, 16
        %v940 = vpack.i.b16 %v939, %v938
        %942 = vxpose.xlu0.c.b16.start [1/8] %v912, 128
        %943 = vxpose.xlu0.c.b16.cont [2/8] 0, 128
        %944 = vxpose.xlu0.c.b16.cont [3/8] 0, 128
        %945 = vxpose.xlu0.c.b16.cont [4/8] 0, 128
        %946 = vxpose.xlu0.c.b16.cont [5/8] 0, 128
        %947 = vxpose.xlu0.c.b16.cont [6/8] 0, 128
        %948 = vxpose.xlu0.c.b16.cont [7/8] 0, 128
        %949 = vxpose.xlu0.c.b16.end [8/8] 0, 128
        %v950 = vpop.trf.xlu0
        %v951 = vpop.trf.xlu0
        %v952 = vpop.trf.xlu0
        %v953 = vpop.trf.xlu0
        %v954 = vpop.trf.xlu0
        %v955 = vpop.trf.xlu0
        %v956 = vpop.trf.xlu0
        %v957 = vpop.trf.xlu0
        %958 = vxpose.xlu0.c.b16.start [1/8] %v916, 128
        %959 = vxpose.xlu0.c.b16.cont [2/8] 0, 128
        %960 = vxpose.xlu0.c.b16.cont [3/8] 0, 128
        %961 = vxpose.xlu0.c.b16.cont [4/8] 0, 128
        %962 = vxpose.xlu0.c.b16.cont [5/8] 0, 128
        %963 = vxpose.xlu0.c.b16.cont [6/8] 0, 128
        %964 = vxpose.xlu0.c.b16.cont [7/8] 0, 128
        %965 = vxpose.xlu0.c.b16.end [8/8] 0, 128
        %v966 = vpop.trf.xlu0
        %v967 = vpop.trf.xlu0
        %v968 = vpop.trf.xlu0
        %v969 = vpop.trf.xlu0
        %v970 = vpop.trf.xlu0
        %v971 = vpop.trf.xlu0
        %v972 = vpop.trf.xlu0
        %v973 = vpop.trf.xlu0
        %974 = vxpose.xlu0.c.b16.start [1/8] %v920, 128
        %975 = vxpose.xlu0.c.b16.cont [2/8] 0, 128
        %976 = vxpose.xlu0.c.b16.cont [3/8] 0, 128
        %977 = vxpose.xlu0.c.b16.cont [4/8] 0, 128
        %978 = vxpose.xlu0.c.b16.cont [5/8] 0, 128
        %979 = vxpose.xlu0.c.b16.cont [6/8] 0, 128
        %980 = vxpose.xlu0.c.b16.cont [7/8] 0, 128
        %981 = vxpose.xlu0.c.b16.end [8/8] 0, 128
        %v982 = vpop.trf.xlu0
        %v983 = vpop.trf.xlu0
        %v984 = vpop.trf.xlu0
        %v985 = vpop.trf.xlu0
        %v986 = vpop.trf.xlu0
        %v987 = vpop.trf.xlu0
        %v988 = vpop.trf.xlu0
        %v989 = vpop.trf.xlu0
        %990 = vxpose.xlu0.c.b16.start [1/8] %v924, 128
        %991 = vxpose.xlu0.c.b16.cont [2/8] 0, 128
        %992 = vxpose.xlu0.c.b16.cont [3/8] 0, 128
        %993 = vxpose.xlu0.c.b16.cont [4/8] 0, 128
        %994 = vxpose.xlu0.c.b16.cont [5/8] 0, 128
        %995 = vxpose.xlu0.c.b16.cont [6/8] 0, 128
        %996 = vxpose.xlu0.c.b16.cont [7/8] 0, 128
        %997 = vxpose.xlu0.c.b16.end [8/8] 0, 128
        %v998 = vpop.trf.xlu0
        %v999 = vpop.trf.xlu0
        %v1000 = vpop.trf.xlu0
        %v1001 = vpop.trf.xlu0
        %v1002 = vpop.trf.xlu0
        %v1003 = vpop.trf.xlu0
        %v1004 = vpop.trf.xlu0
        %v1005 = vpop.trf.xlu0
        %1006 = vxpose.xlu0.c.b16.start [1/8] %v928, 128
        %1007 = vxpose.xlu0.c.b16.cont [2/8] 0, 128
        %1008 = vxpose.xlu0.c.b16.cont [3/8] 0, 128
        %1009 = vxpose.xlu0.c.b16.cont [4/8] 0, 128
        %1010 = vxpose.xlu0.c.b16.cont [5/8] 0, 128
        %1011 = vxpose.xlu0.c.b16.cont [6/8] 0, 128
        %1012 = vxpose.xlu0.c.b16.cont [7/8] 0, 128
        %1013 = vxpose.xlu0.c.b16.end [8/8] 0, 128
        %v1014 = vpop.trf.xlu0
        %v1015 = vpop.trf.xlu0
        %v1016 = vpop.trf.xlu0
        %v1017 = vpop.trf.xlu0
        %v1018 = vpop.trf.xlu0
        %v1019 = vpop.trf.xlu0
        %v1020 = vpop.trf.xlu0
        %v1021 = vpop.trf.xlu0
        %1022 = vxpose.xlu0.c.b16.start [1/8] %v932, 128
        %1023 = vxpose.xlu0.c.b16.cont [2/8] 0, 128
        %1024 = vxpose.xlu0.c.b16.cont [3/8] 0, 128
        %1025 = vxpose.xlu0.c.b16.cont [4/8] 0, 128
        %1026 = vxpose.xlu0.c.b16.cont [5/8] 0, 128
        %1027 = vxpose.xlu0.c.b16.cont [6/8] 0, 128
        %1028 = vxpose.xlu0.c.b16.cont [7/8] 0, 128
        %1029 = vxpose.xlu0.c.b16.end [8/8] 0, 128
        %v1030 = vpop.trf.xlu0
        %v1031 = vpop.trf.xlu0
        %v1032 = vpop.trf.xlu0
        %v1033 = vpop.trf.xlu0
        %v1034 = vpop.trf.xlu0
        %v1035 = vpop.trf.xlu0
        %v1036 = vpop.trf.xlu0
        %v1037 = vpop.trf.xlu0
        %1038 = vxpose.xlu0.c.b16.start [1/8] %v936, 128
        %1039 = vxpose.xlu0.c.b16.cont [2/8] 0, 128
        %1040 = vxpose.xlu0.c.b16.cont [3/8] 0, 128
        %1041 = vxpose.xlu0.c.b16.cont [4/8] 0, 128
        %1042 = vxpose.xlu0.c.b16.cont [5/8] 0, 128
        %1043 = vxpose.xlu0.c.b16.cont [6/8] 0, 128
        %1044 = vxpose.xlu0.c.b16.cont [7/8] 0, 128
        %1045 = vxpose.xlu0.c.b16.end [8/8] 0, 128
        %v1046 = vpop.trf.xlu0
        %v1047 = vpop.trf.xlu0
        %v1048 = vpop.trf.xlu0
        %v1049 = vpop.trf.xlu0
        %v1050 = vpop.trf.xlu0
        %v1051 = vpop.trf.xlu0
        %v1052 = vpop.trf.xlu0
        %v1053 = vpop.trf.xlu0
        %1054 = vxpose.xlu0.c.b16.start [1/8] %v940, 128
        %1055 = vxpose.xlu0.c.b16.cont [2/8] 0, 128
        %1056 = vxpose.xlu0.c.b16.cont [3/8] 0, 128
        %1057 = vxpose.xlu0.c.b16.cont [4/8] 0, 128
        %1058 = vxpose.xlu0.c.b16.cont [5/8] 0, 128
        %1059 = vxpose.xlu0.c.b16.cont [6/8] 0, 128
        %1060 = vxpose.xlu0.c.b16.cont [7/8] 0, 128
        %1061 = vxpose.xlu0.c.b16.end [8/8] 0, 128
        %v1062 = vpop.trf.xlu0
        %v1063 = vpop.trf.xlu0
        %v1064 = vpop.trf.xlu0
        %v1065 = vpop.trf.xlu0
        %v1066 = vpop.trf.xlu0
        %v1067 = vpop.trf.xlu0
        %v1068 = vpop.trf.xlu0
        %v1069 = vpop.trf.xlu0
        %v1070 = vcombine.low %v950, %v1014
        %v1072 = vunpack.c.l.s4 1983009808
        %v1073 = vunpack.c.0.s8 %v1072
        %v1074 = vlaneseq
        %v1075 = vshrl.u32 %v1074, 7
        %v1076 = vsub.s32 %v1073, %v1075
        %v1077 = vrot.slane %v1070, %v1076
        %v1078 = vcombine.low %v982, %v1046
        %v1080 = vunpack.c.l.s4 1983009808
        %v1081 = vunpack.c.0.s8 %v1080
        %v1082 = vlaneseq
        %v1083 = vshrl.u32 %v1082, 7
        %v1084 = vsub.s32 %v1081, %v1083
        %v1085 = vrot.slane %v1078, %v1084
        %v1086 = vcombine.low %v1077, %v1085
        %v1088 = vunpack.c.l.s4 1934713408
        %v1089 = vunpack.c.0.s8 %v1088
        %v1090 = vlaneseq
        %v1091 = vshrl.u32 %v1090, 7
        %v1092 = vsub.s32 %v1089, %v1091
        %v1093 = vrot.slane %v1086, %v1092
        %v1094 = vcombine.high %v1093, 0
        %v1095 = vcombine.low %v966, %v1030
        %v1097 = vunpack.c.l.s4 1983009808
        %v1098 = vunpack.c.0.s8 %v1097
        %v1099 = vlaneseq
        %v1100 = vshrl.u32 %v1099, 7
        %v1101 = vsub.s32 %v1098, %v1100
        %v1102 = vrot.slane %v1095, %v1101
        %v1103 = vcombine.low %v998, %v1062
        %v1105 = vunpack.c.l.s4 1983009808
        %v1106 = vunpack.c.0.s8 %v1105
        %v1107 = vlaneseq
        %v1108 = vshrl.u32 %v1107, 7
        %v1109 = vsub.s32 %v1106, %v1108
        %v1110 = vrot.slane %v1103, %v1109
        %v1111 = vcombine.low %v1102, %v1110
        %v1113 = vunpack.c.l.s4 1934713408
        %v1114 = vunpack.c.0.s8 %v1113
        %v1115 = vlaneseq
        %v1116 = vshrl.u32 %v1115, 7
        %v1117 = vsub.s32 %v1114, %v1116
        %v1118 = vrot.slane %v1111, %v1117
        %v1119 = vcombine.high %v1118, 0
        %v1122 = vpack.i.b16 %v1118, %v1093
        %v1123 = vshrl.u32 %v1093, 16
        %v1124 = vshrl.u32 %v1118, 16
        %v1125 = vpack.i.b16 %v1124, %v1123
        %v1128 = vpack.i.b16 %v1119, %v1094
        %v1129 = vshrl.u32 %v1094, 16
        %v1130 = vshrl.u32 %v1119, 16
        %v1131 = vpack.i.b16 %v1130, %v1129
        %vm1132 = vcmask 64512
        %v1134 = vsel %vm1132, %v704, 0
        %vm1136 = vcmask 1043456
        %v1138 = vsel %vm1136, %v1122, 0
        %1140 = vmatprep.subr.bf16.mxu0 0
        %1141 = vmatpush1.bf16.msra.mxu0 %v1138
        %1142 = vmatprep.subr.bf16.mxu0 0
        %1143 = vmatpush1.bf16.msra.mxu0 0
        %1144 = vmatprep.subr.bf16.mxu0 0
        %1145 = vmatpush1.bf16.msra.mxu0 0
        %1146 = vmatprep.subr.bf16.mxu0 0
        %1147 = vmatpush1.bf16.msra.mxu0 0
        %1148 = vmatprep.subr.bf16.mxu0 0
        %1149 = vmatpush1.bf16.msra.mxu0 0
        %1150 = vmatprep.subr.bf16.mxu0 0
        %1151 = vmatpush1.bf16.msra.mxu0 0
        %1152 = vmatprep.subr.bf16.mxu0 0
        %1153 = vmatpush1.bf16.msra.mxu0 0
        %1154 = vmatprep.subr.bf16.mxu0 0
        %1155 = vmatpush1.bf16.msra.mxu0 0
        %1156 = vmatprep.subr.bf16.mxu0 0
        %1157 = vmatpush1.bf16.msra.mxu0 0
        %1158 = vmatprep.subr.bf16.mxu0 0
        %1159 = vmatpush1.bf16.msra.mxu0 0
        %1160 = vmatprep.subr.bf16.mxu0 0
        %1161 = vmatpush1.bf16.msra.mxu0 0
        %1162 = vmatprep.subr.bf16.mxu0 0
        %1163 = vmatpush1.bf16.msra.mxu0 0
        %1164 = vmatprep.subr.bf16.mxu0 0
        %1165 = vmatpush1.bf16.msra.mxu0 0
        %1166 = vmatprep.subr.bf16.mxu0 0
        %1167 = vmatpush1.bf16.msra.mxu0 0
        %1168 = vmatprep.subr.bf16.mxu0 0
        %1169 = vmatpush1.bf16.msra.mxu0 0
        %1170 = vmatprep.subr.bf16.mxu0 0
        %1171 = vmatpush1.bf16.msra.mxu0 0
        %1172 = vmatprep.mubr.bf16.mxu0 0
        %1173 = vmatmul.mubr.bf16.gmra.mrb[0].mxu0 %v1134
        %v1174 = vpop.f32.mrb[0].mxu0
        %v1175 = vadd.f32 0.0, %v1174
        %v1176 = vpop.f32.mrb[0].mxu0
        %v1177 = vpop.f32.mrb[0].mxu0
        %v1178 = vpop.f32.mrb[0].mxu0
        %1179 = vdwg.mxu0
        %v1181 = vsel %vm1132, %v707, 0
        %v1184 = vsel %vm1136, %v1125, 0
        %1186 = vmatprep.subr.bf16.mxu0 0
        %1187 = vmatpush1.bf16.msra.mxu0 %v1184
        %1188 = vmatprep.subr.bf16.mxu0 0
        %1189 = vmatpush1.bf16.msra.mxu0 0
        %1190 = vmatprep.subr.bf16.mxu0 0
        %1191 = vmatpush1.bf16.msra.mxu0 0
        %1192 = vmatprep.subr.bf16.mxu0 0
        %1193 = vmatpush1.bf16.msra.mxu0 0
        %1194 = vmatprep.subr.bf16.mxu0 0
        %1195 = vmatpush1.bf16.msra.mxu0 0
        %1196 = vmatprep.subr.bf16.mxu0 0
        %1197 = vmatpush1.bf16.msra.mxu0 0
        %1198 = vmatprep.subr.bf16.mxu0 0
        %1199 = vmatpush1.bf16.msra.mxu0 0
        %1200 = vmatprep.subr.bf16.mxu0 0
        %1201 = vmatpush1.bf16.msra.mxu0 0
        %1202 = vmatprep.subr.bf16.mxu0 0
        %1203 = vmatpush1.bf16.msra.mxu0 0
        %1204 = vmatprep.subr.bf16.mxu0 0
        %1205 = vmatpush1.bf16.msra.mxu0 0
        %1206 = vmatprep.subr.bf16.mxu0 0
        %1207 = vmatpush1.bf16.msra.mxu0 0
        %1208 = vmatprep.subr.bf16.mxu0 0
        %1209 = vmatpush1.bf16.msra.mxu0 0
        %1210 = vmatprep.subr.bf16.mxu0 0
        %1211 = vmatpush1.bf16.msra.mxu0 0
        %1212 = vmatprep.subr.bf16.mxu0 0
        %1213 = vmatpush1.bf16.msra.mxu0 0
        %1214 = vmatprep.subr.bf16.mxu0 0
        %1215 = vmatpush1.bf16.msra.mxu0 0
        %1216 = vmatprep.subr.bf16.mxu0 0
        %1217 = vmatpush1.bf16.msra.mxu0 0
        %1218 = vmatprep.mubr.bf16.mxu0 0
        %1219 = vmatmul.mubr.bf16.gmra.mrb[0].mxu0 %v1181
        %v1220 = vpop.f32.mrb[0].mxu0
        %v1221 = vadd.f32 0.0, %v1220
        %v1222 = vpop.f32.mrb[0].mxu0
        %v1223 = vpop.f32.mrb[0].mxu0
        %v1224 = vpop.f32.mrb[0].mxu0
        %1225 = vdwg.mxu0
        %v1227 = vsel %vm1132, %v710, 0
        %v1230 = vsel %vm1136, %v1128, 0
        %1232 = vmatprep.subr.bf16.mxu0 0
        %1233 = vmatpush1.bf16.msra.mxu0 %v1230
        %1234 = vmatprep.subr.bf16.mxu0 0
        %1235 = vmatpush1.bf16.msra.mxu0 0
        %1236 = vmatprep.subr.bf16.mxu0 0
        %1237 = vmatpush1.bf16.msra.mxu0 0
        %1238 = vmatprep.subr.bf16.mxu0 0
        %1239 = vmatpush1.bf16.msra.mxu0 0
        %1240 = vmatprep.subr.bf16.mxu0 0
        %1241 = vmatpush1.bf16.msra.mxu0 0
        %1242 = vmatprep.subr.bf16.mxu0 0
        %1243 = vmatpush1.bf16.msra.mxu0 0
        %1244 = vmatprep.subr.bf16.mxu0 0
        %1245 = vmatpush1.bf16.msra.mxu0 0
        %1246 = vmatprep.subr.bf16.mxu0 0
        %1247 = vmatpush1.bf16.msra.mxu0 0
        %1248 = vmatprep.subr.bf16.mxu0 0
        %1249 = vmatpush1.bf16.msra.mxu0 0
        %1250 = vmatprep.subr.bf16.mxu0 0
        %1251 = vmatpush1.bf16.msra.mxu0 0
        %1252 = vmatprep.subr.bf16.mxu0 0
        %1253 = vmatpush1.bf16.msra.mxu0 0
        %1254 = vmatprep.subr.bf16.mxu0 0
        %1255 = vmatpush1.bf16.msra.mxu0 0
        %1256 = vmatprep.subr.bf16.mxu0 0
        %1257 = vmatpush1.bf16.msra.mxu0 0
        %1258 = vmatprep.subr.bf16.mxu0 0
        %1259 = vmatpush1.bf16.msra.mxu0 0
        %1260 = vmatprep.subr.bf16.mxu0 0
        %1261 = vmatpush1.bf16.msra.mxu0 0
        %1262 = vmatprep.subr.bf16.mxu0 0
        %1263 = vmatpush1.bf16.msra.mxu0 0
        %1264 = vmatprep.mubr.bf16.mxu0 0
        %1265 = vmatmul.mubr.bf16.gmra.mrb[0].mxu0 %v1227
        %v1266 = vpop.f32.mrb[0].mxu0
        %v1267 = vadd.f32 0.0, %v1266
        %v1268 = vpop.f32.mrb[0].mxu0
        %v1269 = vpop.f32.mrb[0].mxu0
        %v1270 = vpop.f32.mrb[0].mxu0
        %1271 = vdwg.mxu0
        %v1273 = vsel %vm1132, %v713, 0
        %v1276 = vsel %vm1136, %v1131, 0
        %1278 = vmatprep.subr.bf16.mxu0 0
        %1279 = vmatpush1.bf16.msra.mxu0 %v1276
        %1280 = vmatprep.subr.bf16.mxu0 0
        %1281 = vmatpush1.bf16.msra.mxu0 0
        %1282 = vmatprep.subr.bf16.mxu0 0
        %1283 = vmatpush1.bf16.msra.mxu0 0
        %1284 = vmatprep.subr.bf16.mxu0 0
        %1285 = vmatpush1.bf16.msra.mxu0 0
        %1286 = vmatprep.subr.bf16.mxu0 0
        %1287 = vmatpush1.bf16.msra.mxu0 0
        %1288 = vmatprep.subr.bf16.mxu0 0
        %1289 = vmatpush1.bf16.msra.mxu0 0
        %1290 = vmatprep.subr.bf16.mxu0 0
        %1291 = vmatpush1.bf16.msra.mxu0 0
        %1292 = vmatprep.subr.bf16.mxu0 0
        %1293 = vmatpush1.bf16.msra.mxu0 0
        %1294 = vmatprep.subr.bf16.mxu0 0
        %1295 = vmatpush1.bf16.msra.mxu0 0
        %1296 = vmatprep.subr.bf16.mxu0 0
        %1297 = vmatpush1.bf16.msra.mxu0 0
        %1298 = vmatprep.subr.bf16.mxu0 0
        %1299 = vmatpush1.bf16.msra.mxu0 0
        %1300 = vmatprep.subr.bf16.mxu0 0
        %1301 = vmatpush1.bf16.msra.mxu0 0
        %1302 = vmatprep.subr.bf16.mxu0 0
        %1303 = vmatpush1.bf16.msra.mxu0 0
        %1304 = vmatprep.subr.bf16.mxu0 0
        %1305 = vmatpush1.bf16.msra.mxu0 0
        %1306 = vmatprep.subr.bf16.mxu0 0
        %1307 = vmatpush1.bf16.msra.mxu0 0
        %1308 = vmatprep.subr.bf16.mxu0 0
        %1309 = vmatpush1.bf16.msra.mxu0 0
        %1310 = vmatprep.mubr.bf16.mxu0 0
        %1311 = vmatmul.mubr.bf16.gmra.mrb[0].mxu0 %v1273
        %v1312 = vpop.f32.mrb[0].mxu0
        %v1313 = vadd.f32 0.0, %v1312
        %v1314 = vpop.f32.mrb[0].mxu0
        %v1315 = vpop.f32.mrb[0].mxu0
        %v1316 = vpop.f32.mrb[0].mxu0
        %1317 = vdwg.mxu0
        %v1318 = vmul.f32 %v1175, 0.35355338
        %v1319 = vmul.f32 %v1221, 0.35355338
        %v1320 = vmul.f32 %v1267, 0.35355338
        %v1321 = vmul.f32 %v1313, 0.35355338
        %v1323 = vlaneseq
        %v1324 = vshrl.u32 %v1323, 7
        %v1325 = vsub.s32 0, %v1324
        %v1326 = vrot.slane %v238, %v1325
        %v1328 = vadd.f32 %v1318, %v1326
        %v1329 = vadd.f32 %v1319, %v1326
        %v1330 = vadd.f32 %v1320, %v1326
        %v1331 = vadd.f32 %v1321, %v1326
        %v1332 = vsel %vm1132, %v1328, -inf
        %1333 = vmax.xlane.f32.xlu0 %v1332
        %v1334 = vpop.xlane.xlu0 %1333
        %v1335 = vsel %vm1132, %v1329, -inf
        %1336 = vmax.xlane.f32.xlu0 %v1335
        %v1337 = vpop.xlane.xlu0 %1336
        %v1338 = vsel %vm1132, %v1330, -inf
        %1339 = vmax.xlane.f32.xlu0 %v1338
        %v1340 = vpop.xlane.xlu0 %1339
        %v1341 = vsel %vm1132, %v1331, -inf
        %1342 = vmax.xlane.f32.xlu0 %v1341
        %v1343 = vpop.xlane.xlu0 %1342
        %v1344 = vsub.f32 %v1328, %v1334
        %v1345 = vsub.f32 %v1329, %v1337
        %v1346 = vsub.f32 %v1330, %v1340
        %v1347 = vsub.f32 %v1331, %v1343
        %v1348 = vmul.f32 %v1344, 1.442695
        %v1349 = vpow.pop %v1348
        %v1350 = vmul.f32 %v1345, 1.442695
        %v1351 = vpow.pop %v1350
        %v1352 = vmul.f32 %v1346, 1.442695
        %v1353 = vpow.pop %v1352
        %v1354 = vmul.f32 %v1347, 1.442695
        %v1355 = vpow.pop %v1354
        %v1356 = vsel %vm1132, %v1349, 0.0
        %1357 = vadd.xlane.f32.xlu0 %v1356
        %v1358 = vpop.xlane.xlu0 %1357
        %v1359 = vsel %vm1132, %v1351, 0.0
        %1360 = vadd.xlane.f32.xlu0 %v1359
        %v1361 = vpop.xlane.xlu0 %1360
        %v1362 = vsel %vm1132, %v1353, 0.0
        %1363 = vadd.xlane.f32.xlu0 %v1362
        %v1364 = vpop.xlane.xlu0 %1363
        %v1365 = vsel %vm1132, %v1355, 0.0
        %1366 = vadd.xlane.f32.xlu0 %v1365
        %v1367 = vpop.xlane.xlu0 %1366
        %v1368 = vrcp.pop %v1358
        %v1369 = vrcp.pop %v1361
        %v1370 = vrcp.pop %v1364
        %v1371 = vrcp.pop %v1367
        %v1372 = vmul.f32 %v1349, %v1368
        %v1373 = vmul.f32 %v1351, %v1369
        %v1374 = vmul.f32 %v1353, %v1370
        %v1375 = vmul.f32 %v1355, %v1371
        %v1376 = vpack.c.bf16 %v1372, %v1372
        %v1377 = vpack.c.bf16 %v1373, %v1373
        %v1378 = vpack.c.bf16 %v1374, %v1374
        %v1379 = vpack.c.bf16 %v1375, %v1375
        %1380 = vxpose.xlu0.c.b16.start [1/8] %v644, 128
        %1381 = vxpose.xlu0.c.b16.cont [2/8] 0, 128
        %1382 = vxpose.xlu0.c.b16.cont [3/8] 0, 128
        %1383 = vxpose.xlu0.c.b16.cont [4/8] 0, 128
        %1384 = vxpose.xlu0.c.b16.cont [5/8] 0, 128
        %1385 = vxpose.xlu0.c.b16.cont [6/8] 0, 128
        %1386 = vxpose.xlu0.c.b16.cont [7/8] 0, 128
        %1387 = vxpose.xlu0.c.b16.end [8/8] 0, 128
        %v1388 = vpop.trf.xlu0
        %v1389 = vpop.trf.xlu0
        %v1390 = vpop.trf.xlu0
        %v1391 = vpop.trf.xlu0
        %v1392 = vpop.trf.xlu0
        %v1393 = vpop.trf.xlu0
        %v1394 = vpop.trf.xlu0
        %v1395 = vpop.trf.xlu0
        %1396 = vxpose.xlu0.c.b16.start [1/8] %v645, 128
        %1397 = vxpose.xlu0.c.b16.cont [2/8] 0, 128
        %1398 = vxpose.xlu0.c.b16.cont [3/8] 0, 128
        %1399 = vxpose.xlu0.c.b16.cont [4/8] 0, 128
        %1400 = vxpose.xlu0.c.b16.cont [5/8] 0, 128
        %1401 = vxpose.xlu0.c.b16.cont [6/8] 0, 128
        %1402 = vxpose.xlu0.c.b16.cont [7/8] 0, 128
        %1403 = vxpose.xlu0.c.b16.end [8/8] 0, 128
        %v1404 = vpop.trf.xlu0
        %v1405 = vpop.trf.xlu0
        %v1406 = vpop.trf.xlu0
        %v1407 = vpop.trf.xlu0
        %v1408 = vpop.trf.xlu0
        %v1409 = vpop.trf.xlu0
        %v1410 = vpop.trf.xlu0
        %v1411 = vpop.trf.xlu0
        %1412 = vxpose.xlu0.c.b16.start [1/8] %v646, 128
        %1413 = vxpose.xlu0.c.b16.cont [2/8] 0, 128
        %1414 = vxpose.xlu0.c.b16.cont [3/8] 0, 128
        %1415 = vxpose.xlu0.c.b16.cont [4/8] 0, 128
        %1416 = vxpose.xlu0.c.b16.cont [5/8] 0, 128
        %1417 = vxpose.xlu0.c.b16.cont [6/8] 0, 128
        %1418 = vxpose.xlu0.c.b16.cont [7/8] 0, 128
        %1419 = vxpose.xlu0.c.b16.end [8/8] 0, 128
        %v1420 = vpop.trf.xlu0
        %v1421 = vpop.trf.xlu0
        %v1422 = vpop.trf.xlu0
        %v1423 = vpop.trf.xlu0
        %v1424 = vpop.trf.xlu0
        %v1425 = vpop.trf.xlu0
        %v1426 = vpop.trf.xlu0
        %v1427 = vpop.trf.xlu0
        %1428 = vxpose.xlu0.c.b16.start [1/8] %v647, 128
        %1429 = vxpose.xlu0.c.b16.cont [2/8] 0, 128
        %1430 = vxpose.xlu0.c.b16.cont [3/8] 0, 128
        %1431 = vxpose.xlu0.c.b16.cont [4/8] 0, 128
        %1432 = vxpose.xlu0.c.b16.cont [5/8] 0, 128
        %1433 = vxpose.xlu0.c.b16.cont [6/8] 0, 128
        %1434 = vxpose.xlu0.c.b16.cont [7/8] 0, 128
        %1435 = vxpose.xlu0.c.b16.end [8/8] 0, 128
        %v1436 = vpop.trf.xlu0
        %v1437 = vpop.trf.xlu0
        %v1438 = vpop.trf.xlu0
        %v1439 = vpop.trf.xlu0
        %v1440 = vpop.trf.xlu0
        %v1441 = vpop.trf.xlu0
        %v1442 = vpop.trf.xlu0
        %v1443 = vpop.trf.xlu0
        %1444 = vxpose.xlu0.c.b16.start [1/8] %v648, 128
        %1445 = vxpose.xlu0.c.b16.cont [2/8] 0, 128
        %1446 = vxpose.xlu0.c.b16.cont [3/8] 0, 128
        %1447 = vxpose.xlu0.c.b16.cont [4/8] 0, 128
        %1448 = vxpose.xlu0.c.b16.cont [5/8] 0, 128
        %1449 = vxpose.xlu0.c.b16.cont [6/8] 0, 128
        %1450 = vxpose.xlu0.c.b16.cont [7/8] 0, 128
        %1451 = vxpose.xlu0.c.b16.end [8/8] 0, 128
        %v1452 = vpop.trf.xlu0
        %v1453 = vpop.trf.xlu0
        %v1454 = vpop.trf.xlu0
        %v1455 = vpop.trf.xlu0
        %v1456 = vpop.trf.xlu0
        %v1457 = vpop.trf.xlu0
        %v1458 = vpop.trf.xlu0
        %v1459 = vpop.trf.xlu0
        %1460 = vxpose.xlu0.c.b16.start [1/8] %v649, 128
        %1461 = vxpose.xlu0.c.b16.cont [2/8] 0, 128
        %1462 = vxpose.xlu0.c.b16.cont [3/8] 0, 128
        %1463 = vxpose.xlu0.c.b16.cont [4/8] 0, 128
        %1464 = vxpose.xlu0.c.b16.cont [5/8] 0, 128
        %1465 = vxpose.xlu0.c.b16.cont [6/8] 0, 128
        %1466 = vxpose.xlu0.c.b16.cont [7/8] 0, 128
        %1467 = vxpose.xlu0.c.b16.end [8/8] 0, 128
        %v1468 = vpop.trf.xlu0
        %v1469 = vpop.trf.xlu0
        %v1470 = vpop.trf.xlu0
        %v1471 = vpop.trf.xlu0
        %v1472 = vpop.trf.xlu0
        %v1473 = vpop.trf.xlu0
        %v1474 = vpop.trf.xlu0
        %v1475 = vpop.trf.xlu0
        %1476 = vxpose.xlu0.c.b16.start [1/8] %v650, 128
        %1477 = vxpose.xlu0.c.b16.cont [2/8] 0, 128
        %1478 = vxpose.xlu0.c.b16.cont [3/8] 0, 128
        %1479 = vxpose.xlu0.c.b16.cont [4/8] 0, 128
        %1480 = vxpose.xlu0.c.b16.cont [5/8] 0, 128
        %1481 = vxpose.xlu0.c.b16.cont [6/8] 0, 128
        %1482 = vxpose.xlu0.c.b16.cont [7/8] 0, 128
        %1483 = vxpose.xlu0.c.b16.end [8/8] 0, 128
        %v1484 = vpop.trf.xlu0
        %v1485 = vpop.trf.xlu0
        %v1486 = vpop.trf.xlu0
        %v1487 = vpop.trf.xlu0
        %v1488 = vpop.trf.xlu0
        %v1489 = vpop.trf.xlu0
        %v1490 = vpop.trf.xlu0
        %v1491 = vpop.trf.xlu0
        %1492 = vxpose.xlu0.c.b16.start [1/8] %v651, 128
        %1493 = vxpose.xlu0.c.b16.cont [2/8] 0, 128
        %1494 = vxpose.xlu0.c.b16.cont [3/8] 0, 128
        %1495 = vxpose.xlu0.c.b16.cont [4/8] 0, 128
        %1496 = vxpose.xlu0.c.b16.cont [5/8] 0, 128
        %1497 = vxpose.xlu0.c.b16.cont [6/8] 0, 128
        %1498 = vxpose.xlu0.c.b16.cont [7/8] 0, 128
        %1499 = vxpose.xlu0.c.b16.end [8/8] 0, 128
        %v1500 = vpop.trf.xlu0
        %v1501 = vpop.trf.xlu0
        %v1502 = vpop.trf.xlu0
        %v1503 = vpop.trf.xlu0
        %v1504 = vpop.trf.xlu0
        %v1505 = vpop.trf.xlu0
        %v1506 = vpop.trf.xlu0
        %v1507 = vpop.trf.xlu0
        %v1508 = vcombine.low %v1388, %v1452
        %v1510 = vunpack.c.l.s4 1983009808
        %v1511 = vunpack.c.0.s8 %v1510
        %v1512 = vlaneseq
        %v1513 = vshrl.u32 %v1512, 7
        %v1514 = vsub.s32 %v1511, %v1513
        %v1515 = vrot.slane %v1508, %v1514
        %v1516 = vcombine.low %v1420, %v1484
        %v1518 = vunpack.c.l.s4 1983009808
        %v1519 = vunpack.c.0.s8 %v1518
        %v1520 = vlaneseq
        %v1521 = vshrl.u32 %v1520, 7
        %v1522 = vsub.s32 %v1519, %v1521
        %v1523 = vrot.slane %v1516, %v1522
        %v1524 = vcombine.low %v1515, %v1523
        %v1525 = vcombine.high %v1515, %v1523
        %v1527 = vunpack.c.l.s4 1934713408
        %v1528 = vunpack.c.0.s8 %v1527
        %v1529 = vlaneseq
        %v1530 = vshrl.u32 %v1529, 7
        %v1531 = vsub.s32 %v1528, %v1530
        %v1532 = vrot.slane %v1524, %v1531
        %v1534 = vunpack.c.l.s4 1934713408
        %v1535 = vunpack.c.0.s8 %v1534
        %v1536 = vlaneseq
        %v1537 = vshrl.u32 %v1536, 7
        %v1538 = vsub.s32 %v1535, %v1537
        %v1539 = vrot.slane %v1525, %v1538
        %v1540 = vcombine.high %v1532, 0
        %v1541 = vcombine.high %v1539, 0
        %v1542 = vcombine.low %v1404, %v1468
        %v1544 = vunpack.c.l.s4 1983009808
        %v1545 = vunpack.c.0.s8 %v1544
        %v1546 = vlaneseq
        %v1547 = vshrl.u32 %v1546, 7
        %v1548 = vsub.s32 %v1545, %v1547
        %v1549 = vrot.slane %v1542, %v1548
        %v1550 = vcombine.low %v1436, %v1500
        %v1552 = vunpack.c.l.s4 1983009808
        %v1553 = vunpack.c.0.s8 %v1552
        %v1554 = vlaneseq
        %v1555 = vshrl.u32 %v1554, 7
        %v1556 = vsub.s32 %v1553, %v1555
        %v1557 = vrot.slane %v1550, %v1556
        %v1558 = vcombine.low %v1549, %v1557
        %v1559 = vcombine.high %v1549, %v1557
        %v1561 = vunpack.c.l.s4 1934713408
        %v1562 = vunpack.c.0.s8 %v1561
        %v1563 = vlaneseq
        %v1564 = vshrl.u32 %v1563, 7
        %v1565 = vsub.s32 %v1562, %v1564
        %v1566 = vrot.slane %v1558, %v1565
        %v1568 = vunpack.c.l.s4 1934713408
        %v1569 = vunpack.c.0.s8 %v1568
        %v1570 = vlaneseq
        %v1571 = vshrl.u32 %v1570, 7
        %v1572 = vsub.s32 %v1569, %v1571
        %v1573 = vrot.slane %v1559, %v1572
        %v1574 = vcombine.high %v1566, 0
        %v1575 = vcombine.high %v1573, 0
        %v1578 = vpack.i.b16 %v1566, %v1532
        %v1580 = vshrl.u32 %v1532, 16
        %v1581 = vshrl.u32 %v1566, 16
        %v1582 = vpack.i.b16 %v1581, %v1580
        %v1586 = vpack.i.b16 %v1574, %v1540
        %v1588 = vshrl.u32 %v1540, 16
        %v1589 = vshrl.u32 %v1574, 16
        %v1590 = vpack.i.b16 %v1589, %v1588
        %v1594 = vpack.i.b16 %v1573, %v1539
        %v1596 = vshrl.u32 %v1539, 16
        %v1597 = vshrl.u32 %v1573, 16
        %v1598 = vpack.i.b16 %v1597, %v1596
        %v1602 = vpack.i.b16 %v1575, %v1541
        %v1604 = vshrl.u32 %v1541, 16
        %v1605 = vshrl.u32 %v1575, 16
        %v1606 = vpack.i.b16 %v1605, %v1604
        %1608 = vxpose.xlu0.c.b16.start [1/8] %v1578, 128
        %1609 = vxpose.xlu0.c.b16.cont [2/8] 0, 128
        %1610 = vxpose.xlu0.c.b16.cont [3/8] 0, 128
        %1611 = vxpose.xlu0.c.b16.cont [4/8] 0, 128
        %1612 = vxpose.xlu0.c.b16.cont [5/8] 0, 128
        %1613 = vxpose.xlu0.c.b16.cont [6/8] 0, 128
        %1614 = vxpose.xlu0.c.b16.cont [7/8] 0, 128
        %1615 = vxpose.xlu0.c.b16.end [8/8] 0, 128
        %v1616 = vpop.trf.xlu0
        %v1617 = vpop.trf.xlu0
        %v1618 = vpop.trf.xlu0
        %v1619 = vpop.trf.xlu0
        %v1620 = vpop.trf.xlu0
        %v1621 = vpop.trf.xlu0
        %v1622 = vpop.trf.xlu0
        %v1623 = vpop.trf.xlu0
        %1624 = vxpose.xlu0.c.b16.start [1/8] %v1582, 128
        %1625 = vxpose.xlu0.c.b16.cont [2/8] 0, 128
        %1626 = vxpose.xlu0.c.b16.cont [3/8] 0, 128
        %1627 = vxpose.xlu0.c.b16.cont [4/8] 0, 128
        %1628 = vxpose.xlu0.c.b16.cont [5/8] 0, 128
        %1629 = vxpose.xlu0.c.b16.cont [6/8] 0, 128
        %1630 = vxpose.xlu0.c.b16.cont [7/8] 0, 128
        %1631 = vxpose.xlu0.c.b16.end [8/8] 0, 128
        %v1632 = vpop.trf.xlu0
        %v1633 = vpop.trf.xlu0
        %v1634 = vpop.trf.xlu0
        %v1635 = vpop.trf.xlu0
        %v1636 = vpop.trf.xlu0
        %v1637 = vpop.trf.xlu0
        %v1638 = vpop.trf.xlu0
        %v1639 = vpop.trf.xlu0
        %1640 = vxpose.xlu0.c.b16.start [1/8] %v1586, 128
        %1641 = vxpose.xlu0.c.b16.cont [2/8] 0, 128
        %1642 = vxpose.xlu0.c.b16.cont [3/8] 0, 128
        %1643 = vxpose.xlu0.c.b16.cont [4/8] 0, 128
        %1644 = vxpose.xlu0.c.b16.cont [5/8] 0, 128
        %1645 = vxpose.xlu0.c.b16.cont [6/8] 0, 128
        %1646 = vxpose.xlu0.c.b16.cont [7/8] 0, 128
        %1647 = vxpose.xlu0.c.b16.end [8/8] 0, 128
        %v1648 = vpop.trf.xlu0
        %v1649 = vpop.trf.xlu0
        %v1650 = vpop.trf.xlu0
        %v1651 = vpop.trf.xlu0
        %v1652 = vpop.trf.xlu0
        %v1653 = vpop.trf.xlu0
        %v1654 = vpop.trf.xlu0
        %v1655 = vpop.trf.xlu0
        %1656 = vxpose.xlu0.c.b16.start [1/8] %v1590, 128
        %1657 = vxpose.xlu0.c.b16.cont [2/8] 0, 128
        %1658 = vxpose.xlu0.c.b16.cont [3/8] 0, 128
        %1659 = vxpose.xlu0.c.b16.cont [4/8] 0, 128
        %1660 = vxpose.xlu0.c.b16.cont [5/8] 0, 128
        %1661 = vxpose.xlu0.c.b16.cont [6/8] 0, 128
        %1662 = vxpose.xlu0.c.b16.cont [7/8] 0, 128
        %1663 = vxpose.xlu0.c.b16.end [8/8] 0, 128
        %v1664 = vpop.trf.xlu0
        %v1665 = vpop.trf.xlu0
        %v1666 = vpop.trf.xlu0
        %v1667 = vpop.trf.xlu0
        %v1668 = vpop.trf.xlu0
        %v1669 = vpop.trf.xlu0
        %v1670 = vpop.trf.xlu0
        %v1671 = vpop.trf.xlu0
        %1672 = vxpose.xlu0.c.b16.start [1/8] %v1594, 128
        %1673 = vxpose.xlu0.c.b16.cont [2/8] 0, 128
        %1674 = vxpose.xlu0.c.b16.cont [3/8] 0, 128
        %1675 = vxpose.xlu0.c.b16.cont [4/8] 0, 128
        %1676 = vxpose.xlu0.c.b16.cont [5/8] 0, 128
        %1677 = vxpose.xlu0.c.b16.cont [6/8] 0, 128
        %1678 = vxpose.xlu0.c.b16.cont [7/8] 0, 128
        %1679 = vxpose.xlu0.c.b16.end [8/8] 0, 128
        %v1680 = vpop.trf.xlu0
        %v1681 = vpop.trf.xlu0
        %v1682 = vpop.trf.xlu0
        %v1683 = vpop.trf.xlu0
        %v1684 = vpop.trf.xlu0
        %v1685 = vpop.trf.xlu0
        %v1686 = vpop.trf.xlu0
        %v1687 = vpop.trf.xlu0
        %1688 = vxpose.xlu0.c.b16.start [1/8] %v1598, 128
        %1689 = vxpose.xlu0.c.b16.cont [2/8] 0, 128
        %1690 = vxpose.xlu0.c.b16.cont [3/8] 0, 128
        %1691 = vxpose.xlu0.c.b16.cont [4/8] 0, 128
        %1692 = vxpose.xlu0.c.b16.cont [5/8] 0, 128
        %1693 = vxpose.xlu0.c.b16.cont [6/8] 0, 128
        %1694 = vxpose.xlu0.c.b16.cont [7/8] 0, 128
        %1695 = vxpose.xlu0.c.b16.end [8/8] 0, 128
        %v1696 = vpop.trf.xlu0
        %v1697 = vpop.trf.xlu0
        %v1698 = vpop.trf.xlu0
        %v1699 = vpop.trf.xlu0
        %v1700 = vpop.trf.xlu0
        %v1701 = vpop.trf.xlu0
        %v1702 = vpop.trf.xlu0
        %v1703 = vpop.trf.xlu0
        %1704 = vxpose.xlu0.c.b16.start [1/8] %v1602, 128
        %1705 = vxpose.xlu0.c.b16.cont [2/8] 0, 128
        %1706 = vxpose.xlu0.c.b16.cont [3/8] 0, 128
        %1707 = vxpose.xlu0.c.b16.cont [4/8] 0, 128
        %1708 = vxpose.xlu0.c.b16.cont [5/8] 0, 128
        %1709 = vxpose.xlu0.c.b16.cont [6/8] 0, 128
        %1710 = vxpose.xlu0.c.b16.cont [7/8] 0, 128
        %1711 = vxpose.xlu0.c.b16.end [8/8] 0, 128
        %v1712 = vpop.trf.xlu0
        %v1713 = vpop.trf.xlu0
        %v1714 = vpop.trf.xlu0
        %v1715 = vpop.trf.xlu0
        %v1716 = vpop.trf.xlu0
        %v1717 = vpop.trf.xlu0
        %v1718 = vpop.trf.xlu0
        %v1719 = vpop.trf.xlu0
        %1720 = vxpose.xlu0.c.b16.start [1/8] %v1606, 128
        %1721 = vxpose.xlu0.c.b16.cont [2/8] 0, 128
        %1722 = vxpose.xlu0.c.b16.cont [3/8] 0, 128
        %1723 = vxpose.xlu0.c.b16.cont [4/8] 0, 128
        %1724 = vxpose.xlu0.c.b16.cont [5/8] 0, 128
        %1725 = vxpose.xlu0.c.b16.cont [6/8] 0, 128
        %1726 = vxpose.xlu0.c.b16.cont [7/8] 0, 128
        %1727 = vxpose.xlu0.c.b16.end [8/8] 0, 128
        %v1728 = vpop.trf.xlu0
        %v1729 = vpop.trf.xlu0
        %v1730 = vpop.trf.xlu0
        %v1731 = vpop.trf.xlu0
        %v1732 = vpop.trf.xlu0
        %v1733 = vpop.trf.xlu0
        %v1734 = vpop.trf.xlu0
        %v1735 = vpop.trf.xlu0
        %v1736 = vcombine.low %v1616, %v1680
        %v1738 = vunpack.c.l.s4 1983009808
        %v1739 = vunpack.c.0.s8 %v1738
        %v1740 = vlaneseq
        %v1741 = vshrl.u32 %v1740, 7
        %v1742 = vsub.s32 %v1739, %v1741
        %v1743 = vrot.slane %v1736, %v1742
        %v1744 = vcombine.low %v1648, %v1712
        %v1746 = vunpack.c.l.s4 1983009808
        %v1747 = vunpack.c.0.s8 %v1746
        %v1748 = vlaneseq
        %v1749 = vshrl.u32 %v1748, 7
        %v1750 = vsub.s32 %v1747, %v1749
        %v1751 = vrot.slane %v1744, %v1750
        %v1752 = vcombine.low %v1743, %v1751
        %v1754 = vunpack.c.l.s4 1934713408
        %v1755 = vunpack.c.0.s8 %v1754
        %v1756 = vlaneseq
        %v1757 = vshrl.u32 %v1756, 7
        %v1758 = vsub.s32 %v1755, %v1757
        %v1759 = vrot.slane %v1752, %v1758
        %v1760 = vcombine.high %v1759, 0
        %v1761 = vcombine.low %v1632, %v1696
        %v1763 = vunpack.c.l.s4 1983009808
        %v1764 = vunpack.c.0.s8 %v1763
        %v1765 = vlaneseq
        %v1766 = vshrl.u32 %v1765, 7
        %v1767 = vsub.s32 %v1764, %v1766
        %v1768 = vrot.slane %v1761, %v1767
        %v1769 = vcombine.low %v1664, %v1728
        %v1771 = vunpack.c.l.s4 1983009808
        %v1772 = vunpack.c.0.s8 %v1771
        %v1773 = vlaneseq
        %v1774 = vshrl.u32 %v1773, 7
        %v1775 = vsub.s32 %v1772, %v1774
        %v1776 = vrot.slane %v1769, %v1775
        %v1777 = vcombine.low %v1768, %v1776
        %v1779 = vunpack.c.l.s4 1934713408
        %v1780 = vunpack.c.0.s8 %v1779
        %v1781 = vlaneseq
        %v1782 = vshrl.u32 %v1781, 7
        %v1783 = vsub.s32 %v1780, %v1782
        %v1784 = vrot.slane %v1777, %v1783
        %v1785 = vcombine.high %v1784, 0
        %v1788 = vpack.i.b16 %v1784, %v1759
        %v1789 = vshrl.u32 %v1759, 16
        %v1790 = vshrl.u32 %v1784, 16
        %v1791 = vpack.i.b16 %v1790, %v1789
        %v1794 = vpack.i.b16 %v1785, %v1760
        %v1795 = vshrl.u32 %v1760, 16
        %v1796 = vshrl.u32 %v1785, 16
        %v1797 = vpack.i.b16 %v1796, %v1795
        %v1799 = vsel %vm1132, %v1788, 0
        %v1802 = vsel %vm1132, %v1376, 0
        %1804 = vmatprep.subr.bf16.mxu0 0
        %1805 = vmatpush1.bf16.xpose.msra.mxu0 %v1802
        %1806 = vmatprep.subr.bf16.mxu0 0
        %1807 = vmatpush1.bf16.xpose.msra.mxu0 0
        %1808 = vmatprep.subr.bf16.mxu0 0
        %1809 = vmatpush1.bf16.xpose.msra.mxu0 0
        %1810 = vmatprep.subr.bf16.mxu0 0
        %1811 = vmatpush1.bf16.xpose.msra.mxu0 0
        %1812 = vmatprep.subr.bf16.mxu0 0
        %1813 = vmatpush1.bf16.xpose.msra.mxu0 0
        %1814 = vmatprep.subr.bf16.mxu0 0
        %1815 = vmatpush1.bf16.xpose.msra.mxu0 0
        %1816 = vmatprep.subr.bf16.mxu0 0
        %1817 = vmatpush1.bf16.xpose.msra.mxu0 0
        %1818 = vmatprep.subr.bf16.mxu0 0
        %1819 = vmatpush1.bf16.xpose.msra.mxu0 0
        %1820 = vmatprep.subr.bf16.mxu0 0
        %1821 = vmatpush1.bf16.xpose.msra.mxu0 0
        %1822 = vmatprep.subr.bf16.mxu0 0
        %1823 = vmatpush1.bf16.xpose.msra.mxu0 0
        %1824 = vmatprep.subr.bf16.mxu0 0
        %1825 = vmatpush1.bf16.xpose.msra.mxu0 0
        %1826 = vmatprep.subr.bf16.mxu0 0
        %1827 = vmatpush1.bf16.xpose.msra.mxu0 0
        %1828 = vmatprep.subr.bf16.mxu0 0
        %1829 = vmatpush1.bf16.xpose.msra.mxu0 0
        %1830 = vmatprep.subr.bf16.mxu0 0
        %1831 = vmatpush1.bf16.xpose.msra.mxu0 0
        %1832 = vmatprep.subr.bf16.mxu0 0
        %1833 = vmatpush1.bf16.xpose.msra.mxu0 0
        %1834 = vmatprep.subr.bf16.mxu0 0
        %1835 = vmatpush1.bf16.xpose.msra.mxu0 0
        %1836 = vmatprep.mubr.bf16.mxu0 0
        %1837 = vmatmul.mubr.bf16.gmra.mrb[0].mxu0 %v1799
        %v1838 = vpop.f32.mrb[0].mxu0
        %v1839 = vadd.f32 0.0, %v1838
        %v1840 = vpop.f32.mrb[0].mxu0
        %v1841 = vpop.f32.mrb[0].mxu0
        %v1842 = vpop.f32.mrb[0].mxu0
        %1843 = vdwg.mxu0
        %v1845 = vsel %vm1132, %v1791, 0
        %v1848 = vsel %vm1132, %v1377, 0
        %1850 = vmatprep.subr.bf16.mxu0 0
        %1851 = vmatpush1.bf16.xpose.msra.mxu0 %v1848
        %1852 = vmatprep.subr.bf16.mxu0 0
        %1853 = vmatpush1.bf16.xpose.msra.mxu0 0
        %1854 = vmatprep.subr.bf16.mxu0 0
        %1855 = vmatpush1.bf16.xpose.msra.mxu0 0
        %1856 = vmatprep.subr.bf16.mxu0 0
        %1857 = vmatpush1.bf16.xpose.msra.mxu0 0
        %1858 = vmatprep.subr.bf16.mxu0 0
        %1859 = vmatpush1.bf16.xpose.msra.mxu0 0
        %1860 = vmatprep.subr.bf16.mxu0 0
        %1861 = vmatpush1.bf16.xpose.msra.mxu0 0
        %1862 = vmatprep.subr.bf16.mxu0 0
        %1863 = vmatpush1.bf16.xpose.msra.mxu0 0
        %1864 = vmatprep.subr.bf16.mxu0 0
        %1865 = vmatpush1.bf16.xpose.msra.mxu0 0
        %1866 = vmatprep.subr.bf16.mxu0 0
        %1867 = vmatpush1.bf16.xpose.msra.mxu0 0
        %1868 = vmatprep.subr.bf16.mxu0 0
        %1869 = vmatpush1.bf16.xpose.msra.mxu0 0
        %1870 = vmatprep.subr.bf16.mxu0 0
        %1871 = vmatpush1.bf16.xpose.msra.mxu0 0
        %1872 = vmatprep.subr.bf16.mxu0 0
        %1873 = vmatpush1.bf16.xpose.msra.mxu0 0
        %1874 = vmatprep.subr.bf16.mxu0 0
        %1875 = vmatpush1.bf16.xpose.msra.mxu0 0
        %1876 = vmatprep.subr.bf16.mxu0 0
        %1877 = vmatpush1.bf16.xpose.msra.mxu0 0
        %1878 = vmatprep.subr.bf16.mxu0 0
        %1879 = vmatpush1.bf16.xpose.msra.mxu0 0
        %1880 = vmatprep.subr.bf16.mxu0 0
        %1881 = vmatpush1.bf16.xpose.msra.mxu0 0
        %1882 = vmatprep.mubr.bf16.mxu0 0
        %1883 = vmatmul.mubr.bf16.gmra.mrb[0].mxu0 %v1845
        %v1884 = vpop.f32.mrb[0].mxu0
        %v1885 = vadd.f32 0.0, %v1884
        %v1886 = vpop.f32.mrb[0].mxu0
        %v1887 = vpop.f32.mrb[0].mxu0
        %v1888 = vpop.f32.mrb[0].mxu0
        %1889 = vdwg.mxu0
        %v1891 = vsel %vm1132, %v1794, 0
        %v1894 = vsel %vm1132, %v1378, 0
        %1896 = vmatprep.subr.bf16.mxu0 0
        %1897 = vmatpush1.bf16.xpose.msra.mxu0 %v1894
        %1898 = vmatprep.subr.bf16.mxu0 0
        %1899 = vmatpush1.bf16.xpose.msra.mxu0 0
        %1900 = vmatprep.subr.bf16.mxu0 0
        %1901 = vmatpush1.bf16.xpose.msra.mxu0 0
        %1902 = vmatprep.subr.bf16.mxu0 0
        %1903 = vmatpush1.bf16.xpose.msra.mxu0 0
        %1904 = vmatprep.subr.bf16.mxu0 0
        %1905 = vmatpush1.bf16.xpose.msra.mxu0 0
        %1906 = vmatprep.subr.bf16.mxu0 0
        %1907 = vmatpush1.bf16.xpose.msra.mxu0 0
        %1908 = vmatprep.subr.bf16.mxu0 0
        %1909 = vmatpush1.bf16.xpose.msra.mxu0 0
        %1910 = vmatprep.subr.bf16.mxu0 0
        %1911 = vmatpush1.bf16.xpose.msra.mxu0 0
        %1912 = vmatprep.subr.bf16.mxu0 0
        %1913 = vmatpush1.bf16.xpose.msra.mxu0 0
        %1914 = vmatprep.subr.bf16.mxu0 0
        %1915 = vmatpush1.bf16.xpose.msra.mxu0 0
        %1916 = vmatprep.subr.bf16.mxu0 0
        %1917 = vmatpush1.bf16.xpose.msra.mxu0 0
        %1918 = vmatprep.subr.bf16.mxu0 0
        %1919 = vmatpush1.bf16.xpose.msra.mxu0 0
        %1920 = vmatprep.subr.bf16.mxu0 0
        %1921 = vmatpush1.bf16.xpose.msra.mxu0 0
        %1922 = vmatprep.subr.bf16.mxu0 0
        %1923 = vmatpush1.bf16.xpose.msra.mxu0 0
        %1924 = vmatprep.subr.bf16.mxu0 0
        %1925 = vmatpush1.bf16.xpose.msra.mxu0 0
        %1926 = vmatprep.subr.bf16.mxu0 0
        %1927 = vmatpush1.bf16.xpose.msra.mxu0 0
        %1928 = vmatprep.mubr.bf16.mxu0 0
        %1929 = vmatmul.mubr.bf16.gmra.mrb[0].mxu0 %v1891
        %v1930 = vpop.f32.mrb[0].mxu0
        %v1931 = vadd.f32 0.0, %v1930
        %v1932 = vpop.f32.mrb[0].mxu0
        %v1933 = vpop.f32.mrb[0].mxu0
        %v1934 = vpop.f32.mrb[0].mxu0
        %1935 = vdwg.mxu0
        %v1937 = vsel %vm1132, %v1797, 0
        %v1940 = vsel %vm1132, %v1379, 0
        %1942 = vmatprep.subr.bf16.mxu0 0
        %1943 = vmatpush1.bf16.xpose.msra.mxu0 %v1940
        %1944 = vmatprep.subr.bf16.mxu0 0
        %1945 = vmatpush1.bf16.xpose.msra.mxu0 0
        %1946 = vmatprep.subr.bf16.mxu0 0
        %1947 = vmatpush1.bf16.xpose.msra.mxu0 0
        %1948 = vmatprep.subr.bf16.mxu0 0
        %1949 = vmatpush1.bf16.xpose.msra.mxu0 0
        %1950 = vmatprep.subr.bf16.mxu0 0
        %1951 = vmatpush1.bf16.xpose.msra.mxu0 0
        %1952 = vmatprep.subr.bf16.mxu0 0
        %1953 = vmatpush1.bf16.xpose.msra.mxu0 0
        %1954 = vmatprep.subr.bf16.mxu0 0
        %1955 = vmatpush1.bf16.xpose.msra.mxu0 0
        %1956 = vmatprep.subr.bf16.mxu0 0
        %1957 = vmatpush1.bf16.xpose.msra.mxu0 0
        %1958 = vmatprep.subr.bf16.mxu0 0
        %1959 = vmatpush1.bf16.xpose.msra.mxu0 0
        %1960 = vmatprep.subr.bf16.mxu0 0
        %1961 = vmatpush1.bf16.xpose.msra.mxu0 0
        %1962 = vmatprep.subr.bf16.mxu0 0
        %1963 = vmatpush1.bf16.xpose.msra.mxu0 0
        %1964 = vmatprep.subr.bf16.mxu0 0
        %1965 = vmatpush1.bf16.xpose.msra.mxu0 0
        %1966 = vmatprep.subr.bf16.mxu0 0
        %1967 = vmatpush1.bf16.xpose.msra.mxu0 0
        %1968 = vmatprep.subr.bf16.mxu0 0
        %1969 = vmatpush1.bf16.xpose.msra.mxu0 0
        %1970 = vmatprep.subr.bf16.mxu0 0
        %1971 = vmatpush1.bf16.xpose.msra.mxu0 0
        %1972 = vmatprep.subr.bf16.mxu0 0
        %1973 = vmatpush1.bf16.xpose.msra.mxu0 0
        %1974 = vmatprep.mubr.bf16.mxu0 0
        %1975 = vmatmul.mubr.bf16.gmra.mrb[0].mxu0 %v1937
        %v1976 = vpop.f32.mrb[0].mxu0
        %v1977 = vadd.f32 0.0, %v1976
        %v1978 = vpop.f32.mrb[0].mxu0
        %v1979 = vpop.f32.mrb[0].mxu0
        %v1980 = vpop.f32.mrb[0].mxu0
        %1981 = vdwg.mxu0
        %1982 = vxpose.xlu0.b32.start [1/16] %v1839, 128
        %1983 = vxpose.xlu0.b32.cont [2/16] 0.0, 128
        %1984 = vxpose.xlu0.b32.cont [3/16] 0.0, 128
        %1985 = vxpose.xlu0.b32.cont [4/16] 0.0, 128
        %1986 = vxpose.xlu0.b32.cont [5/16] 0.0, 128
        %1987 = vxpose.xlu0.b32.cont [6/16] 0.0, 128
        %1988 = vxpose.xlu0.b32.cont [7/16] 0.0, 128
        %1989 = vxpose.xlu0.b32.cont [8/16] 0.0, 128
        %1990 = vxpose.xlu0.b32.cont [9/16] 0.0, 128
        %1991 = vxpose.xlu0.b32.cont [10/16] 0.0, 128
        %1992 = vxpose.xlu0.b32.cont [11/16] 0.0, 128
        %1993 = vxpose.xlu0.b32.cont [12/16] 0.0, 128
        %1994 = vxpose.xlu0.b32.cont [13/16] 0.0, 128
        %1995 = vxpose.xlu0.b32.cont [14/16] 0.0, 128
        %1996 = vxpose.xlu0.b32.cont [15/16] 0.0, 128
        %1997 = vxpose.xlu0.b32.end [16/16] 0.0, 128
        %v1998 = vpop.trf.xlu0
        %v1999 = vpop.trf.xlu0
        %v2000 = vpop.trf.xlu0
        %v2001 = vpop.trf.xlu0
        %v2002 = vpop.trf.xlu0
        %v2003 = vpop.trf.xlu0
        %v2004 = vpop.trf.xlu0
        %v2005 = vpop.trf.xlu0
        %v2006 = vpop.trf.xlu0
        %v2007 = vpop.trf.xlu0
        %v2008 = vpop.trf.xlu0
        %v2009 = vpop.trf.xlu0
        %v2010 = vpop.trf.xlu0
        %v2011 = vpop.trf.xlu0
        %v2012 = vpop.trf.xlu0
        %v2013 = vpop.trf.xlu0
        %2014 = vxpose.xlu0.b32.start [1/16] %v1885, 128
        %2015 = vxpose.xlu0.b32.cont [2/16] 0.0, 128
        %2016 = vxpose.xlu0.b32.cont [3/16] 0.0, 128
        %2017 = vxpose.xlu0.b32.cont [4/16] 0.0, 128
        %2018 = vxpose.xlu0.b32.cont [5/16] 0.0, 128
        %2019 = vxpose.xlu0.b32.cont [6/16] 0.0, 128
        %2020 = vxpose.xlu0.b32.cont [7/16] 0.0, 128
        %2021 = vxpose.xlu0.b32.cont [8/16] 0.0, 128
        %2022 = vxpose.xlu0.b32.cont [9/16] 0.0, 128
        %2023 = vxpose.xlu0.b32.cont [10/16] 0.0, 128
        %2024 = vxpose.xlu0.b32.cont [11/16] 0.0, 128
        %2025 = vxpose.xlu0.b32.cont [12/16] 0.0, 128
        %2026 = vxpose.xlu0.b32.cont [13/16] 0.0, 128
        %2027 = vxpose.xlu0.b32.cont [14/16] 0.0, 128
        %2028 = vxpose.xlu0.b32.cont [15/16] 0.0, 128
        %2029 = vxpose.xlu0.b32.end [16/16] 0.0, 128
        %v2030 = vpop.trf.xlu0
        %v2031 = vpop.trf.xlu0
        %v2032 = vpop.trf.xlu0
        %v2033 = vpop.trf.xlu0
        %v2034 = vpop.trf.xlu0
        %v2035 = vpop.trf.xlu0
        %v2036 = vpop.trf.xlu0
        %v2037 = vpop.trf.xlu0
        %v2038 = vpop.trf.xlu0
        %v2039 = vpop.trf.xlu0
        %v2040 = vpop.trf.xlu0
        %v2041 = vpop.trf.xlu0
        %v2042 = vpop.trf.xlu0
        %v2043 = vpop.trf.xlu0
        %v2044 = vpop.trf.xlu0
        %v2045 = vpop.trf.xlu0
        %2046 = vxpose.xlu0.b32.start [1/16] %v1931, 128
        %2047 = vxpose.xlu0.b32.cont [2/16] 0.0, 128
        %2048 = vxpose.xlu0.b32.cont [3/16] 0.0, 128
        %2049 = vxpose.xlu0.b32.cont [4/16] 0.0, 128
        %2050 = vxpose.xlu0.b32.cont [5/16] 0.0, 128
        %2051 = vxpose.xlu0.b32.cont [6/16] 0.0, 128
        %2052 = vxpose.xlu0.b32.cont [7/16] 0.0, 128
        %2053 = vxpose.xlu0.b32.cont [8/16] 0.0, 128
        %2054 = vxpose.xlu0.b32.cont [9/16] 0.0, 128
        %2055 = vxpose.xlu0.b32.cont [10/16] 0.0, 128
        %2056 = vxpose.xlu0.b32.cont [11/16] 0.0, 128
        %2057 = vxpose.xlu0.b32.cont [12/16] 0.0, 128
        %2058 = vxpose.xlu0.b32.cont [13/16] 0.0, 128
        %2059 = vxpose.xlu0.b32.cont [14/16] 0.0, 128
        %2060 = vxpose.xlu0.b32.cont [15/16] 0.0, 128
        %2061 = vxpose.xlu0.b32.end [16/16] 0.0, 128
        %v2062 = vpop.trf.xlu0
        %v2063 = vpop.trf.xlu0
        %v2064 = vpop.trf.xlu0
        %v2065 = vpop.trf.xlu0
        %v2066 = vpop.trf.xlu0
        %v2067 = vpop.trf.xlu0
        %v2068 = vpop.trf.xlu0
        %v2069 = vpop.trf.xlu0
        %v2070 = vpop.trf.xlu0
        %v2071 = vpop.trf.xlu0
        %v2072 = vpop.trf.xlu0
        %v2073 = vpop.trf.xlu0
        %v2074 = vpop.trf.xlu0
        %v2075 = vpop.trf.xlu0
        %v2076 = vpop.trf.xlu0
        %v2077 = vpop.trf.xlu0
        %2078 = vxpose.xlu0.b32.start [1/16] %v1977, 128
        %2079 = vxpose.xlu0.b32.cont [2/16] 0.0, 128
        %2080 = vxpose.xlu0.b32.cont [3/16] 0.0, 128
        %2081 = vxpose.xlu0.b32.cont [4/16] 0.0, 128
        %2082 = vxpose.xlu0.b32.cont [5/16] 0.0, 128
        %2083 = vxpose.xlu0.b32.cont [6/16] 0.0, 128
        %2084 = vxpose.xlu0.b32.cont [7/16] 0.0, 128
        %2085 = vxpose.xlu0.b32.cont [8/16] 0.0, 128
        %2086 = vxpose.xlu0.b32.cont [9/16] 0.0, 128
        %2087 = vxpose.xlu0.b32.cont [10/16] 0.0, 128
        %2088 = vxpose.xlu0.b32.cont [11/16] 0.0, 128
        %2089 = vxpose.xlu0.b32.cont [12/16] 0.0, 128
        %2090 = vxpose.xlu0.b32.cont [13/16] 0.0, 128
        %2091 = vxpose.xlu0.b32.cont [14/16] 0.0, 128
        %2092 = vxpose.xlu0.b32.cont [15/16] 0.0, 128
        %2093 = vxpose.xlu0.b32.end [16/16] 0.0, 128
        %v2094 = vpop.trf.xlu0
        %v2095 = vpop.trf.xlu0
        %v2096 = vpop.trf.xlu0
        %v2097 = vpop.trf.xlu0
        %v2098 = vpop.trf.xlu0
        %v2099 = vpop.trf.xlu0
        %v2100 = vpop.trf.xlu0
        %v2101 = vpop.trf.xlu0
        %v2102 = vpop.trf.xlu0
        %v2103 = vpop.trf.xlu0
        %v2104 = vpop.trf.xlu0
        %v2105 = vpop.trf.xlu0
        %v2106 = vpop.trf.xlu0
        %v2107 = vpop.trf.xlu0
        %v2108 = vpop.trf.xlu0
        %v2109 = vpop.trf.xlu0
        %v2110 = vcombine.low %v1998, %v2062
        %v2111 = vcombine.high %v1998, %v2062
        %v2113 = vunpack.c.l.s4 1983009808
        %v2114 = vunpack.c.0.s8 %v2113
        %v2115 = vlaneseq
        %v2116 = vshrl.u32 %v2115, 7
        %v2117 = vsub.s32 %v2114, %v2116
        %v2118 = vrot.slane %v2110, %v2117
        %v2120 = vunpack.c.l.s4 1983009808
        %v2121 = vunpack.c.0.s8 %v2120
        %v2122 = vlaneseq
        %v2123 = vshrl.u32 %v2122, 7
        %v2124 = vsub.s32 %v2121, %v2123
        %v2125 = vrot.slane %v2111, %v2124
        %v2126 = vcombine.low %v2030, %v2094
        %v2127 = vcombine.high %v2030, %v2094
        %v2129 = vunpack.c.l.s4 1983009808
        %v2130 = vunpack.c.0.s8 %v2129
        %v2131 = vlaneseq
        %v2132 = vshrl.u32 %v2131, 7
        %v2133 = vsub.s32 %v2130, %v2132
        %v2134 = vrot.slane %v2126, %v2133
        %v2136 = vunpack.c.l.s4 1983009808
        %v2137 = vunpack.c.0.s8 %v2136
        %v2138 = vlaneseq
        %v2139 = vshrl.u32 %v2138, 7
        %v2140 = vsub.s32 %v2137, %v2139
        %v2141 = vrot.slane %v2127, %v2140
        %v2142 = vcombine.low %v2118, %v2134
        %v2143 = vcombine.high %v2118, %v2134
        %v2145 = vunpack.c.l.s4 1934713408
        %v2146 = vunpack.c.0.s8 %v2145
        %v2147 = vlaneseq
        %v2148 = vshrl.u32 %v2147, 7
        %v2149 = vsub.s32 %v2146, %v2148
        %v2150 = vrot.slane %v2142, %v2149
        %v2152 = vunpack.c.l.s4 1934713408
        %v2153 = vunpack.c.0.s8 %v2152
        %v2154 = vlaneseq
        %v2155 = vshrl.u32 %v2154, 7
        %v2156 = vsub.s32 %v2153, %v2155
        %v2157 = vrot.slane %v2143, %v2156
        %v2158 = vcombine.low %v2125, %v2141
        %v2159 = vcombine.high %v2125, %v2141
        %v2161 = vunpack.c.l.s4 1934713408
        %v2162 = vunpack.c.0.s8 %v2161
        %v2163 = vlaneseq
        %v2164 = vshrl.u32 %v2163, 7
        %v2165 = vsub.s32 %v2162, %v2164
        %v2166 = vrot.slane %v2158, %v2165
        %v2168 = vunpack.c.l.s4 1934713408
        %v2169 = vunpack.c.0.s8 %v2168
        %v2170 = vlaneseq
        %v2171 = vshrl.u32 %v2170, 7
        %v2172 = vsub.s32 %v2169, %v2171
        %v2173 = vrot.slane %v2159, %v2172
        %v2174 = vcombine.high %v2150, 0.0
        %v2175 = vcombine.high %v2157, 0.0
        %v2176 = vcombine.high %v2166, 0.0
        %v2177 = vcombine.high %v2173, 0.0
        %v2178 = vcombine.low %v2150, %v2157
        %v2180 = vunpack.c.l.s4 1983009808
        %v2181 = vunpack.c.0.s8 %v2180
        %v2182 = vlaneseq
        %v2183 = vshrl.u32 %v2182, 7
        %v2184 = vsub.s32 %v2181, %v2183
        %v2185 = vrot.slane %v2178, %v2184
        %v2186 = vcombine.low %v2174, %v2175
        %v2188 = vunpack.c.l.s4 1983009808
        %v2189 = vunpack.c.0.s8 %v2188
        %v2190 = vlaneseq
        %v2191 = vshrl.u32 %v2190, 7
        %v2192 = vsub.s32 %v2189, %v2191
        %v2193 = vrot.slane %v2186, %v2192
        %v2194 = vcombine.low %v2166, %v2173
        %v2196 = vunpack.c.l.s4 1983009808
        %v2197 = vunpack.c.0.s8 %v2196
        %v2198 = vlaneseq
        %v2199 = vshrl.u32 %v2198, 7
        %v2200 = vsub.s32 %v2197, %v2199
        %v2201 = vrot.slane %v2194, %v2200
        %v2202 = vcombine.low %v2176, %v2177
        %v2204 = vunpack.c.l.s4 1983009808
        %v2205 = vunpack.c.0.s8 %v2204
        %v2206 = vlaneseq
        %v2207 = vshrl.u32 %v2206, 7
        %v2208 = vsub.s32 %v2205, %v2207
        %v2209 = vrot.slane %v2202, %v2208
        %v2210 = vcombine.low %v2185, %v2193
        %v2211 = vcombine.high %v2185, %v2193
        %v2213 = vunpack.c.l.s4 1934713408
        %v2214 = vunpack.c.0.s8 %v2213
        %v2215 = vlaneseq
        %v2216 = vshrl.u32 %v2215, 7
        %v2217 = vsub.s32 %v2214, %v2216
        %v2218 = vrot.slane %v2210, %v2217
        %v2220 = vunpack.c.l.s4 1934713408
        %v2221 = vunpack.c.0.s8 %v2220
        %v2222 = vlaneseq
        %v2223 = vshrl.u32 %v2222, 7
        %v2224 = vsub.s32 %v2221, %v2223
        %v2225 = vrot.slane %v2211, %v2224
        %v2226 = vcombine.low %v2201, %v2209
        %v2227 = vcombine.high %v2201, %v2209
        %v2229 = vunpack.c.l.s4 1934713408
        %v2230 = vunpack.c.0.s8 %v2229
        %v2231 = vlaneseq
        %v2232 = vshrl.u32 %v2231, 7
        %v2233 = vsub.s32 %v2230, %v2232
        %v2234 = vrot.slane %v2226, %v2233
        %v2236 = vunpack.c.l.s4 1934713408
        %v2237 = vunpack.c.0.s8 %v2236
        %v2238 = vlaneseq
        %v2239 = vshrl.u32 %v2238, 7
        %v2240 = vsub.s32 %v2237, %v2239
        %v2241 = vrot.slane %v2227, %v2240
        %v2242 = vcombine.low %v2218, %v2234
        %v2243 = vcombine.high %v2218, %v2234
        %v2244 = vcombine.low %v2225, %v2241
        %v2245 = vcombine.high %v2225, %v2241
        %2247 = vrot.lane.b32.xlu0 %v2243, 8
        %v2248 = vpop.permute.xlu0 %2247
        %2251 = vrot.lane.b32.xlu0 %v2244, 16
        %v2252 = vpop.permute.xlu0 %2251
        %2255 = vrot.lane.b32.xlu0 %v2245, 24
        %v2256 = vpop.permute.xlu0 %2255
        %v2258 = vsel %vm1132, %v2242, %v2248
        %v2259 = vsel %vm242, %v2258, %v2252
        %vm2260 = vcmask 195584
        %v2261 = vsel %vm2260, %v2259, %v2256
        %v2262 = vpack.c.bf16 %v2261, %v2261
        %v2264 = vlaneseq
        %v2265 = vshrl.u32 %v2264, 7
        %v2266 = vsub.s32 0, %v2265
        %v2267 = vrot.slane %v219, %v2266
        %v2273 = vunpack.c.l.b16 %v215
        %v2274 = vunpack.c.l.b16 %v216
        %v2275 = vunpack.c.l.b16 %v217
        %v2276 = vunpack.c.l.b16 %v218
        %v2277 = vpack.c.b16 %v2274, %v2273
        %v2278 = vpack.c.b16 %v2276, %v2275
        %v2282 = vsel %vm346, %v2262, 0
        %2284 = vmatprep.subr.bf16.mxu0 0
        %2285 = vmatpush1.bf16.msra.mxu0 %v2277
        %2286 = vmatprep.subr.bf16.mxu0 0
        %2287 = vmatpush1.bf16.msra.mxu0 %v2278
        %2288 = vmatprep.subr.bf16.mxu0 0
        %2289 = vmatpush1.bf16.msra.mxu0 0
        %2290 = vmatprep.subr.bf16.mxu0 0
        %2291 = vmatpush1.bf16.msra.mxu0 0
        %2292 = vmatprep.subr.bf16.mxu0 0
        %2293 = vmatpush1.bf16.msra.mxu0 0
        %2294 = vmatprep.subr.bf16.mxu0 0
        %2295 = vmatpush1.bf16.msra.mxu0 0
        %2296 = vmatprep.subr.bf16.mxu0 0
        %2297 = vmatpush1.bf16.msra.mxu0 0
        %2298 = vmatprep.subr.bf16.mxu0 0
        %2299 = vmatpush1.bf16.msra.mxu0 0
        %2300 = vmatprep.subr.bf16.mxu0 0
        %2301 = vmatpush1.bf16.msra.mxu0 0
        %2302 = vmatprep.subr.bf16.mxu0 0
        %2303 = vmatpush1.bf16.msra.mxu0 0
        %2304 = vmatprep.subr.bf16.mxu0 0
        %2305 = vmatpush1.bf16.msra.mxu0 0
        %2306 = vmatprep.subr.bf16.mxu0 0
        %2307 = vmatpush1.bf16.msra.mxu0 0
        %2308 = vmatprep.subr.bf16.mxu0 0
        %2309 = vmatpush1.bf16.msra.mxu0 0
        %2310 = vmatprep.subr.bf16.mxu0 0
        %2311 = vmatpush1.bf16.msra.mxu0 0
        %2312 = vmatprep.subr.bf16.mxu0 0
        %2313 = vmatpush1.bf16.msra.mxu0 0
        %2314 = vmatprep.subr.bf16.mxu0 0
        %2315 = vmatpush1.bf16.msra.mxu0 0
        %2316 = vmatprep.mubr.bf16.mxu0 0
        %2317 = vmatmul.mubr.bf16.gmra.mrb[0].mxu0 %v2282
        %v2318 = vpop.f32.mrb[0].mxu0
        %v2319 = vadd.f32 %v2267, %v2318
        %v2320 = vpop.f32.mrb[0].mxu0
        %v2321 = vpop.f32.mrb[0].mxu0
        %v2322 = vpop.f32.mrb[0].mxu0
        %2323 = vdwg.mxu0
        %v2324 = vadd.f32 %v322, %v2319
        %v2325 = vsel %vm346, %v2324, 0.0
        %2326 = vadd.xlane.f32.xlu0 %v2325
        %v2327 = vpop.xlane.xlu0 %2326
        %v2328 = vrcp.pop 32.0
        %v2329 = vmul.f32 %v2327, %v2328
        %v2330 = vsub.f32 %v2324, %v2329
        %v2331 = vmul.f32 %v2330, %v2330
        %v2332 = vsel %vm346, %v2331, 0.0
        %2333 = vadd.xlane.f32.xlu0 %v2332
        %v2334 = vpop.xlane.xlu0 %2333
        %v2335 = vmul.f32 %v2334, %v2328
        %v2336 = vadd.f32 %v2335, 1e-12
        %v2337 = vrsqrt.pop %v2336
        %v2338 = vmul.f32 %v2330, %v2337
        %v2340 = vlaneseq
        %v2341 = vshrl.u32 %v2340, 7
        %v2342 = vsub.s32 0, %v2341
        %v2343 = vrot.slane %v234, %v2342
        %v2345 = vmul.f32 %v2338, %v2343
        %v2347 = vlaneseq
        %v2348 = vshrl.u32 %v2347, 7
        %v2349 = vsub.s32 0, %v2348
        %v2350 = vrot.slane %v235, %v2349
        %v2352 = vadd.f32 %v2345, %v2350
        %v2353 = vpack.c.bf16 %v2352, %v2352
        %v2355 = vlaneseq
        %v2356 = vshrl.u32 %v2355, 7
        %v2357 = vsub.s32 0, %v2356
        %v2358 = vrot.slane %v224, %v2357
        %v2364 = vunpack.c.l.b16 %v220
        %v2365 = vunpack.c.l.b16 %v221
        %v2366 = vunpack.c.l.b16 %v222
        %v2367 = vunpack.c.l.b16 %v223
        %v2368 = vpack.c.b16 %v2365, %v2364
        %v2369 = vpack.c.b16 %v2367, %v2366
        %v2373 = vsel %vm346, %v2353, 0
        %2375 = vmatprep.subr.bf16.mxu0 0
        %2376 = vmatpush1.bf16.msra.mxu0 %v2368
        %2377 = vmatprep.subr.bf16.mxu0 0
        %2378 = vmatpush1.bf16.msra.mxu0 %v2369
        %2379 = vmatprep.subr.bf16.mxu0 0
        %2380 = vmatpush1.bf16.msra.mxu0 0
        %2381 = vmatprep.subr.bf16.mxu0 0
        %2382 = vmatpush1.bf16.msra.mxu0 0
        %2383 = vmatprep.subr.bf16.mxu0 0
        %2384 = vmatpush1.bf16.msra.mxu0 0
        %2385 = vmatprep.subr.bf16.mxu0 0
        %2386 = vmatpush1.bf16.msra.mxu0 0
        %2387 = vmatprep.subr.bf16.mxu0 0
        %2388 = vmatpush1.bf16.msra.mxu0 0
        %2389 = vmatprep.subr.bf16.mxu0 0
        %2390 = vmatpush1.bf16.msra.mxu0 0
        %2391 = vmatprep.subr.bf16.mxu0 0
        %2392 = vmatpush1.bf16.msra.mxu0 0
        %2393 = vmatprep.subr.bf16.mxu0 0
        %2394 = vmatpush1.bf16.msra.mxu0 0
        %2395 = vmatprep.subr.bf16.mxu0 0
        %2396 = vmatpush1.bf16.msra.mxu0 0
        %2397 = vmatprep.subr.bf16.mxu0 0
        %2398 = vmatpush1.bf16.msra.mxu0 0
        %2399 = vmatprep.subr.bf16.mxu0 0
        %2400 = vmatpush1.bf16.msra.mxu0 0
        %2401 = vmatprep.subr.bf16.mxu0 0
        %2402 = vmatpush1.bf16.msra.mxu0 0
        %2403 = vmatprep.subr.bf16.mxu0 0
        %2404 = vmatpush1.bf16.msra.mxu0 0
        %2405 = vmatprep.subr.bf16.mxu0 0
        %2406 = vmatpush1.bf16.msra.mxu0 0
        %2407 = vmatprep.mubr.bf16.mxu0 0
        %2408 = vmatmul.mubr.bf16.gmra.mrb[0].mxu0 %v2373
        %v2409 = vpop.f32.mrb[0].mxu0
        %v2410 = vadd.f32 %v2358, %v2409
        %v2411 = vpop.f32.mrb[0].mxu0
        %v2412 = vpop.f32.mrb[0].mxu0
        %v2413 = vpop.f32.mrb[0].mxu0
        %2414 = vdwg.mxu0
        %v2415 = vmul.f32 %v2410, %v2410
        %v2416 = vmul.f32 %v2410, %v2415
        %v2417 = vmul.f32 %v2416, 0.044715
        %v2418 = vadd.f32 %v2410, %v2417
        %v2419 = vmul.f32 %v2418, 0.7978846
        %v2420 = vtanh.pop %v2419
        %v2421 = vadd.f32 %v2420, 1.0
        %v2422 = vmul.f32 %v2421, 0.5
        %v2423 = vmul.f32 %v2410, %v2422
        %v2424 = vpack.c.bf16 %v2423, %v2423
        %v2426 = vlaneseq
        %v2427 = vshrl.u32 %v2426, 7
        %v2428 = vsub.s32 0, %v2427
        %v2429 = vrot.slane %v233, %v2428
        %v2439 = vunpack.c.l.b16 %v225
        %v2440 = vunpack.c.l.b16 %v226
        %v2441 = vunpack.c.l.b16 %v227
        %v2442 = vunpack.c.l.b16 %v228
        %v2443 = vunpack.c.l.b16 %v229
        %v2444 = vunpack.c.l.b16 %v230
        %v2445 = vunpack.c.l.b16 %v231
        %v2446 = vunpack.c.l.b16 %v232
        %v2447 = vpack.c.b16 %v2440, %v2439
        %v2448 = vpack.c.b16 %v2442, %v2441
        %v2449 = vpack.c.b16 %v2444, %v2443
        %v2450 = vpack.c.b16 %v2446, %v2445
        %vm2455 = vcmask 523264
        %v2457 = vsel %vm2455, %v2424, 0
        %2459 = vmatprep.subr.bf16.mxu0 0
        %2460 = vmatpush1.bf16.msra.mxu0 %v2447
        %2461 = vmatprep.subr.bf16.mxu0 0
        %2462 = vmatpush1.bf16.msra.mxu0 %v2448
        %2463 = vmatprep.subr.bf16.mxu0 0
        %2464 = vmatpush1.bf16.msra.mxu0 %v2449
        %2465 = vmatprep.subr.bf16.mxu0 0
        %2466 = vmatpush1.bf16.msra.mxu0 %v2450
        %2467 = vmatprep.subr.bf16.mxu0 0
        %2468 = vmatpush1.bf16.msra.mxu0 0
        %2469 = vmatprep.subr.bf16.mxu0 0
        %2470 = vmatpush1.bf16.msra.mxu0 0
        %2471 = vmatprep.subr.bf16.mxu0 0
        %2472 = vmatpush1.bf16.msra.mxu0 0
        %2473 = vmatprep.subr.bf16.mxu0 0
        %2474 = vmatpush1.bf16.msra.mxu0 0
        %2475 = vmatprep.subr.bf16.mxu0 0
        %2476 = vmatpush1.bf16.msra.mxu0 0
        %2477 = vmatprep.subr.bf16.mxu0 0
        %2478 = vmatpush1.bf16.msra.mxu0 0
        %2479 = vmatprep.subr.bf16.mxu0 0
        %2480 = vmatpush1.bf16.msra.mxu0 0
        %2481 = vmatprep.subr.bf16.mxu0 0
        %2482 = vmatpush1.bf16.msra.mxu0 0
        %2483 = vmatprep.subr.bf16.mxu0 0
        %2484 = vmatpush1.bf16.msra.mxu0 0
        %2485 = vmatprep.subr.bf16.mxu0 0
        %2486 = vmatpush1.bf16.msra.mxu0 0
        %2487 = vmatprep.subr.bf16.mxu0 0
        %2488 = vmatpush1.bf16.msra.mxu0 0
        %2489 = vmatprep.subr.bf16.mxu0 0
        %2490 = vmatpush1.bf16.msra.mxu0 0
        %2491 = vmatprep.mubr.bf16.mxu0 0
        %2492 = vmatmul.mubr.bf16.gmra.mrb[0].mxu0 %v2457
        %v2493 = vpop.f32.mrb[0].mxu0
        %v2494 = vadd.f32 %v2429, %v2493
        %v2495 = vpop.f32.mrb[0].mxu0
        %v2496 = vpop.f32.mrb[0].mxu0
        %v2497 = vpop.f32.mrb[0].mxu0
        %2498 = vdwg.mxu0
        %v2499 = vadd.f32 %v2352, %v2494
        %v2500 = vsel %vm346, %v2499, 0.0
        %2501 = vadd.xlane.f32.xlu0 %v2500
        %v2502 = vpop.xlane.xlu0 %2501
        %v2503 = vmul.f32 %v2502, %v2328
        %v2504 = vsub.f32 %v2499, %v2503
        %v2505 = vmul.f32 %v2504, %v2504
        %v2506 = vsel %vm346, %v2505, 0.0
        %2507 = vadd.xlane.f32.xlu0 %v2506
        %v2508 = vpop.xlane.xlu0 %2507
        %v2509 = vmul.f32 %v2508, %v2328
        %v2510 = vadd.f32 %v2509, 1e-12
        %v2511 = vrsqrt.pop %v2510
        %v2512 = vmul.f32 %v2504, %v2511
        %v2514 = vlaneseq
        %v2515 = vshrl.u32 %v2514, 7
        %v2516 = vsub.s32 0, %v2515
        %v2517 = vrot.slane %v236, %v2516
        %v2519 = vmul.f32 %v2512, %v2517
        %v2521 = vlaneseq
        %v2522 = vshrl.u32 %v2521, 7
        %v2523 = vsub.s32 0, %v2522
        %v2524 = vrot.slane %v237, %v2523
        %v2526 = vadd.f32 %v2519, %v2524
        %v2527 = vsel %vm346, %v2526, -inf
        %v2528 = vrot.slane %v2527, 4
        %v2529 = vmax.f32 %v2527, %v2528
        %v2530 = vrot.slane %v2529, 2
        %v2531 = vmax.f32 %v2529, %v2530
        %v2532 = vrot.slane %v2531, 1
        %v2533 = vmax.f32 %v2531, %v2532
        %v2534 = vpack.c.bf16 %v2526, %v2526
        %v2536 = vsel %vm346, %v2534, 0
        %2538 = vmatprep.subr.bf16.mxu0 0
        %2539 = vmatpush1.bf16.msra.mxu0 %v342
        %2540 = vmatprep.subr.bf16.mxu0 0
        %2541 = vmatpush1.bf16.msra.mxu0 %v343
        %2542 = vmatprep.subr.bf16.mxu0 0
        %2543 = vmatpush1.bf16.msra.mxu0 0
        %2544 = vmatprep.subr.bf16.mxu0 0
        %2545 = vmatpush1.bf16.msra.mxu0 0
        %2546 = vmatprep.subr.bf16.mxu0 0
        %2547 = vmatpush1.bf16.msra.mxu0 0
        %2548 = vmatprep.subr.bf16.mxu0 0
        %2549 = vmatpush1.bf16.msra.mxu0 0
        %2550 = vmatprep.subr.bf16.mxu0 0
        %2551 = vmatpush1.bf16.msra.mxu0 0
        %2552 = vmatprep.subr.bf16.mxu0 0
        %2553 = vmatpush1.bf16.msra.mxu0 0
        %2554 = vmatprep.subr.bf16.mxu0 0
        %2555 = vmatpush1.bf16.msra.mxu0 0
        %2556 = vmatprep.subr.bf16.mxu0 0
        %2557 = vmatpush1.bf16.msra.mxu0 0
        %2558 = vmatprep.subr.bf16.mxu0 0
        %2559 = vmatpush1.bf16.msra.mxu0 0
        %2560 = vmatprep.subr.bf16.mxu0 0
        %2561 = vmatpush1.bf16.msra.mxu0 0
        %2562 = vmatprep.subr.bf16.mxu0 0
        %2563 = vmatpush1.bf16.msra.mxu0 0
        %2564 = vmatprep.subr.bf16.mxu0 0
        %2565 = vmatpush1.bf16.msra.mxu0 0
        %2566 = vmatprep.subr.bf16.mxu0 0
        %2567 = vmatpush1.bf16.msra.mxu0 0
        %2568 = vmatprep.subr.bf16.mxu0 0
        %2569 = vmatpush1.bf16.msra.mxu0 0
        %2570 = vmatprep.mubr.bf16.mxu0 0
        %2571 = vmatmul.mubr.bf16.gmra.mrb[0].mxu0 %v2536
        %v2572 = vpop.f32.mrb[0].mxu0
        %v2573 = vadd.f32 %v332, %v2572
        %v2574 = vpop.f32.mrb[0].mxu0
        %v2575 = vpop.f32.mrb[0].mxu0
        %v2576 = vpop.f32.mrb[0].mxu0
        %2577 = vdwg.mxu0
        %2579 = vrot.lane.b32.xlu0 %v2573, 120
        %v2580 = vpop.permute.xlu0 %2579
        %2582 = vrot.lane.b32.xlu0 %v2573, 112
        %v2583 = vpop.permute.xlu0 %2582
        %2585 = vrot.lane.b32.xlu0 %v2573, 104
        %v2586 = vpop.permute.xlu0 %2585
        %v2588 = vcombine.low %v2573, %v2583
        %v2589 = vcombine.high %v2573, %v2583
        %v2591 = vunpack.c.l.s4 1983009808
        %v2592 = vunpack.c.0.s8 %v2591
        %v2593 = vlaneseq
        %v2594 = vshrl.u32 %v2593, 7
        %v2595 = vsub.s32 %v2592, %v2594
        %v2596 = vrot.slane %v2588, %v2595
        %v2598 = vunpack.c.l.s4 1983009808
        %v2599 = vunpack.c.0.s8 %v2598
        %v2600 = vlaneseq
        %v2601 = vshrl.u32 %v2600, 7
        %v2602 = vsub.s32 %v2599, %v2601
        %v2603 = vrot.slane %v2589, %v2602
        %v2604 = vcombine.low %v2580, %v2586
        %v2605 = vcombine.high %v2580, %v2586
        %v2607 = vunpack.c.l.s4 1983009808
        %v2608 = vunpack.c.0.s8 %v2607
        %v2609 = vlaneseq
        %v2610 = vshrl.u32 %v2609, 7
        %v2611 = vsub.s32 %v2608, %v2610
        %v2612 = vrot.slane %v2604, %v2611
        %v2614 = vunpack.c.l.s4 1983009808
        %v2615 = vunpack.c.0.s8 %v2614
        %v2616 = vlaneseq
        %v2617 = vshrl.u32 %v2616, 7
        %v2618 = vsub.s32 %v2615, %v2617
        %v2619 = vrot.slane %v2605, %v2618
        %v2620 = vcombine.low %v2596, %v2612
        %v2621 = vcombine.high %v2596, %v2612
        %v2623 = vunpack.c.l.s4 1934713408
        %v2624 = vunpack.c.0.s8 %v2623
        %v2625 = vlaneseq
        %v2626 = vshrl.u32 %v2625, 7
        %v2627 = vsub.s32 %v2624, %v2626
        %v2628 = vrot.slane %v2620, %v2627
        %v2630 = vunpack.c.l.s4 1934713408
        %v2631 = vunpack.c.0.s8 %v2630
        %v2632 = vlaneseq
        %v2633 = vshrl.u32 %v2632, 7
        %v2634 = vsub.s32 %v2631, %v2633
        %v2635 = vrot.slane %v2621, %v2634
        %v2636 = vcombine.low %v2603, %v2619
        %v2637 = vcombine.high %v2603, %v2619
        %v2639 = vunpack.c.l.s4 1934713408
        %v2640 = vunpack.c.0.s8 %v2639
        %v2641 = vlaneseq
        %v2642 = vshrl.u32 %v2641, 7
        %v2643 = vsub.s32 %v2640, %v2642
        %v2644 = vrot.slane %v2636, %v2643
        %v2646 = vunpack.c.l.s4 1934713408
        %v2647 = vunpack.c.0.s8 %v2646
        %v2648 = vlaneseq
        %v2649 = vshrl.u32 %v2648, 7
        %v2650 = vsub.s32 %v2647, %v2649
        %v2651 = vrot.slane %v2637, %v2650
        %v2652 = vcombine.high %v2628, 0.0
        %v2653 = vcombine.high %v2635, 0.0
        %v2654 = vcombine.high %v2644, 0.0
        %v2655 = vcombine.high %v2651, 0.0
        %v2656 = vpack.c.bf16 %v2628, %v2628
        %v2657 = vpack.c.bf16 %v2652, %v2652
        %v2658 = vpack.c.bf16 %v2635, %v2635
        %v2659 = vpack.c.bf16 %v2653, %v2653
        %v2660 = vpack.c.bf16 %v2644, %v2644
        %v2661 = vpack.c.bf16 %v2654, %v2654
        %v2662 = vpack.c.bf16 %v2651, %v2651
        %v2663 = vpack.c.bf16 %v2655, %v2655
        %2664 = vrot.lane.b32.xlu0 %v2573, 96
        %v2665 = vpop.permute.xlu0 %2664
        %2666 = vrot.lane.b32.xlu0 %v2580, 96
        %v2667 = vpop.permute.xlu0 %2666
        %2668 = vrot.lane.b32.xlu0 %v2583, 96
        %v2669 = vpop.permute.xlu0 %2668
        %2670 = vrot.lane.b32.xlu0 %v2586, 96
        %v2671 = vpop.permute.xlu0 %2670
        %v2676 = vcombine.low %v2665, %v2669
        %v2677 = vcombine.high %v2665, %v2669
        %v2679 = vunpack.c.l.s4 1983009808
        %v2680 = vunpack.c.0.s8 %v2679
        %v2681 = vlaneseq
        %v2682 = vshrl.u32 %v2681, 7
        %v2683 = vsub.s32 %v2680, %v2682
        %v2684 = vrot.slane %v2676, %v2683
        %v2686 = vunpack.c.l.s4 1983009808
        %v2687 = vunpack.c.0.s8 %v2686
        %v2688 = vlaneseq
        %v2689 = vshrl.u32 %v2688, 7
        %v2690 = vsub.s32 %v2687, %v2689
        %v2691 = vrot.slane %v2677, %v2690
        %v2692 = vcombine.low %v2667, %v2671
        %v2693 = vcombine.high %v2667, %v2671
        %v2695 = vunpack.c.l.s4 1983009808
        %v2696 = vunpack.c.0.s8 %v2695
        %v2697 = vlaneseq
        %v2698 = vshrl.u32 %v2697, 7
        %v2699 = vsub.s32 %v2696, %v2698
        %v2700 = vrot.slane %v2692, %v2699
        %v2702 = vunpack.c.l.s4 1983009808
        %v2703 = vunpack.c.0.s8 %v2702
        %v2704 = vlaneseq
        %v2705 = vshrl.u32 %v2704, 7
        %v2706 = vsub.s32 %v2703, %v2705
        %v2707 = vrot.slane %v2693, %v2706
        %v2708 = vcombine.low %v2684, %v2700
        %v2709 = vcombine.high %v2684, %v2700
        %v2711 = vunpack.c.l.s4 1934713408
        %v2712 = vunpack.c.0.s8 %v2711
        %v2713 = vlaneseq
        %v2714 = vshrl.u32 %v2713, 7
        %v2715 = vsub.s32 %v2712, %v2714
        %v2716 = vrot.slane %v2708, %v2715
        %v2718 = vunpack.c.l.s4 1934713408
        %v2719 = vunpack.c.0.s8 %v2718
        %v2720 = vlaneseq
        %v2721 = vshrl.u32 %v2720, 7
        %v2722 = vsub.s32 %v2719, %v2721
        %v2723 = vrot.slane %v2709, %v2722
        %v2724 = vcombine.low %v2691, %v2707
        %v2725 = vcombine.high %v2691, %v2707
        %v2727 = vunpack.c.l.s4 1934713408
        %v2728 = vunpack.c.0.s8 %v2727
        %v2729 = vlaneseq
        %v2730 = vshrl.u32 %v2729, 7
        %v2731 = vsub.s32 %v2728, %v2730
        %v2732 = vrot.slane %v2724, %v2731
        %v2734 = vunpack.c.l.s4 1934713408
        %v2735 = vunpack.c.0.s8 %v2734
        %v2736 = vlaneseq
        %v2737 = vshrl.u32 %v2736, 7
        %v2738 = vsub.s32 %v2735, %v2737
        %v2739 = vrot.slane %v2725, %v2738
        %v2740 = vcombine.high %v2716, 0.0
        %v2741 = vcombine.high %v2723, 0.0
        %v2742 = vcombine.high %v2732, 0.0
        %v2743 = vcombine.high %v2739, 0.0
        %v2744 = vpack.c.bf16 %v2716, %v2716
        %v2745 = vpack.c.bf16 %v2740, %v2740
        %v2746 = vpack.c.bf16 %v2723, %v2723
        %v2747 = vpack.c.bf16 %v2741, %v2741
        %v2748 = vpack.c.bf16 %v2732, %v2732
        %v2749 = vpack.c.bf16 %v2742, %v2742
        %v2750 = vpack.c.bf16 %v2739, %v2739
        %v2751 = vpack.c.bf16 %v2743, %v2743
        %2752 = vrot.lane.b32.xlu0 %v2573, 64
        %v2753 = vpop.permute.xlu0 %2752
        %2754 = vrot.lane.b32.xlu0 %v2580, 64
        %v2755 = vpop.permute.xlu0 %2754
        %2756 = vrot.lane.b32.xlu0 %v2583, 64
        %v2757 = vpop.permute.xlu0 %2756
        %2758 = vrot.lane.b32.xlu0 %v2586, 64
        %v2759 = vpop.permute.xlu0 %2758
        %v2764 = vcombine.low %v2753, %v2757
        %v2765 = vcombine.high %v2753, %v2757
        %v2767 = vunpack.c.l.s4 1983009808
        %v2768 = vunpack.c.0.s8 %v2767
        %v2769 = vlaneseq
        %v2770 = vshrl.u32 %v2769, 7
        %v2771 = vsub.s32 %v2768, %v2770
        %v2772 = vrot.slane %v2764, %v2771
        %v2774 = vunpack.c.l.s4 1983009808
        %v2775 = vunpack.c.0.s8 %v2774
        %v2776 = vlaneseq
        %v2777 = vshrl.u32 %v2776, 7
        %v2778 = vsub.s32 %v2775, %v2777
        %v2779 = vrot.slane %v2765, %v2778
        %v2780 = vcombine.low %v2755, %v2759
        %v2781 = vcombine.high %v2755, %v2759
        %v2783 = vunpack.c.l.s4 1983009808
        %v2784 = vunpack.c.0.s8 %v2783
        %v2785 = vlaneseq
        %v2786 = vshrl.u32 %v2785, 7
        %v2787 = vsub.s32 %v2784, %v2786
        %v2788 = vrot.slane %v2780, %v2787
        %v2790 = vunpack.c.l.s4 1983009808
        %v2791 = vunpack.c.0.s8 %v2790
        %v2792 = vlaneseq
        %v2793 = vshrl.u32 %v2792, 7
        %v2794 = vsub.s32 %v2791, %v2793
        %v2795 = vrot.slane %v2781, %v2794
        %v2796 = vcombine.low %v2772, %v2788
        %v2797 = vcombine.high %v2772, %v2788
        %v2799 = vunpack.c.l.s4 1934713408
        %v2800 = vunpack.c.0.s8 %v2799
        %v2801 = vlaneseq
        %v2802 = vshrl.u32 %v2801, 7
        %v2803 = vsub.s32 %v2800, %v2802
        %v2804 = vrot.slane %v2796, %v2803
        %v2806 = vunpack.c.l.s4 1934713408
        %v2807 = vunpack.c.0.s8 %v2806
        %v2808 = vlaneseq
        %v2809 = vshrl.u32 %v2808, 7
        %v2810 = vsub.s32 %v2807, %v2809
        %v2811 = vrot.slane %v2797, %v2810
        %v2812 = vcombine.low %v2779, %v2795
        %v2813 = vcombine.high %v2779, %v2795
        %v2815 = vunpack.c.l.s4 1934713408
        %v2816 = vunpack.c.0.s8 %v2815
        %v2817 = vlaneseq
        %v2818 = vshrl.u32 %v2817, 7
        %v2819 = vsub.s32 %v2816, %v2818
        %v2820 = vrot.slane %v2812, %v2819
        %v2822 = vunpack.c.l.s4 1934713408
        %v2823 = vunpack.c.0.s8 %v2822
        %v2824 = vlaneseq
        %v2825 = vshrl.u32 %v2824, 7
        %v2826 = vsub.s32 %v2823, %v2825
        %v2827 = vrot.slane %v2813, %v2826
        %v2828 = vcombine.high %v2804, 0.0
        %v2829 = vcombine.high %v2811, 0.0
        %v2830 = vcombine.high %v2820, 0.0
        %v2831 = vcombine.high %v2827, 0.0
        %v2832 = vpack.c.bf16 %v2804, %v2804
        %v2833 = vpack.c.bf16 %v2828, %v2828
        %v2834 = vpack.c.bf16 %v2811, %v2811
        %v2835 = vpack.c.bf16 %v2829, %v2829
        %v2836 = vpack.c.bf16 %v2820, %v2820
        %v2837 = vpack.c.bf16 %v2830, %v2830
        %v2838 = vpack.c.bf16 %v2827, %v2827
        %v2839 = vpack.c.bf16 %v2831, %v2831
        %v2840 = vcombine.low %v2656, %v2660
        %v2842 = vunpack.c.l.s4 1983009808
        %v2843 = vunpack.c.0.s8 %v2842
        %v2844 = vlaneseq
        %v2845 = vshrl.u32 %v2844, 7
        %v2846 = vsub.s32 %v2843, %v2845
        %v2847 = vrot.slane %v2840, %v2846
        %v2848 = vcombine.low %v2658, %v2662
        %v2850 = vunpack.c.l.s4 1983009808
        %v2851 = vunpack.c.0.s8 %v2850
        %v2852 = vlaneseq
        %v2853 = vshrl.u32 %v2852, 7
        %v2854 = vsub.s32 %v2851, %v2853
        %v2855 = vrot.slane %v2848, %v2854
        %v2856 = vcombine.low %v2847, %v2855
        %v2858 = vunpack.c.l.s4 1934713408
        %v2859 = vunpack.c.0.s8 %v2858
        %v2860 = vlaneseq
        %v2861 = vshrl.u32 %v2860, 7
        %v2862 = vsub.s32 %v2859, %v2861
        %v2863 = vrot.slane %v2856, %v2862
        %v2864 = vcombine.high %v2863, 0
        %v2865 = vcombine.low %v2657, %v2661
        %v2867 = vunpack.c.l.s4 1983009808
        %v2868 = vunpack.c.0.s8 %v2867
        %v2869 = vlaneseq
        %v2870 = vshrl.u32 %v2869, 7
        %v2871 = vsub.s32 %v2868, %v2870
        %v2872 = vrot.slane %v2865, %v2871
        %v2873 = vcombine.low %v2659, %v2663
        %v2875 = vunpack.c.l.s4 1983009808
        %v2876 = vunpack.c.0.s8 %v2875
        %v2877 = vlaneseq
        %v2878 = vshrl.u32 %v2877, 7
        %v2879 = vsub.s32 %v2876, %v2878
        %v2880 = vrot.slane %v2873, %v2879
        %v2881 = vcombine.low %v2872, %v2880
        %v2883 = vunpack.c.l.s4 1934713408
        %v2884 = vunpack.c.0.s8 %v2883
        %v2885 = vlaneseq
        %v2886 = vshrl.u32 %v2885, 7
        %v2887 = vsub.s32 %v2884, %v2886
        %v2888 = vrot.slane %v2881, %v2887
        %v2889 = vcombine.high %v2888, 0
        %v2892 = vpack.i.b16 %v2888, %v2863
        %v2893 = vshrl.u32 %v2863, 16
        %v2894 = vshrl.u32 %v2888, 16
        %v2895 = vpack.i.b16 %v2894, %v2893
        %v2898 = vpack.i.b16 %v2889, %v2864
        %v2899 = vshrl.u32 %v2864, 16
        %v2900 = vshrl.u32 %v2889, 16
        %v2901 = vpack.i.b16 %v2900, %v2899
        %2902 = vxpose.xlu0.c.b16.start [1/8] %v2744, 128
        %2903 = vxpose.xlu0.c.b16.cont [2/8] 0, 128
        %2904 = vxpose.xlu0.c.b16.cont [3/8] 0, 128
        %2905 = vxpose.xlu0.c.b16.cont [4/8] 0, 128
        %2906 = vxpose.xlu0.c.b16.cont [5/8] 0, 128
        %2907 = vxpose.xlu0.c.b16.cont [6/8] 0, 128
        %2908 = vxpose.xlu0.c.b16.cont [7/8] 0, 128
        %2909 = vxpose.xlu0.c.b16.end [8/8] 0, 128
        %v2910 = vpop.trf.xlu0
        %v2911 = vpop.trf.xlu0
        %v2912 = vpop.trf.xlu0
        %v2913 = vpop.trf.xlu0
        %v2914 = vpop.trf.xlu0
        %v2915 = vpop.trf.xlu0
        %v2916 = vpop.trf.xlu0
        %v2917 = vpop.trf.xlu0
        %2918 = vxpose.xlu0.c.b16.start [1/8] %v2745, 128
        %2919 = vxpose.xlu0.c.b16.cont [2/8] 0, 128
        %2920 = vxpose.xlu0.c.b16.cont [3/8] 0, 128
        %2921 = vxpose.xlu0.c.b16.cont [4/8] 0, 128
        %2922 = vxpose.xlu0.c.b16.cont [5/8] 0, 128
        %2923 = vxpose.xlu0.c.b16.cont [6/8] 0, 128
        %2924 = vxpose.xlu0.c.b16.cont [7/8] 0, 128
        %2925 = vxpose.xlu0.c.b16.end [8/8] 0, 128
        %v2926 = vpop.trf.xlu0
        %v2927 = vpop.trf.xlu0
        %v2928 = vpop.trf.xlu0
        %v2929 = vpop.trf.xlu0
        %v2930 = vpop.trf.xlu0
        %v2931 = vpop.trf.xlu0
        %v2932 = vpop.trf.xlu0
        %v2933 = vpop.trf.xlu0
        %2934 = vxpose.xlu0.c.b16.start [1/8] %v2746, 128
        %2935 = vxpose.xlu0.c.b16.cont [2/8] 0, 128
        %2936 = vxpose.xlu0.c.b16.cont [3/8] 0, 128
        %2937 = vxpose.xlu0.c.b16.cont [4/8] 0, 128
        %2938 = vxpose.xlu0.c.b16.cont [5/8] 0, 128
        %2939 = vxpose.xlu0.c.b16.cont [6/8] 0, 128
        %2940 = vxpose.xlu0.c.b16.cont [7/8] 0, 128
        %2941 = vxpose.xlu0.c.b16.end [8/8] 0, 128
        %v2942 = vpop.trf.xlu0
        %v2943 = vpop.trf.xlu0
        %v2944 = vpop.trf.xlu0
        %v2945 = vpop.trf.xlu0
        %v2946 = vpop.trf.xlu0
        %v2947 = vpop.trf.xlu0
        %v2948 = vpop.trf.xlu0
        %v2949 = vpop.trf.xlu0
        %2950 = vxpose.xlu0.c.b16.start [1/8] %v2747, 128
        %2951 = vxpose.xlu0.c.b16.cont [2/8] 0, 128
        %2952 = vxpose.xlu0.c.b16.cont [3/8] 0, 128
        %2953 = vxpose.xlu0.c.b16.cont [4/8] 0, 128
        %2954 = vxpose.xlu0.c.b16.cont [5/8] 0, 128
        %2955 = vxpose.xlu0.c.b16.cont [6/8] 0, 128
        %2956 = vxpose.xlu0.c.b16.cont [7/8] 0, 128
        %2957 = vxpose.xlu0.c.b16.end [8/8] 0, 128
        %v2958 = vpop.trf.xlu0
        %v2959 = vpop.trf.xlu0
        %v2960 = vpop.trf.xlu0
        %v2961 = vpop.trf.xlu0
        %v2962 = vpop.trf.xlu0
        %v2963 = vpop.trf.xlu0
        %v2964 = vpop.trf.xlu0
        %v2965 = vpop.trf.xlu0
        %2966 = vxpose.xlu0.c.b16.start [1/8] %v2748, 128
        %2967 = vxpose.xlu0.c.b16.cont [2/8] 0, 128
        %2968 = vxpose.xlu0.c.b16.cont [3/8] 0, 128
        %2969 = vxpose.xlu0.c.b16.cont [4/8] 0, 128
        %2970 = vxpose.xlu0.c.b16.cont [5/8] 0, 128
        %2971 = vxpose.xlu0.c.b16.cont [6/8] 0, 128
        %2972 = vxpose.xlu0.c.b16.cont [7/8] 0, 128
        %2973 = vxpose.xlu0.c.b16.end [8/8] 0, 128
        %v2974 = vpop.trf.xlu0
        %v2975 = vpop.trf.xlu0
        %v2976 = vpop.trf.xlu0
        %v2977 = vpop.trf.xlu0
        %v2978 = vpop.trf.xlu0
        %v2979 = vpop.trf.xlu0
        %v2980 = vpop.trf.xlu0
        %v2981 = vpop.trf.xlu0
        %2982 = vxpose.xlu0.c.b16.start [1/8] %v2749, 128
        %2983 = vxpose.xlu0.c.b16.cont [2/8] 0, 128
        %2984 = vxpose.xlu0.c.b16.cont [3/8] 0, 128
        %2985 = vxpose.xlu0.c.b16.cont [4/8] 0, 128
        %2986 = vxpose.xlu0.c.b16.cont [5/8] 0, 128
        %2987 = vxpose.xlu0.c.b16.cont [6/8] 0, 128
        %2988 = vxpose.xlu0.c.b16.cont [7/8] 0, 128
        %2989 = vxpose.xlu0.c.b16.end [8/8] 0, 128
        %v2990 = vpop.trf.xlu0
        %v2991 = vpop.trf.xlu0
        %v2992 = vpop.trf.xlu0
        %v2993 = vpop.trf.xlu0
        %v2994 = vpop.trf.xlu0
        %v2995 = vpop.trf.xlu0
        %v2996 = vpop.trf.xlu0
        %v2997 = vpop.trf.xlu0
        %2998 = vxpose.xlu0.c.b16.start [1/8] %v2750, 128
        %2999 = vxpose.xlu0.c.b16.cont [2/8] 0, 128
        %3000 = vxpose.xlu0.c.b16.cont [3/8] 0, 128
        %3001 = vxpose.xlu0.c.b16.cont [4/8] 0, 128
        %3002 = vxpose.xlu0.c.b16.cont [5/8] 0, 128
        %3003 = vxpose.xlu0.c.b16.cont [6/8] 0, 128
        %3004 = vxpose.xlu0.c.b16.cont [7/8] 0, 128
        %3005 = vxpose.xlu0.c.b16.end [8/8] 0, 128
        %v3006 = vpop.trf.xlu0
        %v3007 = vpop.trf.xlu0
        %v3008 = vpop.trf.xlu0
        %v3009 = vpop.trf.xlu0
        %v3010 = vpop.trf.xlu0
        %v3011 = vpop.trf.xlu0
        %v3012 = vpop.trf.xlu0
        %v3013 = vpop.trf.xlu0
        %3014 = vxpose.xlu0.c.b16.start [1/8] %v2751, 128
        %3015 = vxpose.xlu0.c.b16.cont [2/8] 0, 128
        %3016 = vxpose.xlu0.c.b16.cont [3/8] 0, 128
        %3017 = vxpose.xlu0.c.b16.cont [4/8] 0, 128
        %3018 = vxpose.xlu0.c.b16.cont [5/8] 0, 128
        %3019 = vxpose.xlu0.c.b16.cont [6/8] 0, 128
        %3020 = vxpose.xlu0.c.b16.cont [7/8] 0, 128
        %3021 = vxpose.xlu0.c.b16.end [8/8] 0, 128
        %v3022 = vpop.trf.xlu0
        %v3023 = vpop.trf.xlu0
        %v3024 = vpop.trf.xlu0
        %v3025 = vpop.trf.xlu0
        %v3026 = vpop.trf.xlu0
        %v3027 = vpop.trf.xlu0
        %v3028 = vpop.trf.xlu0
        %v3029 = vpop.trf.xlu0
        %v3030 = vcombine.low %v2910, %v2974
        %v3032 = vunpack.c.l.s4 1983009808
        %v3033 = vunpack.c.0.s8 %v3032
        %v3034 = vlaneseq
        %v3035 = vshrl.u32 %v3034, 7
        %v3036 = vsub.s32 %v3033, %v3035
        %v3037 = vrot.slane %v3030, %v3036
        %v3038 = vcombine.low %v2942, %v3006
        %v3040 = vunpack.c.l.s4 1983009808
        %v3041 = vunpack.c.0.s8 %v3040
        %v3042 = vlaneseq
        %v3043 = vshrl.u32 %v3042, 7
        %v3044 = vsub.s32 %v3041, %v3043
        %v3045 = vrot.slane %v3038, %v3044
        %v3046 = vcombine.low %v3037, %v3045
        %v3047 = vcombine.high %v3037, %v3045
        %v3049 = vunpack.c.l.s4 1934713408
        %v3050 = vunpack.c.0.s8 %v3049
        %v3051 = vlaneseq
        %v3052 = vshrl.u32 %v3051, 7
        %v3053 = vsub.s32 %v3050, %v3052
        %v3054 = vrot.slane %v3046, %v3053
        %v3056 = vunpack.c.l.s4 1934713408
        %v3057 = vunpack.c.0.s8 %v3056
        %v3058 = vlaneseq
        %v3059 = vshrl.u32 %v3058, 7
        %v3060 = vsub.s32 %v3057, %v3059
        %v3061 = vrot.slane %v3047, %v3060
        %v3062 = vcombine.high %v3054, 0
        %v3063 = vcombine.high %v3061, 0
        %v3064 = vcombine.low %v2926, %v2990
        %v3066 = vunpack.c.l.s4 1983009808
        %v3067 = vunpack.c.0.s8 %v3066
        %v3068 = vlaneseq
        %v3069 = vshrl.u32 %v3068, 7
        %v3070 = vsub.s32 %v3067, %v3069
        %v3071 = vrot.slane %v3064, %v3070
        %v3072 = vcombine.low %v2958, %v3022
        %v3074 = vunpack.c.l.s4 1983009808
        %v3075 = vunpack.c.0.s8 %v3074
        %v3076 = vlaneseq
        %v3077 = vshrl.u32 %v3076, 7
        %v3078 = vsub.s32 %v3075, %v3077
        %v3079 = vrot.slane %v3072, %v3078
        %v3080 = vcombine.low %v3071, %v3079
        %v3081 = vcombine.high %v3071, %v3079
        %v3083 = vunpack.c.l.s4 1934713408
        %v3084 = vunpack.c.0.s8 %v3083
        %v3085 = vlaneseq
        %v3086 = vshrl.u32 %v3085, 7
        %v3087 = vsub.s32 %v3084, %v3086
        %v3088 = vrot.slane %v3080, %v3087
        %v3090 = vunpack.c.l.s4 1934713408
        %v3091 = vunpack.c.0.s8 %v3090
        %v3092 = vlaneseq
        %v3093 = vshrl.u32 %v3092, 7
        %v3094 = vsub.s32 %v3091, %v3093
        %v3095 = vrot.slane %v3081, %v3094
        %v3096 = vcombine.high %v3088, 0
        %v3097 = vcombine.high %v3095, 0
        %v3100 = vpack.i.b16 %v3088, %v3054
        %v3102 = vshrl.u32 %v3054, 16
        %v3103 = vshrl.u32 %v3088, 16
        %v3104 = vpack.i.b16 %v3103, %v3102
        %v3108 = vpack.i.b16 %v3096, %v3062
        %v3110 = vshrl.u32 %v3062, 16
        %v3111 = vshrl.u32 %v3096, 16
        %v3112 = vpack.i.b16 %v3111, %v3110
        %v3116 = vpack.i.b16 %v3095, %v3061
        %v3118 = vshrl.u32 %v3061, 16
        %v3119 = vshrl.u32 %v3095, 16
        %v3120 = vpack.i.b16 %v3119, %v3118
        %v3124 = vpack.i.b16 %v3097, %v3063
        %v3126 = vshrl.u32 %v3063, 16
        %v3127 = vshrl.u32 %v3097, 16
        %v3128 = vpack.i.b16 %v3127, %v3126
        %3130 = vxpose.xlu0.c.b16.start [1/8] %v3100, 128
        %3131 = vxpose.xlu0.c.b16.cont [2/8] 0, 128
        %3132 = vxpose.xlu0.c.b16.cont [3/8] 0, 128
        %3133 = vxpose.xlu0.c.b16.cont [4/8] 0, 128
        %3134 = vxpose.xlu0.c.b16.cont [5/8] 0, 128
        %3135 = vxpose.xlu0.c.b16.cont [6/8] 0, 128
        %3136 = vxpose.xlu0.c.b16.cont [7/8] 0, 128
        %3137 = vxpose.xlu0.c.b16.end [8/8] 0, 128
        %v3138 = vpop.trf.xlu0
        %v3139 = vpop.trf.xlu0
        %v3140 = vpop.trf.xlu0
        %v3141 = vpop.trf.xlu0
        %v3142 = vpop.trf.xlu0
        %v3143 = vpop.trf.xlu0
        %v3144 = vpop.trf.xlu0
        %v3145 = vpop.trf.xlu0
        %3146 = vxpose.xlu0.c.b16.start [1/8] %v3104, 128
        %3147 = vxpose.xlu0.c.b16.cont [2/8] 0, 128
        %3148 = vxpose.xlu0.c.b16.cont [3/8] 0, 128
        %3149 = vxpose.xlu0.c.b16.cont [4/8] 0, 128
        %3150 = vxpose.xlu0.c.b16.cont [5/8] 0, 128
        %3151 = vxpose.xlu0.c.b16.cont [6/8] 0, 128
        %3152 = vxpose.xlu0.c.b16.cont [7/8] 0, 128
        %3153 = vxpose.xlu0.c.b16.end [8/8] 0, 128
        %v3154 = vpop.trf.xlu0
        %v3155 = vpop.trf.xlu0
        %v3156 = vpop.trf.xlu0
        %v3157 = vpop.trf.xlu0
        %v3158 = vpop.trf.xlu0
        %v3159 = vpop.trf.xlu0
        %v3160 = vpop.trf.xlu0
        %v3161 = vpop.trf.xlu0
        %3162 = vxpose.xlu0.c.b16.start [1/8] %v3108, 128
        %3163 = vxpose.xlu0.c.b16.cont [2/8] 0, 128
        %3164 = vxpose.xlu0.c.b16.cont [3/8] 0, 128
        %3165 = vxpose.xlu0.c.b16.cont [4/8] 0, 128
        %3166 = vxpose.xlu0.c.b16.cont [5/8] 0, 128
        %3167 = vxpose.xlu0.c.b16.cont [6/8] 0, 128
        %3168 = vxpose.xlu0.c.b16.cont [7/8] 0, 128
        %3169 = vxpose.xlu0.c.b16.end [8/8] 0, 128
        %v3170 = vpop.trf.xlu0
        %v3171 = vpop.trf.xlu0
        %v3172 = vpop.trf.xlu0
        %v3173 = vpop.trf.xlu0
        %v3174 = vpop.trf.xlu0
        %v3175 = vpop.trf.xlu0
        %v3176 = vpop.trf.xlu0
        %v3177 = vpop.trf.xlu0
        %3178 = vxpose.xlu0.c.b16.start [1/8] %v3112, 128
        %3179 = vxpose.xlu0.c.b16.cont [2/8] 0, 128
        %3180 = vxpose.xlu0.c.b16.cont [3/8] 0, 128
        %3181 = vxpose.xlu0.c.b16.cont [4/8] 0, 128
        %3182 = vxpose.xlu0.c.b16.cont [5/8] 0, 128
        %3183 = vxpose.xlu0.c.b16.cont [6/8] 0, 128
        %3184 = vxpose.xlu0.c.b16.cont [7/8] 0, 128
        %3185 = vxpose.xlu0.c.b16.end [8/8] 0, 128
        %v3186 = vpop.trf.xlu0
        %v3187 = vpop.trf.xlu0
        %v3188 = vpop.trf.xlu0
        %v3189 = vpop.trf.xlu0
        %v3190 = vpop.trf.xlu0
        %v3191 = vpop.trf.xlu0
        %v3192 = vpop.trf.xlu0
        %v3193 = vpop.trf.xlu0
        %3194 = vxpose.xlu0.c.b16.start [1/8] %v3116, 128
        %3195 = vxpose.xlu0.c.b16.cont [2/8] 0, 128
        %3196 = vxpose.xlu0.c.b16.cont [3/8] 0, 128
        %3197 = vxpose.xlu0.c.b16.cont [4/8] 0, 128
        %3198 = vxpose.xlu0.c.b16.cont [5/8] 0, 128
        %3199 = vxpose.xlu0.c.b16.cont [6/8] 0, 128
        %3200 = vxpose.xlu0.c.b16.cont [7/8] 0, 128
        %3201 = vxpose.xlu0.c.b16.end [8/8] 0, 128
        %v3202 = vpop.trf.xlu0
        %v3203 = vpop.trf.xlu0
        %v3204 = vpop.trf.xlu0
        %v3205 = vpop.trf.xlu0
        %v3206 = vpop.trf.xlu0
        %v3207 = vpop.trf.xlu0
        %v3208 = vpop.trf.xlu0
        %v3209 = vpop.trf.xlu0
        %3210 = vxpose.xlu0.c.b16.start [1/8] %v3120, 128
        %3211 = vxpose.xlu0.c.b16.cont [2/8] 0, 128
        %3212 = vxpose.xlu0.c.b16.cont [3/8] 0, 128
        %3213 = vxpose.xlu0.c.b16.cont [4/8] 0, 128
        %3214 = vxpose.xlu0.c.b16.cont [5/8] 0, 128
        %3215 = vxpose.xlu0.c.b16.cont [6/8] 0, 128
        %3216 = vxpose.xlu0.c.b16.cont [7/8] 0, 128
        %3217 = vxpose.xlu0.c.b16.end [8/8] 0, 128
        %v3218 = vpop.trf.xlu0
        %v3219 = vpop.trf.xlu0
        %v3220 = vpop.trf.xlu0
        %v3221 = vpop.trf.xlu0
        %v3222 = vpop.trf.xlu0
        %v3223 = vpop.trf.xlu0
        %v3224 = vpop.trf.xlu0
        %v3225 = vpop.trf.xlu0
        %3226 = vxpose.xlu0.c.b16.start [1/8] %v3124, 128
        %3227 = vxpose.xlu0.c.b16.cont [2/8] 0, 128
        %3228 = vxpose.xlu0.c.b16.cont [3/8] 0, 128
        %3229 = vxpose.xlu0.c.b16.cont [4/8] 0, 128
        %3230 = vxpose.xlu0.c.b16.cont [5/8] 0, 128
        %3231 = vxpose.xlu0.c.b16.cont [6/8] 0, 128
        %3232 = vxpose.xlu0.c.b16.cont [7/8] 0, 128
        %3233 = vxpose.xlu0.c.b16.end [8/8] 0, 128
        %v3234 = vpop.trf.xlu0
        %v3235 = vpop.trf.xlu0
        %v3236 = vpop.trf.xlu0
        %v3237 = vpop.trf.xlu0
        %v3238 = vpop.trf.xlu0
        %v3239 = vpop.trf.xlu0
        %v3240 = vpop.trf.xlu0
        %v3241 = vpop.trf.xlu0
        %3242 = vxpose.xlu0.c.b16.start [1/8] %v3128, 128
        %3243 = vxpose.xlu0.c.b16.cont [2/8] 0, 128
        %3244 = vxpose.xlu0.c.b16.cont [3/8] 0, 128
        %3245 = vxpose.xlu0.c.b16.cont [4/8] 0, 128
        %3246 = vxpose.xlu0.c.b16.cont [5/8] 0, 128
        %3247 = vxpose.xlu0.c.b16.cont [6/8] 0, 128
        %3248 = vxpose.xlu0.c.b16.cont [7/8] 0, 128
        %3249 = vxpose.xlu0.c.b16.end [8/8] 0, 128
        %v3250 = vpop.trf.xlu0
        %v3251 = vpop.trf.xlu0
        %v3252 = vpop.trf.xlu0
        %v3253 = vpop.trf.xlu0
        %v3254 = vpop.trf.xlu0
        %v3255 = vpop.trf.xlu0
        %v3256 = vpop.trf.xlu0
        %v3257 = vpop.trf.xlu0
        %v3258 = vcombine.low %v3138, %v3202
        %v3260 = vunpack.c.l.s4 1983009808
        %v3261 = vunpack.c.0.s8 %v3260
        %v3262 = vlaneseq
        %v3263 = vshrl.u32 %v3262, 7
        %v3264 = vsub.s32 %v3261, %v3263
        %v3265 = vrot.slane %v3258, %v3264
        %v3266 = vcombine.low %v3170, %v3234
        %v3268 = vunpack.c.l.s4 1983009808
        %v3269 = vunpack.c.0.s8 %v3268
        %v3270 = vlaneseq
        %v3271 = vshrl.u32 %v3270, 7
        %v3272 = vsub.s32 %v3269, %v3271
        %v3273 = vrot.slane %v3266, %v3272
        %v3274 = vcombine.low %v3265, %v3273
        %v3276 = vunpack.c.l.s4 1934713408
        %v3277 = vunpack.c.0.s8 %v3276
        %v3278 = vlaneseq
        %v3279 = vshrl.u32 %v3278, 7
        %v3280 = vsub.s32 %v3277, %v3279
        %v3281 = vrot.slane %v3274, %v3280
        %v3282 = vcombine.high %v3281, 0
        %v3283 = vcombine.low %v3154, %v3218
        %v3285 = vunpack.c.l.s4 1983009808
        %v3286 = vunpack.c.0.s8 %v3285
        %v3287 = vlaneseq
        %v3288 = vshrl.u32 %v3287, 7
        %v3289 = vsub.s32 %v3286, %v3288
        %v3290 = vrot.slane %v3283, %v3289
        %v3291 = vcombine.low %v3186, %v3250
        %v3293 = vunpack.c.l.s4 1983009808
        %v3294 = vunpack.c.0.s8 %v3293
        %v3295 = vlaneseq
        %v3296 = vshrl.u32 %v3295, 7
        %v3297 = vsub.s32 %v3294, %v3296
        %v3298 = vrot.slane %v3291, %v3297
        %v3299 = vcombine.low %v3290, %v3298
        %v3301 = vunpack.c.l.s4 1934713408
        %v3302 = vunpack.c.0.s8 %v3301
        %v3303 = vlaneseq
        %v3304 = vshrl.u32 %v3303, 7
        %v3305 = vsub.s32 %v3302, %v3304
        %v3306 = vrot.slane %v3299, %v3305
        %v3307 = vcombine.high %v3306, 0
        %v3310 = vpack.i.b16 %v3306, %v3281
        %v3311 = vshrl.u32 %v3281, 16
        %v3312 = vshrl.u32 %v3306, 16
        %v3313 = vpack.i.b16 %v3312, %v3311
        %v3316 = vpack.i.b16 %v3307, %v3282
        %v3317 = vshrl.u32 %v3282, 16
        %v3318 = vshrl.u32 %v3307, 16
        %v3319 = vpack.i.b16 %v3318, %v3317
        %v3321 = vsel %vm1132, %v2892, 0
        %v3324 = vsel %vm1136, %v3310, 0
        %3326 = vmatprep.subr.bf16.mxu0 0
        %3327 = vmatpush1.bf16.msra.mxu0 %v3324
        %3328 = vmatprep.subr.bf16.mxu0 0
        %3329 = vmatpush1.bf16.msra.mxu0 0
        %3330 = vmatprep.subr.bf16.mxu0 0
        %3331 = vmatpush1.bf16.msra.mxu0 0
        %3332 = vmatprep.subr.bf16.mxu0 0
        %3333 = vmatpush1.bf16.msra.mxu0 0
        %3334 = vmatprep.subr.bf16.mxu0 0
        %3335 = vmatpush1.bf16.msra.mxu0 0
        %3336 = vmatprep.subr.bf16.mxu0 0
        %3337 = vmatpush1.bf16.msra.mxu0 0
        %3338 = vmatprep.subr.bf16.mxu0 0
        %3339 = vmatpush1.bf16.msra.mxu0 0
        %3340 = vmatprep.subr.bf16.mxu0 0
        %3341 = vmatpush1.bf16.msra.mxu0 0
        %3342 = vmatprep.subr.bf16.mxu0 0
        %3343 = vmatpush1.bf16.msra.mxu0 0
        %3344 = vmatprep.subr.bf16.mxu0 0
        %3345 = vmatpush1.bf16.msra.mxu0 0
        %3346 = vmatprep.subr.bf16.mxu0 0
        %3347 = vmatpush1.bf16.msra.mxu0 0
        %3348 = vmatprep.subr.bf16.mxu0 0
        %3349 = vmatpush1.bf16.msra.mxu0 0
        %3350 = vmatprep.subr.bf16.mxu0 0
        %3351 = vmatpush1.bf16.msra.mxu0 0
        %3352 = vmatprep.subr.bf16.mxu0 0
        %3353 = vmatpush1.bf16.msra.mxu0 0
        %3354 = vmatprep.subr.bf16.mxu0 0
        %3355 = vmatpush1.bf16.msra.mxu0 0
        %3356 = vmatprep.subr.bf16.mxu0 0
        %3357 = vmatpush1.bf16.msra.mxu0 0
        %3358 = vmatprep.mubr.bf16.mxu0 0
        %3359 = vmatmul.mubr.bf16.gmra.mrb[0].mxu0 %v3321
        %v3360 = vpop.f32.mrb[0].mxu0
        %v3361 = vadd.f32 0.0, %v3360
        %v3362 = vpop.f32.mrb[0].mxu0
        %v3363 = vpop.f32.mrb[0].mxu0
        %v3364 = vpop.f32.mrb[0].mxu0
        %3365 = vdwg.mxu0
        %v3367 = vsel %vm1132, %v2895, 0
        %v3370 = vsel %vm1136, %v3313, 0
        %3372 = vmatprep.subr.bf16.mxu0 0
        %3373 = vmatpush1.bf16.msra.mxu0 %v3370
        %3374 = vmatprep.subr.bf16.mxu0 0
        %3375 = vmatpush1.bf16.msra.mxu0 0
        %3376 = vmatprep.subr.bf16.mxu0 0
        %3377 = vmatpush1.bf16.msra.mxu0 0
        %3378 = vmatprep.subr.bf16.mxu0 0
        %3379 = vmatpush1.bf16.msra.mxu0 0
        %3380 = vmatprep.subr.bf16.mxu0 0
        %3381 = vmatpush1.bf16.msra.mxu0 0
        %3382 = vmatprep.subr.bf16.mxu0 0
        %3383 = vmatpush1.bf16.msra.mxu0 0
        %3384 = vmatprep.subr.bf16.mxu0 0
        %3385 = vmatpush1.bf16.msra.mxu0 0
        %3386 = vmatprep.subr.bf16.mxu0 0
        %3387 = vmatpush1.bf16.msra.mxu0 0
        %3388 = vmatprep.subr.bf16.mxu0 0
        %3389 = vmatpush1.bf16.msra.mxu0 0
        %3390 = vmatprep.subr.bf16.mxu0 0
        %3391 = vmatpush1.bf16.msra.mxu0 0
        %3392 = vmatprep.subr.bf16.mxu0 0
        %3393 = vmatpush1.bf16.msra.mxu0 0
        %3394 = vmatprep.subr.bf16.mxu0 0
        %3395 = vmatpush1.bf16.msra.mxu0 0
        %3396 = vmatprep.subr.bf16.mxu0 0
        %3397 = vmatpush1.bf16.msra.mxu0 0
        %3398 = vmatprep.subr.bf16.mxu0 0
        %3399 = vmatpush1.bf16.msra.mxu0 0
        %3400 = vmatprep.subr.bf16.mxu0 0
        %3401 = vmatpush1.bf16.msra.mxu0 0
        %3402 = vmatprep.subr.bf16.mxu0 0
        %3403 = vmatpush1.bf16.msra.mxu0 0
        %3404 = vmatprep.mubr.bf16.mxu0 0
        %3405 = vmatmul.mubr.bf16.gmra.mrb[0].mxu0 %v3367
        %v3406 = vpop.f32.mrb[0].mxu0
        %v3407 = vadd.f32 0.0, %v3406
        %v3408 = vpop.f32.mrb[0].mxu0
        %v3409 = vpop.f32.mrb[0].mxu0
        %v3410 = vpop.f32.mrb[0].mxu0
        %3411 = vdwg.mxu0
        %v3413 = vsel %vm1132, %v2898, 0
        %v3416 = vsel %vm1136, %v3316, 0
        %3418 = vmatprep.subr.bf16.mxu0 0
        %3419 = vmatpush1.bf16.msra.mxu0 %v3416
        %3420 = vmatprep.subr.bf16.mxu0 0
        %3421 = vmatpush1.bf16.msra.mxu0 0
        %3422 = vmatprep.subr.bf16.mxu0 0
        %3423 = vmatpush1.bf16.msra.mxu0 0
        %3424 = vmatprep.subr.bf16.mxu0 0
        %3425 = vmatpush1.bf16.msra.mxu0 0
        %3426 = vmatprep.subr.bf16.mxu0 0
        %3427 = vmatpush1.bf16.msra.mxu0 0
        %3428 = vmatprep.subr.bf16.mxu0 0
        %3429 = vmatpush1.bf16.msra.mxu0 0
        %3430 = vmatprep.subr.bf16.mxu0 0
        %3431 = vmatpush1.bf16.msra.mxu0 0
        %3432 = vmatprep.subr.bf16.mxu0 0
        %3433 = vmatpush1.bf16.msra.mxu0 0
        %3434 = vmatprep.subr.bf16.mxu0 0
        %3435 = vmatpush1.bf16.msra.mxu0 0
        %3436 = vmatprep.subr.bf16.mxu0 0
        %3437 = vmatpush1.bf16.msra.mxu0 0
        %3438 = vmatprep.subr.bf16.mxu0 0
        %3439 = vmatpush1.bf16.msra.mxu0 0
        %3440 = vmatprep.subr.bf16.mxu0 0
        %3441 = vmatpush1.bf16.msra.mxu0 0
        %3442 = vmatprep.subr.bf16.mxu0 0
        %3443 = vmatpush1.bf16.msra.mxu0 0
        %3444 = vmatprep.subr.bf16.mxu0 0
        %3445 = vmatpush1.bf16.msra.mxu0 0
        %3446 = vmatprep.subr.bf16.mxu0 0
        %3447 = vmatpush1.bf16.msra.mxu0 0
        %3448 = vmatprep.subr.bf16.mxu0 0
        %3449 = vmatpush1.bf16.msra.mxu0 0
        %3450 = vmatprep.mubr.bf16.mxu0 0
        %3451 = vmatmul.mubr.bf16.gmra.mrb[0].mxu0 %v3413
        %v3452 = vpop.f32.mrb[0].mxu0
        %v3453 = vadd.f32 0.0, %v3452
        %v3454 = vpop.f32.mrb[0].mxu0
        %v3455 = vpop.f32.mrb[0].mxu0
        %v3456 = vpop.f32.mrb[0].mxu0
        %3457 = vdwg.mxu0
        %v3459 = vsel %vm1132, %v2901, 0
        %v3462 = vsel %vm1136, %v3319, 0
        %3464 = vmatprep.subr.bf16.mxu0 0
        %3465 = vmatpush1.bf16.msra.mxu0 %v3462
        %3466 = vmatprep.subr.bf16.mxu0 0
        %3467 = vmatpush1.bf16.msra.mxu0 0
        %3468 = vmatprep.subr.bf16.mxu0 0
        %3469 = vmatpush1.bf16.msra.mxu0 0
        %3470 = vmatprep.subr.bf16.mxu0 0
        %3471 = vmatpush1.bf16.msra.mxu0 0
        %3472 = vmatprep.subr.bf16.mxu0 0
        %3473 = vmatpush1.bf16.msra.mxu0 0
        %3474 = vmatprep.subr.bf16.mxu0 0
        %3475 = vmatpush1.bf16.msra.mxu0 0
        %3476 = vmatprep.subr.bf16.mxu0 0
        %3477 = vmatpush1.bf16.msra.mxu0 0
        %3478 = vmatprep.subr.bf16.mxu0 0
        %3479 = vmatpush1.bf16.msra.mxu0 0
        %3480 = vmatprep.subr.bf16.mxu0 0
        %3481 = vmatpush1.bf16.msra.mxu0 0
        %3482 = vmatprep.subr.bf16.mxu0 0
        %3483 = vmatpush1.bf16.msra.mxu0 0
        %3484 = vmatprep.subr.bf16.mxu0 0
        %3485 = vmatpush1.bf16.msra.mxu0 0
        %3486 = vmatprep.subr.bf16.mxu0 0
        %3487 = vmatpush1.bf16.msra.mxu0 0
        %3488 = vmatprep.subr.bf16.mxu0 0
        %3489 = vmatpush1.bf16.msra.mxu0 0
        %3490 = vmatprep.subr.bf16.mxu0 0
        %3491 = vmatpush1.bf16.msra.mxu0 0
        %3492 = vmatprep.subr.bf16.mxu0 0
        %3493 = vmatpush1.bf16.msra.mxu0 0
        %3494 = vmatprep.subr.bf16.mxu0 0
        %3495 = vmatpush1.bf16.msra.mxu0 0
        %3496 = vmatprep.mubr.bf16.mxu0 0
        %3497 = vmatmul.mubr.bf16.gmra.mrb[0].mxu0 %v3459
        %v3498 = vpop.f32.mrb[0].mxu0
        %v3499 = vadd.f32 0.0, %v3498
        %v3500 = vpop.f32.mrb[0].mxu0
        %v3501 = vpop.f32.mrb[0].mxu0
        %v3502 = vpop.f32.mrb[0].mxu0
        %3503 = vdwg.mxu0
        %v3504 = vmul.f32 %v3361, 0.35355338
        %v3505 = vmul.f32 %v3407, 0.35355338
        %v3506 = vmul.f32 %v3453, 0.35355338
        %v3507 = vmul.f32 %v3499, 0.35355338
        %v3508 = vadd.f32 %v3504, %v1326
        %v3509 = vadd.f32 %v3505, %v1326
        %v3510 = vadd.f32 %v3506, %v1326
        %v3511 = vadd.f32 %v3507, %v1326
        %v3512 = vsel %vm1132, %v3508, -inf
        %3513 = vmax.xlane.f32.xlu0 %v3512
        %v3514 = vpop.xlane.xlu0 %3513
        %v3515 = vsel %vm1132, %v3509, -inf
        %3516 = vmax.xlane.f32.xlu0 %v3515
        %v3517 = vpop.xlane.xlu0 %3516
        %v3518 = vsel %vm1132, %v3510, -inf
        %3519 = vmax.xlane.f32.xlu0 %v3518
        %v3520 = vpop.xlane.xlu0 %3519
        %v3521 = vsel %vm1132, %v3511, -inf
        %3522 = vmax.xlane.f32.xlu0 %v3521
        %v3523 = vpop.xlane.xlu0 %3522
        %v3524 = vsub.f32 %v3508, %v3514
        %v3525 = vsub.f32 %v3509, %v3517
        %v3526 = vsub.f32 %v3510, %v3520
        %v3527 = vsub.f32 %v3511, %v3523
        %v3528 = vmul.f32 %v3524, 1.442695
        %v3529 = vpow.pop %v3528
        %v3530 = vmul.f32 %v3525, 1.442695
        %v3531 = vpow.pop %v3530
        %v3532 = vmul.f32 %v3526, 1.442695
        %v3533 = vpow.pop %v3532
        %v3534 = vmul.f32 %v3527, 1.442695
        %v3535 = vpow.pop %v3534
        %v3536 = vsel %vm1132, %v3529, 0.0
        %3537 = vadd.xlane.f32.xlu0 %v3536
        %v3538 = vpop.xlane.xlu0 %3537
        %v3539 = vsel %vm1132, %v3531, 0.0
        %3540 = vadd.xlane.f32.xlu0 %v3539
        %v3541 = vpop.xlane.xlu0 %3540
        %v3542 = vsel %vm1132, %v3533, 0.0
        %3543 = vadd.xlane.f32.xlu0 %v3542
        %v3544 = vpop.xlane.xlu0 %3543
        %v3545 = vsel %vm1132, %v3535, 0.0
        %3546 = vadd.xlane.f32.xlu0 %v3545
        %v3547 = vpop.xlane.xlu0 %3546
        %v3548 = vrcp.pop %v3538
        %v3549 = vrcp.pop %v3541
        %v3550 = vrcp.pop %v3544
        %v3551 = vrcp.pop %v3547
        %v3552 = vmul.f32 %v3529, %v3548
        %v3553 = vmul.f32 %v3531, %v3549
        %v3554 = vmul.f32 %v3533, %v3550
        %v3555 = vmul.f32 %v3535, %v3551
        %v3556 = vpack.c.bf16 %v3552, %v3552
        %v3557 = vpack.c.bf16 %v3553, %v3553
        %v3558 = vpack.c.bf16 %v3554, %v3554
        %v3559 = vpack.c.bf16 %v3555, %v3555
        %3560 = vxpose.xlu0.c.b16.start [1/8] %v2832, 128
        %3561 = vxpose.xlu0.c.b16.cont [2/8] 0, 128
        %3562 = vxpose.xlu0.c.b16.cont [3/8] 0, 128
        %3563 = vxpose.xlu0.c.b16.cont [4/8] 0, 128
        %3564 = vxpose.xlu0.c.b16.cont [5/8] 0, 128
        %3565 = vxpose.xlu0.c.b16.cont [6/8] 0, 128
        %3566 = vxpose.xlu0.c.b16.cont [7/8] 0, 128
        %3567 = vxpose.xlu0.c.b16.end [8/8] 0, 128
        %v3568 = vpop.trf.xlu0
        %v3569 = vpop.trf.xlu0
        %v3570 = vpop.trf.xlu0
        %v3571 = vpop.trf.xlu0
        %v3572 = vpop.trf.xlu0
        %v3573 = vpop.trf.xlu0
        %v3574 = vpop.trf.xlu0
        %v3575 = vpop.trf.xlu0
        %3576 = vxpose.xlu0.c.b16.start [1/8] %v2833, 128
        %3577 = vxpose.xlu0.c.b16.cont [2/8] 0, 128
        %3578 = vxpose.xlu0.c.b16.cont [3/8] 0, 128
        %3579 = vxpose.xlu0.c.b16.cont [4/8] 0, 128
        %3580 = vxpose.xlu0.c.b16.cont [5/8] 0, 128
        %3581 = vxpose.xlu0.c.b16.cont [6/8] 0, 128
        %3582 = vxpose.xlu0.c.b16.cont [7/8] 0, 128
        %3583 = vxpose.xlu0.c.b16.end [8/8] 0, 128
        %v3584 = vpop.trf.xlu0
        %v3585 = vpop.trf.xlu0
        %v3586 = vpop.trf.xlu0
        %v3587 = vpop.trf.xlu0
        %v3588 = vpop.trf.xlu0
        %v3589 = vpop.trf.xlu0
        %v3590 = vpop.trf.xlu0
        %v3591 = vpop.trf.xlu0
        %3592 = vxpose.xlu0.c.b16.start [1/8] %v2834, 128
        %3593 = vxpose.xlu0.c.b16.cont [2/8] 0, 128
        %3594 = vxpose.xlu0.c.b16.cont [3/8] 0, 128
        %3595 = vxpose.xlu0.c.b16.cont [4/8] 0, 128
        %3596 = vxpose.xlu0.c.b16.cont [5/8] 0, 128
        %3597 = vxpose.xlu0.c.b16.cont [6/8] 0, 128
        %3598 = vxpose.xlu0.c.b16.cont [7/8] 0, 128
        %3599 = vxpose.xlu0.c.b16.end [8/8] 0, 128
        %v3600 = vpop.trf.xlu0
        %v3601 = vpop.trf.xlu0
        %v3602 = vpop.trf.xlu0
        %v3603 = vpop.trf.xlu0
        %v3604 = vpop.trf.xlu0
        %v3605 = vpop.trf.xlu0
        %v3606 = vpop.trf.xlu0
        %v3607 = vpop.trf.xlu0
        %3608 = vxpose.xlu0.c.b16.start [1/8] %v2835, 128
        %3609 = vxpose.xlu0.c.b16.cont [2/8] 0, 128
        %3610 = vxpose.xlu0.c.b16.cont [3/8] 0, 128
        %3611 = vxpose.xlu0.c.b16.cont [4/8] 0, 128
        %3612 = vxpose.xlu0.c.b16.cont [5/8] 0, 128
        %3613 = vxpose.xlu0.c.b16.cont [6/8] 0, 128
        %3614 = vxpose.xlu0.c.b16.cont [7/8] 0, 128
        %3615 = vxpose.xlu0.c.b16.end [8/8] 0, 128
        %v3616 = vpop.trf.xlu0
        %v3617 = vpop.trf.xlu0
        %v3618 = vpop.trf.xlu0
        %v3619 = vpop.trf.xlu0
        %v3620 = vpop.trf.xlu0
        %v3621 = vpop.trf.xlu0
        %v3622 = vpop.trf.xlu0
        %v3623 = vpop.trf.xlu0
        %3624 = vxpose.xlu0.c.b16.start [1/8] %v2836, 128
        %3625 = vxpose.xlu0.c.b16.cont [2/8] 0, 128
        %3626 = vxpose.xlu0.c.b16.cont [3/8] 0, 128
        %3627 = vxpose.xlu0.c.b16.cont [4/8] 0, 128
        %3628 = vxpose.xlu0.c.b16.cont [5/8] 0, 128
        %3629 = vxpose.xlu0.c.b16.cont [6/8] 0, 128
        %3630 = vxpose.xlu0.c.b16.cont [7/8] 0, 128
        %3631 = vxpose.xlu0.c.b16.end [8/8] 0, 128
        %v3632 = vpop.trf.xlu0
        %v3633 = vpop.trf.xlu0
        %v3634 = vpop.trf.xlu0
        %v3635 = vpop.trf.xlu0
        %v3636 = vpop.trf.xlu0
        %v3637 = vpop.trf.xlu0
        %v3638 = vpop.trf.xlu0
        %v3639 = vpop.trf.xlu0
        %3640 = vxpose.xlu0.c.b16.start [1/8] %v2837, 128
        %3641 = vxpose.xlu0.c.b16.cont [2/8] 0, 128
        %3642 = vxpose.xlu0.c.b16.cont [3/8] 0, 128
        %3643 = vxpose.xlu0.c.b16.cont [4/8] 0, 128
        %3644 = vxpose.xlu0.c.b16.cont [5/8] 0, 128
        %3645 = vxpose.xlu0.c.b16.cont [6/8] 0, 128
        %3646 = vxpose.xlu0.c.b16.cont [7/8] 0, 128
        %3647 = vxpose.xlu0.c.b16.end [8/8] 0, 128
        %v3648 = vpop.trf.xlu0
        %v3649 = vpop.trf.xlu0
        %v3650 = vpop.trf.xlu0
        %v3651 = vpop.trf.xlu0
        %v3652 = vpop.trf.xlu0
        %v3653 = vpop.trf.xlu0
        %v3654 = vpop.trf.xlu0
        %v3655 = vpop.trf.xlu0
        %3656 = vxpose.xlu0.c.b16.start [1/8] %v2838, 128
        %3657 = vxpose.xlu0.c.b16.cont [2/8] 0, 128
        %3658 = vxpose.xlu0.c.b16.cont [3/8] 0, 128
        %3659 = vxpose.xlu0.c.b16.cont [4/8] 0, 128
        %3660 = vxpose.xlu0.c.b16.cont [5/8] 0, 128
        %3661 = vxpose.xlu0.c.b16.cont [6/8] 0, 128
        %3662 = vxpose.xlu0.c.b16.cont [7/8] 0, 128
        %3663 = vxpose.xlu0.c.b16.end [8/8] 0, 128
        %v3664 = vpop.trf.xlu0
        %v3665 = vpop.trf.xlu0
        %v3666 = vpop.trf.xlu0
        %v3667 = vpop.trf.xlu0
        %v3668 = vpop.trf.xlu0
        %v3669 = vpop.trf.xlu0
        %v3670 = vpop.trf.xlu0
        %v3671 = vpop.trf.xlu0
        %3672 = vxpose.xlu0.c.b16.start [1/8] %v2839, 128
        %3673 = vxpose.xlu0.c.b16.cont [2/8] 0, 128
        %3674 = vxpose.xlu0.c.b16.cont [3/8] 0, 128
        %3675 = vxpose.xlu0.c.b16.cont [4/8] 0, 128
        %3676 = vxpose.xlu0.c.b16.cont [5/8] 0, 128
        %3677 = vxpose.xlu0.c.b16.cont [6/8] 0, 128
        %3678 = vxpose.xlu0.c.b16.cont [7/8] 0, 128
        %3679 = vxpose.xlu0.c.b16.end [8/8] 0, 128
        %v3680 = vpop.trf.xlu0
        %v3681 = vpop.trf.xlu0
        %v3682 = vpop.trf.xlu0
        %v3683 = vpop.trf.xlu0
        %v3684 = vpop.trf.xlu0
        %v3685 = vpop.trf.xlu0
        %v3686 = vpop.trf.xlu0
        %v3687 = vpop.trf.xlu0
        %v3688 = vcombine.low %v3568, %v3632
        %v3690 = vunpack.c.l.s4 1983009808
        %v3691 = vunpack.c.0.s8 %v3690
        %v3692 = vlaneseq
        %v3693 = vshrl.u32 %v3692, 7
        %v3694 = vsub.s32 %v3691, %v3693
        %v3695 = vrot.slane %v3688, %v3694
        %v3696 = vcombine.low %v3600, %v3664
        %v3698 = vunpack.c.l.s4 1983009808
        %v3699 = vunpack.c.0.s8 %v3698
        %v3700 = vlaneseq
        %v3701 = vshrl.u32 %v3700, 7
        %v3702 = vsub.s32 %v3699, %v3701
        %v3703 = vrot.slane %v3696, %v3702
        %v3704 = vcombine.low %v3695, %v3703
        %v3705 = vcombine.high %v3695, %v3703
        %v3707 = vunpack.c.l.s4 1934713408
        %v3708 = vunpack.c.0.s8 %v3707
        %v3709 = vlaneseq
        %v3710 = vshrl.u32 %v3709, 7
        %v3711 = vsub.s32 %v3708, %v3710
        %v3712 = vrot.slane %v3704, %v3711
        %v3714 = vunpack.c.l.s4 1934713408
        %v3715 = vunpack.c.0.s8 %v3714
        %v3716 = vlaneseq
        %v3717 = vshrl.u32 %v3716, 7
        %v3718 = vsub.s32 %v3715, %v3717
        %v3719 = vrot.slane %v3705, %v3718
        %v3720 = vcombine.high %v3712, 0
        %v3721 = vcombine.high %v3719, 0
        %v3722 = vcombine.low %v3584, %v3648
        %v3724 = vunpack.c.l.s4 1983009808
        %v3725 = vunpack.c.0.s8 %v3724
        %v3726 = vlaneseq
        %v3727 = vshrl.u32 %v3726, 7
        %v3728 = vsub.s32 %v3725, %v3727
        %v3729 = vrot.slane %v3722, %v3728
        %v3730 = vcombine.low %v3616, %v3680
        %v3732 = vunpack.c.l.s4 1983009808
        %v3733 = vunpack.c.0.s8 %v3732
        %v3734 = vlaneseq
        %v3735 = vshrl.u32 %v3734, 7
        %v3736 = vsub.s32 %v3733, %v3735
        %v3737 = vrot.slane %v3730, %v3736
        %v3738 = vcombine.low %v3729, %v3737
        %v3739 = vcombine.high %v3729, %v3737
        %v3741 = vunpack.c.l.s4 1934713408
        %v3742 = vunpack.c.0.s8 %v3741
        %v3743 = vlaneseq
        %v3744 = vshrl.u32 %v3743, 7
        %v3745 = vsub.s32 %v3742, %v3744
        %v3746 = vrot.slane %v3738, %v3745
        %v3748 = vunpack.c.l.s4 1934713408
        %v3749 = vunpack.c.0.s8 %v3748
        %v3750 = vlaneseq
        %v3751 = vshrl.u32 %v3750, 7
        %v3752 = vsub.s32 %v3749, %v3751
        %v3753 = vrot.slane %v3739, %v3752
        %v3754 = vcombine.high %v3746, 0
        %v3755 = vcombine.high %v3753, 0
        %v3758 = vpack.i.b16 %v3746, %v3712
        %v3760 = vshrl.u32 %v3712, 16
        %v3761 = vshrl.u32 %v3746, 16
        %v3762 = vpack.i.b16 %v3761, %v3760
        %v3766 = vpack.i.b16 %v3754, %v3720
        %v3768 = vshrl.u32 %v3720, 16
        %v3769 = vshrl.u32 %v3754, 16
        %v3770 = vpack.i.b16 %v3769, %v3768
        %v3774 = vpack.i.b16 %v3753, %v3719
        %v3776 = vshrl.u32 %v3719, 16
        %v3777 = vshrl.u32 %v3753, 16
        %v3778 = vpack.i.b16 %v3777, %v3776
        %v3782 = vpack.i.b16 %v3755, %v3721
        %v3784 = vshrl.u32 %v3721, 16
        %v3785 = vshrl.u32 %v3755, 16
        %v3786 = vpack.i.b16 %v3785, %v3784
        %3788 = vxpose.xlu0.c.b16.start [1/8] %v3758, 128
        %3789 = vxpose.xlu0.c.b16.cont [2/8] 0, 128
        %3790 = vxpose.xlu0.c.b16.cont [3/8] 0, 128
        %3791 = vxpose.xlu0.c.b16.cont [4/8] 0, 128
        %3792 = vxpose.xlu0.c.b16.cont [5/8] 0, 128
        %3793 = vxpose.xlu0.c.b16.cont [6/8] 0, 128
        %3794 = vxpose.xlu0.c.b16.cont [7/8] 0, 128
        %3795 = vxpose.xlu0.c.b16.end [8/8] 0, 128
        %v3796 = vpop.trf.xlu0
        %v3797 = vpop.trf.xlu0
        %v3798 = vpop.trf.xlu0
        %v3799 = vpop.trf.xlu0
        %v3800 = vpop.trf.xlu0
        %v3801 = vpop.trf.xlu0
        %v3802 = vpop.trf.xlu0
        %v3803 = vpop.trf.xlu0
        %3804 = vxpose.xlu0.c.b16.start [1/8] %v3762, 128
        %3805 = vxpose.xlu0.c.b16.cont [2/8] 0, 128
        %3806 = vxpose.xlu0.c.b16.cont [3/8] 0, 128
        %3807 = vxpose.xlu0.c.b16.cont [4/8] 0, 128
        %3808 = vxpose.xlu0.c.b16.cont [5/8] 0, 128
        %3809 = vxpose.xlu0.c.b16.cont [6/8] 0, 128
        %3810 = vxpose.xlu0.c.b16.cont [7/8] 0, 128
        %3811 = vxpose.xlu0.c.b16.end [8/8] 0, 128
        %v3812 = vpop.trf.xlu0
        %v3813 = vpop.trf.xlu0
        %v3814 = vpop.trf.xlu0
        %v3815 = vpop.trf.xlu0
        %v3816 = vpop.trf.xlu0
        %v3817 = vpop.trf.xlu0
        %v3818 = vpop.trf.xlu0
        %v3819 = vpop.trf.xlu0
        %3820 = vxpose.xlu0.c.b16.start [1/8] %v3766, 128
        %3821 = vxpose.xlu0.c.b16.cont [2/8] 0, 128
        %3822 = vxpose.xlu0.c.b16.cont [3/8] 0, 128
        %3823 = vxpose.xlu0.c.b16.cont [4/8] 0, 128
        %3824 = vxpose.xlu0.c.b16.cont [5/8] 0, 128
        %3825 = vxpose.xlu0.c.b16.cont [6/8] 0, 128
        %3826 = vxpose.xlu0.c.b16.cont [7/8] 0, 128
        %3827 = vxpose.xlu0.c.b16.end [8/8] 0, 128
        %v3828 = vpop.trf.xlu0
        %v3829 = vpop.trf.xlu0
        %v3830 = vpop.trf.xlu0
        %v3831 = vpop.trf.xlu0
        %v3832 = vpop.trf.xlu0
        %v3833 = vpop.trf.xlu0
        %v3834 = vpop.trf.xlu0
        %v3835 = vpop.trf.xlu0
        %3836 = vxpose.xlu0.c.b16.start [1/8] %v3770, 128
        %3837 = vxpose.xlu0.c.b16.cont [2/8] 0, 128
        %3838 = vxpose.xlu0.c.b16.cont [3/8] 0, 128
        %3839 = vxpose.xlu0.c.b16.cont [4/8] 0, 128
        %3840 = vxpose.xlu0.c.b16.cont [5/8] 0, 128
        %3841 = vxpose.xlu0.c.b16.cont [6/8] 0, 128
        %3842 = vxpose.xlu0.c.b16.cont [7/8] 0, 128
        %3843 = vxpose.xlu0.c.b16.end [8/8] 0, 128
        %v3844 = vpop.trf.xlu0
        %v3845 = vpop.trf.xlu0
        %v3846 = vpop.trf.xlu0
        %v3847 = vpop.trf.xlu0
        %v3848 = vpop.trf.xlu0
        %v3849 = vpop.trf.xlu0
        %v3850 = vpop.trf.xlu0
        %v3851 = vpop.trf.xlu0
        %3852 = vxpose.xlu0.c.b16.start [1/8] %v3774, 128
        %3853 = vxpose.xlu0.c.b16.cont [2/8] 0, 128
        %3854 = vxpose.xlu0.c.b16.cont [3/8] 0, 128
        %3855 = vxpose.xlu0.c.b16.cont [4/8] 0, 128
        %3856 = vxpose.xlu0.c.b16.cont [5/8] 0, 128
        %3857 = vxpose.xlu0.c.b16.cont [6/8] 0, 128
        %3858 = vxpose.xlu0.c.b16.cont [7/8] 0, 128
        %3859 = vxpose.xlu0.c.b16.end [8/8] 0, 128
        %v3860 = vpop.trf.xlu0
        %v3861 = vpop.trf.xlu0
        %v3862 = vpop.trf.xlu0
        %v3863 = vpop.trf.xlu0
        %v3864 = vpop.trf.xlu0
        %v3865 = vpop.trf.xlu0
        %v3866 = vpop.trf.xlu0
        %v3867 = vpop.trf.xlu0
        %3868 = vxpose.xlu0.c.b16.start [1/8] %v3778, 128
        %3869 = vxpose.xlu0.c.b16.cont [2/8] 0, 128
        %3870 = vxpose.xlu0.c.b16.cont [3/8] 0, 128
        %3871 = vxpose.xlu0.c.b16.cont [4/8] 0, 128
        %3872 = vxpose.xlu0.c.b16.cont [5/8] 0, 128
        %3873 = vxpose.xlu0.c.b16.cont [6/8] 0, 128
        %3874 = vxpose.xlu0.c.b16.cont [7/8] 0, 128
        %3875 = vxpose.xlu0.c.b16.end [8/8] 0, 128
        %v3876 = vpop.trf.xlu0
        %v3877 = vpop.trf.xlu0
        %v3878 = vpop.trf.xlu0
        %v3879 = vpop.trf.xlu0
        %v3880 = vpop.trf.xlu0
        %v3881 = vpop.trf.xlu0
        %v3882 = vpop.trf.xlu0
        %v3883 = vpop.trf.xlu0
        %3884 = vxpose.xlu0.c.b16.start [1/8] %v3782, 128
        %3885 = vxpose.xlu0.c.b16.cont [2/8] 0, 128
        %3886 = vxpose.xlu0.c.b16.cont [3/8] 0, 128
        %3887 = vxpose.xlu0.c.b16.cont [4/8] 0, 128
        %3888 = vxpose.xlu0.c.b16.cont [5/8] 0, 128
        %3889 = vxpose.xlu0.c.b16.cont [6/8] 0, 128
        %3890 = vxpose.xlu0.c.b16.cont [7/8] 0, 128
        %3891 = vxpose.xlu0.c.b16.end [8/8] 0, 128
        %v3892 = vpop.trf.xlu0
        %v3893 = vpop.trf.xlu0
        %v3894 = vpop.trf.xlu0
        %v3895 = vpop.trf.xlu0
        %v3896 = vpop.trf.xlu0
        %v3897 = vpop.trf.xlu0
        %v3898 = vpop.trf.xlu0
        %v3899 = vpop.trf.xlu0
        %3900 = vxpose.xlu0.c.b16.start [1/8] %v3786, 128
        %3901 = vxpose.xlu0.c.b16.cont [2/8] 0, 128
        %3902 = vxpose.xlu0.c.b16.cont [3/8] 0, 128
        %3903 = vxpose.xlu0.c.b16.cont [4/8] 0, 128
        %3904 = vxpose.xlu0.c.b16.cont [5/8] 0, 128
        %3905 = vxpose.xlu0.c.b16.cont [6/8] 0, 128
        %3906 = vxpose.xlu0.c.b16.cont [7/8] 0, 128
        %3907 = vxpose.xlu0.c.b16.end [8/8] 0, 128
        %v3908 = vpop.trf.xlu0
        %v3909 = vpop.trf.xlu0
        %v3910 = vpop.trf.xlu0
        %v3911 = vpop.trf.xlu0
        %v3912 = vpop.trf.xlu0
        %v3913 = vpop.trf.xlu0
        %v3914 = vpop.trf.xlu0
        %v3915 = vpop.trf.xlu0
        %v3916 = vcombine.low %v3796, %v3860
        %v3918 = vunpack.c.l.s4 1983009808
        %v3919 = vunpack.c.0.s8 %v3918
        %v3920 = vlaneseq
        %v3921 = vshrl.u32 %v3920, 7
        %v3922 = vsub.s32 %v3919, %v3921
        %v3923 = vrot.slane %v3916, %v3922
        %v3924 = vcombine.low %v3828, %v3892
        %v3926 = vunpack.c.l.s4 1983009808
        %v3927 = vunpack.c.0.s8 %v3926
        %v3928 = vlaneseq
        %v3929 = vshrl.u32 %v3928, 7
        %v3930 = vsub.s32 %v3927, %v3929
        %v3931 = vrot.slane %v3924, %v3930
        %v3932 = vcombine.low %v3923, %v3931
        %v3934 = vunpack.c.l.s4 1934713408
        %v3935 = vunpack.c.0.s8 %v3934
        %v3936 = vlaneseq
        %v3937 = vshrl.u32 %v3936, 7
        %v3938 = vsub.s32 %v3935, %v3937
        %v3939 = vrot.slane %v3932, %v3938
        %v3940 = vcombine.high %v3939, 0
        %v3941 = vcombine.low %v3812, %v3876
        %v3943 = vunpack.c.l.s4 1983009808
        %v3944 = vunpack.c.0.s8 %v3943
        %v3945 = vlaneseq
        %v3946 = vshrl.u32 %v3945, 7
        %v3947 = vsub.s32 %v3944, %v3946
        %v3948 = vrot.slane %v3941, %v3947
        %v3949 = vcombine.low %v3844, %v3908
        %v3951 = vunpack.c.l.s4 1983009808
        %v3952 = vunpack.c.0.s8 %v3951
        %v3953 = vlaneseq
        %v3954 = vshrl.u32 %v3953, 7
        %v3955 = vsub.s32 %v3952, %v3954
        %v3956 = vrot.slane %v3949, %v3955
        %v3957 = vcombine.low %v3948, %v3956
        %v3959 = vunpack.c.l.s4 1934713408
        %v3960 = vunpack.c.0.s8 %v3959
        %v3961 = vlaneseq
        %v3962 = vshrl.u32 %v3961, 7
        %v3963 = vsub.s32 %v3960, %v3962
        %v3964 = vrot.slane %v3957, %v3963
        %v3965 = vcombine.high %v3964, 0
        %v3968 = vpack.i.b16 %v3964, %v3939
        %v3969 = vshrl.u32 %v3939, 16
        %v3970 = vshrl.u32 %v3964, 16
        %v3971 = vpack.i.b16 %v3970, %v3969
        %v3974 = vpack.i.b16 %v3965, %v3940
        %v3975 = vshrl.u32 %v3940, 16
        %v3976 = vshrl.u32 %v3965, 16
        %v3977 = vpack.i.b16 %v3976, %v3975
        %v3979 = vsel %vm1132, %v3968, 0
        %v3982 = vsel %vm1132, %v3556, 0
        %3984 = vmatprep.subr.bf16.mxu0 0
        %3985 = vmatpush1.bf16.xpose.msra.mxu0 %v3982
        %3986 = vmatprep.subr.bf16.mxu0 0
        %3987 = vmatpush1.bf16.xpose.msra.mxu0 0
        %3988 = vmatprep.subr.bf16.mxu0 0
        %3989 = vmatpush1.bf16.xpose.msra.mxu0 0
        %3990 = vmatprep.subr.bf16.mxu0 0
        %3991 = vmatpush1.bf16.xpose.msra.mxu0 0
        %3992 = vmatprep.subr.bf16.mxu0 0
        %3993 = vmatpush1.bf16.xpose.msra.mxu0 0
        %3994 = vmatprep.subr.bf16.mxu0 0
        %3995 = vmatpush1.bf16.xpose.msra.mxu0 0
        %3996 = vmatprep.subr.bf16.mxu0 0
        %3997 = vmatpush1.bf16.xpose.msra.mxu0 0
        %3998 = vmatprep.subr.bf16.mxu0 0
        %3999 = vmatpush1.bf16.xpose.msra.mxu0 0
        %4000 = vmatprep.subr.bf16.mxu0 0
        %4001 = vmatpush1.bf16.xpose.msra.mxu0 0
        %4002 = vmatprep.subr.bf16.mxu0 0
        %4003 = vmatpush1.bf16.xpose.msra.mxu0 0
        %4004 = vmatprep.subr.bf16.mxu0 0
        %4005 = vmatpush1.bf16.xpose.msra.mxu0 0
        %4006 = vmatprep.subr.bf16.mxu0 0
        %4007 = vmatpush1.bf16.xpose.msra.mxu0 0
        %4008 = vmatprep.subr.bf16.mxu0 0
        %4009 = vmatpush1.bf16.xpose.msra.mxu0 0
        %4010 = vmatprep.subr.bf16.mxu0 0
        %4011 = vmatpush1.bf16.xpose.msra.mxu0 0
        %4012 = vmatprep.subr.bf16.mxu0 0
        %4013 = vmatpush1.bf16.xpose.msra.mxu0 0
        %4014 = vmatprep.subr.bf16.mxu0 0
        %4015 = vmatpush1.bf16.xpose.msra.mxu0 0
        %4016 = vmatprep.mubr.bf16.mxu0 0
        %4017 = vmatmul.mubr.bf16.gmra.mrb[0].mxu0 %v3979
        %v4018 = vpop.f32.mrb[0].mxu0
        %v4019 = vadd.f32 0.0, %v4018
        %v4020 = vpop.f32.mrb[0].mxu0
        %v4021 = vpop.f32.mrb[0].mxu0
        %v4022 = vpop.f32.mrb[0].mxu0
        %4023 = vdwg.mxu0
        %v4025 = vsel %vm1132, %v3971, 0
        %v4028 = vsel %vm1132, %v3557, 0
        %4030 = vmatprep.subr.bf16.mxu0 0
        %4031 = vmatpush1.bf16.xpose.msra.mxu0 %v4028
        %4032 = vmatprep.subr.bf16.mxu0 0
        %4033 = vmatpush1.bf16.xpose.msra.mxu0 0
        %4034 = vmatprep.subr.bf16.mxu0 0
        %4035 = vmatpush1.bf16.xpose.msra.mxu0 0
        %4036 = vmatprep.subr.bf16.mxu0 0
        %4037 = vmatpush1.bf16.xpose.msra.mxu0 0
        %4038 = vmatprep.subr.bf16.mxu0 0
        %4039 = vmatpush1.bf16.xpose.msra.mxu0 0
        %4040 = vmatprep.subr.bf16.mxu0 0
        %4041 = vmatpush1.bf16.xpose.msra.mxu0 0
        %4042 = vmatprep.subr.bf16.mxu0 0
        %4043 = vmatpush1.bf16.xpose.msra.mxu0 0
        %4044 = vmatprep.subr.bf16.mxu0 0
        %4045 = vmatpush1.bf16.xpose.msra.mxu0 0
        %4046 = vmatprep.subr.bf16.mxu0 0
        %4047 = vmatpush1.bf16.xpose.msra.mxu0 0
        %4048 = vmatprep.subr.bf16.mxu0 0
        %4049 = vmatpush1.bf16.xpose.msra.mxu0 0
        %4050 = vmatprep.subr.bf16.mxu0 0
        %4051 = vmatpush1.bf16.xpose.msra.mxu0 0
        %4052 = vmatprep.subr.bf16.mxu0 0
        %4053 = vmatpush1.bf16.xpose.msra.mxu0 0
        %4054 = vmatprep.subr.bf16.mxu0 0
        %4055 = vmatpush1.bf16.xpose.msra.mxu0 0
        %4056 = vmatprep.subr.bf16.mxu0 0
        %4057 = vmatpush1.bf16.xpose.msra.mxu0 0
        %4058 = vmatprep.subr.bf16.mxu0 0
        %4059 = vmatpush1.bf16.xpose.msra.mxu0 0
        %4060 = vmatprep.subr.bf16.mxu0 0
        %4061 = vmatpush1.bf16.xpose.msra.mxu0 0
        %4062 = vmatprep.mubr.bf16.mxu0 0
        %4063 = vmatmul.mubr.bf16.gmra.mrb[0].mxu0 %v4025
        %v4064 = vpop.f32.mrb[0].mxu0
        %v4065 = vadd.f32 0.0, %v4064
        %v4066 = vpop.f32.mrb[0].mxu0
        %v4067 = vpop.f32.mrb[0].mxu0
        %v4068 = vpop.f32.mrb[0].mxu0
        %4069 = vdwg.mxu0
        %v4071 = vsel %vm1132, %v3974, 0
        %v4074 = vsel %vm1132, %v3558, 0
        %4076 = vmatprep.subr.bf16.mxu0 0
        %4077 = vmatpush1.bf16.xpose.msra.mxu0 %v4074
        %4078 = vmatprep.subr.bf16.mxu0 0
        %4079 = vmatpush1.bf16.xpose.msra.mxu0 0
        %4080 = vmatprep.subr.bf16.mxu0 0
        %4081 = vmatpush1.bf16.xpose.msra.mxu0 0
        %4082 = vmatprep.subr.bf16.mxu0 0
        %4083 = vmatpush1.bf16.xpose.msra.mxu0 0
        %4084 = vmatprep.subr.bf16.mxu0 0
        %4085 = vmatpush1.bf16.xpose.msra.mxu0 0
        %4086 = vmatprep.subr.bf16.mxu0 0
        %4087 = vmatpush1.bf16.xpose.msra.mxu0 0
        %4088 = vmatprep.subr.bf16.mxu0 0
        %4089 = vmatpush1.bf16.xpose.msra.mxu0 0
        %4090 = vmatprep.subr.bf16.mxu0 0
        %4091 = vmatpush1.bf16.xpose.msra.mxu0 0
        %4092 = vmatprep.subr.bf16.mxu0 0
        %4093 = vmatpush1.bf16.xpose.msra.mxu0 0
        %4094 = vmatprep.subr.bf16.mxu0 0
        %4095 = vmatpush1.bf16.xpose.msra.mxu0 0
        %4096 = vmatprep.subr.bf16.mxu0 0
        %4097 = vmatpush1.bf16.xpose.msra.mxu0 0
        %4098 = vmatprep.subr.bf16.mxu0 0
        %4099 = vmatpush1.bf16.xpose.msra.mxu0 0
        %4100 = vmatprep.subr.bf16.mxu0 0
        %4101 = vmatpush1.bf16.xpose.msra.mxu0 0
        %4102 = vmatprep.subr.bf16.mxu0 0
        %4103 = vmatpush1.bf16.xpose.msra.mxu0 0
        %4104 = vmatprep.subr.bf16.mxu0 0
        %4105 = vmatpush1.bf16.xpose.msra.mxu0 0
        %4106 = vmatprep.subr.bf16.mxu0 0
        %4107 = vmatpush1.bf16.xpose.msra.mxu0 0
        %4108 = vmatprep.mubr.bf16.mxu0 0
        %4109 = vmatmul.mubr.bf16.gmra.mrb[0].mxu0 %v4071
        %v4110 = vpop.f32.mrb[0].mxu0
        %v4111 = vadd.f32 0.0, %v4110
        %v4112 = vpop.f32.mrb[0].mxu0
        %v4113 = vpop.f32.mrb[0].mxu0
        %v4114 = vpop.f32.mrb[0].mxu0
        %4115 = vdwg.mxu0
        %v4117 = vsel %vm1132, %v3977, 0
        %v4120 = vsel %vm1132, %v3559, 0
        %4122 = vmatprep.subr.bf16.mxu0 0
        %4123 = vmatpush1.bf16.xpose.msra.mxu0 %v4120
        %4124 = vmatprep.subr.bf16.mxu0 0
        %4125 = vmatpush1.bf16.xpose.msra.mxu0 0
        %4126 = vmatprep.subr.bf16.mxu0 0
        %4127 = vmatpush1.bf16.xpose.msra.mxu0 0
        %4128 = vmatprep.subr.bf16.mxu0 0
        %4129 = vmatpush1.bf16.xpose.msra.mxu0 0
        %4130 = vmatprep.subr.bf16.mxu0 0
        %4131 = vmatpush1.bf16.xpose.msra.mxu0 0
        %4132 = vmatprep.subr.bf16.mxu0 0
        %4133 = vmatpush1.bf16.xpose.msra.mxu0 0
        %4134 = vmatprep.subr.bf16.mxu0 0
        %4135 = vmatpush1.bf16.xpose.msra.mxu0 0
        %4136 = vmatprep.subr.bf16.mxu0 0
        %4137 = vmatpush1.bf16.xpose.msra.mxu0 0
        %4138 = vmatprep.subr.bf16.mxu0 0
        %4139 = vmatpush1.bf16.xpose.msra.mxu0 0
        %4140 = vmatprep.subr.bf16.mxu0 0
        %4141 = vmatpush1.bf16.xpose.msra.mxu0 0
        %4142 = vmatprep.subr.bf16.mxu0 0
        %4143 = vmatpush1.bf16.xpose.msra.mxu0 0
        %4144 = vmatprep.subr.bf16.mxu0 0
        %4145 = vmatpush1.bf16.xpose.msra.mxu0 0
        %4146 = vmatprep.subr.bf16.mxu0 0
        %4147 = vmatpush1.bf16.xpose.msra.mxu0 0
        %4148 = vmatprep.subr.bf16.mxu0 0
        %4149 = vmatpush1.bf16.xpose.msra.mxu0 0
        %4150 = vmatprep.subr.bf16.mxu0 0
        %4151 = vmatpush1.bf16.xpose.msra.mxu0 0
        %4152 = vmatprep.subr.bf16.mxu0 0
        %4153 = vmatpush1.bf16.xpose.msra.mxu0 0
        %4154 = vmatprep.mubr.bf16.mxu0 0
        %4155 = vmatmul.mubr.bf16.gmra.mrb[0].mxu0 %v4117
        %v4156 = vpop.f32.mrb[0].mxu0
        %v4157 = vadd.f32 0.0, %v4156
        %v4158 = vpop.f32.mrb[0].mxu0
        %v4159 = vpop.f32.mrb[0].mxu0
        %v4160 = vpop.f32.mrb[0].mxu0
        %4161 = vdwg.mxu0
        %4162 = vxpose.xlu0.b32.start [1/16] %v4019, 128
        %4163 = vxpose.xlu0.b32.cont [2/16] 0.0, 128
        %4164 = vxpose.xlu0.b32.cont [3/16] 0.0, 128
        %4165 = vxpose.xlu0.b32.cont [4/16] 0.0, 128
        %4166 = vxpose.xlu0.b32.cont [5/16] 0.0, 128
        %4167 = vxpose.xlu0.b32.cont [6/16] 0.0, 128
        %4168 = vxpose.xlu0.b32.cont [7/16] 0.0, 128
        %4169 = vxpose.xlu0.b32.cont [8/16] 0.0, 128
        %4170 = vxpose.xlu0.b32.cont [9/16] 0.0, 128
        %4171 = vxpose.xlu0.b32.cont [10/16] 0.0, 128
        %4172 = vxpose.xlu0.b32.cont [11/16] 0.0, 128
        %4173 = vxpose.xlu0.b32.cont [12/16] 0.0, 128
        %4174 = vxpose.xlu0.b32.cont [13/16] 0.0, 128
        %4175 = vxpose.xlu0.b32.cont [14/16] 0.0, 128
        %4176 = vxpose.xlu0.b32.cont [15/16] 0.0, 128
        %4177 = vxpose.xlu0.b32.end [16/16] 0.0, 128
        %v4178 = vpop.trf.xlu0
        %v4179 = vpop.trf.xlu0
        %v4180 = vpop.trf.xlu0
        %v4181 = vpop.trf.xlu0
        %v4182 = vpop.trf.xlu0
        %v4183 = vpop.trf.xlu0
        %v4184 = vpop.trf.xlu0
        %v4185 = vpop.trf.xlu0
        %v4186 = vpop.trf.xlu0
        %v4187 = vpop.trf.xlu0
        %v4188 = vpop.trf.xlu0
        %v4189 = vpop.trf.xlu0
        %v4190 = vpop.trf.xlu0
        %v4191 = vpop.trf.xlu0
        %v4192 = vpop.trf.xlu0
        %v4193 = vpop.trf.xlu0
        %4194 = vxpose.xlu0.b32.start [1/16] %v4065, 128
        %4195 = vxpose.xlu0.b32.cont [2/16] 0.0, 128
        %4196 = vxpose.xlu0.b32.cont [3/16] 0.0, 128
        %4197 = vxpose.xlu0.b32.cont [4/16] 0.0, 128
        %4198 = vxpose.xlu0.b32.cont [5/16] 0.0, 128
        %4199 = vxpose.xlu0.b32.cont [6/16] 0.0, 128
        %4200 = vxpose.xlu0.b32.cont [7/16] 0.0, 128
        %4201 = vxpose.xlu0.b32.cont [8/16] 0.0, 128
        %4202 = vxpose.xlu0.b32.cont [9/16] 0.0, 128
        %4203 = vxpose.xlu0.b32.cont [10/16] 0.0, 128
        %4204 = vxpose.xlu0.b32.cont [11/16] 0.0, 128
        %4205 = vxpose.xlu0.b32.cont [12/16] 0.0, 128
        %4206 = vxpose.xlu0.b32.cont [13/16] 0.0, 128
        %4207 = vxpose.xlu0.b32.cont [14/16] 0.0, 128
        %4208 = vxpose.xlu0.b32.cont [15/16] 0.0, 128
        %4209 = vxpose.xlu0.b32.end [16/16] 0.0, 128
        %v4210 = vpop.trf.xlu0
        %v4211 = vpop.trf.xlu0
        %v4212 = vpop.trf.xlu0
        %v4213 = vpop.trf.xlu0
        %v4214 = vpop.trf.xlu0
        %v4215 = vpop.trf.xlu0
        %v4216 = vpop.trf.xlu0
        %v4217 = vpop.trf.xlu0
        %v4218 = vpop.trf.xlu0
        %v4219 = vpop.trf.xlu0
        %v4220 = vpop.trf.xlu0
        %v4221 = vpop.trf.xlu0
        %v4222 = vpop.trf.xlu0
        %v4223 = vpop.trf.xlu0
        %v4224 = vpop.trf.xlu0
        %v4225 = vpop.trf.xlu0
        %4226 = vxpose.xlu0.b32.start [1/16] %v4111, 128
        %4227 = vxpose.xlu0.b32.cont [2/16] 0.0, 128
        %4228 = vxpose.xlu0.b32.cont [3/16] 0.0, 128
        %4229 = vxpose.xlu0.b32.cont [4/16] 0.0, 128
        %4230 = vxpose.xlu0.b32.cont [5/16] 0.0, 128
        %4231 = vxpose.xlu0.b32.cont [6/16] 0.0, 128
        %4232 = vxpose.xlu0.b32.cont [7/16] 0.0, 128
        %4233 = vxpose.xlu0.b32.cont [8/16] 0.0, 128
        %4234 = vxpose.xlu0.b32.cont [9/16] 0.0, 128
        %4235 = vxpose.xlu0.b32.cont [10/16] 0.0, 128
        %4236 = vxpose.xlu0.b32.cont [11/16] 0.0, 128
        %4237 = vxpose.xlu0.b32.cont [12/16] 0.0, 128
        %4238 = vxpose.xlu0.b32.cont [13/16] 0.0, 128
        %4239 = vxpose.xlu0.b32.cont [14/16] 0.0, 128
        %4240 = vxpose.xlu0.b32.cont [15/16] 0.0, 128
        %4241 = vxpose.xlu0.b32.end [16/16] 0.0, 128
        %v4242 = vpop.trf.xlu0
        %v4243 = vpop.trf.xlu0
        %v4244 = vpop.trf.xlu0
        %v4245 = vpop.trf.xlu0
        %v4246 = vpop.trf.xlu0
        %v4247 = vpop.trf.xlu0
        %v4248 = vpop.trf.xlu0
        %v4249 = vpop.trf.xlu0
        %v4250 = vpop.trf.xlu0
        %v4251 = vpop.trf.xlu0
        %v4252 = vpop.trf.xlu0
        %v4253 = vpop.trf.xlu0
        %v4254 = vpop.trf.xlu0
        %v4255 = vpop.trf.xlu0
        %v4256 = vpop.trf.xlu0
        %v4257 = vpop.trf.xlu0
        %4258 = vxpose.xlu0.b32.start [1/16] %v4157, 128
        %4259 = vxpose.xlu0.b32.cont [2/16] 0.0, 128
        %4260 = vxpose.xlu0.b32.cont [3/16] 0.0, 128
        %4261 = vxpose.xlu0.b32.cont [4/16] 0.0, 128
        %4262 = vxpose.xlu0.b32.cont [5/16] 0.0, 128
        %4263 = vxpose.xlu0.b32.cont [6/16] 0.0, 128
        %4264 = vxpose.xlu0.b32.cont [7/16] 0.0, 128
        %4265 = vxpose.xlu0.b32.cont [8/16] 0.0, 128
        %4266 = vxpose.xlu0.b32.cont [9/16] 0.0, 128
        %4267 = vxpose.xlu0.b32.cont [10/16] 0.0, 128
        %4268 = vxpose.xlu0.b32.cont [11/16] 0.0, 128
        %4269 = vxpose.xlu0.b32.cont [12/16] 0.0, 128
        %4270 = vxpose.xlu0.b32.cont [13/16] 0.0, 128
        %4271 = vxpose.xlu0.b32.cont [14/16] 0.0, 128
        %4272 = vxpose.xlu0.b32.cont [15/16] 0.0, 128
        %4273 = vxpose.xlu0.b32.end [16/16] 0.0, 128
        %v4274 = vpop.trf.xlu0
        %v4275 = vpop.trf.xlu0
        %v4276 = vpop.trf.xlu0
        %v4277 = vpop.trf.xlu0
        %v4278 = vpop.trf.xlu0
        %v4279 = vpop.trf.xlu0
        %v4280 = vpop.trf.xlu0
        %v4281 = vpop.trf.xlu0
        %v4282 = vpop.trf.xlu0
        %v4283 = vpop.trf.xlu0
        %v4284 = vpop.trf.xlu0
        %v4285 = vpop.trf.xlu0
        %v4286 = vpop.trf.xlu0
        %v4287 = vpop.trf.xlu0
        %v4288 = vpop.trf.xlu0
        %v4289 = vpop.trf.xlu0
        %v4290 = vcombine.low %v4178, %v4242
        %v4291 = vcombine.high %v4178, %v4242
        %v4293 = vunpack.c.l.s4 1983009808
        %v4294 = vunpack.c.0.s8 %v4293
        %v4295 = vlaneseq
        %v4296 = vshrl.u32 %v4295, 7
        %v4297 = vsub.s32 %v4294, %v4296
        %v4298 = vrot.slane %v4290, %v4297
        %v4300 = vunpack.c.l.s4 1983009808
        %v4301 = vunpack.c.0.s8 %v4300
        %v4302 = vlaneseq
        %v4303 = vshrl.u32 %v4302, 7
        %v4304 = vsub.s32 %v4301, %v4303
        %v4305 = vrot.slane %v4291, %v4304
        %v4306 = vcombine.low %v4210, %v4274
        %v4307 = vcombine.high %v4210, %v4274
        %v4309 = vunpack.c.l.s4 1983009808
        %v4310 = vunpack.c.0.s8 %v4309
        %v4311 = vlaneseq
        %v4312 = vshrl.u32 %v4311, 7
        %v4313 = vsub.s32 %v4310, %v4312
        %v4314 = vrot.slane %v4306, %v4313
        %v4316 = vunpack.c.l.s4 1983009808
        %v4317 = vunpack.c.0.s8 %v4316
        %v4318 = vlaneseq
        %v4319 = vshrl.u32 %v4318, 7
        %v4320 = vsub.s32 %v4317, %v4319
        %v4321 = vrot.slane %v4307, %v4320
        %v4322 = vcombine.low %v4298, %v4314
        %v4323 = vcombine.high %v4298, %v4314
        %v4325 = vunpack.c.l.s4 1934713408
        %v4326 = vunpack.c.0.s8 %v4325
        %v4327 = vlaneseq
        %v4328 = vshrl.u32 %v4327, 7
        %v4329 = vsub.s32 %v4326, %v4328
        %v4330 = vrot.slane %v4322, %v4329
        %v4332 = vunpack.c.l.s4 1934713408
        %v4333 = vunpack.c.0.s8 %v4332
        %v4334 = vlaneseq
        %v4335 = vshrl.u32 %v4334, 7
        %v4336 = vsub.s32 %v4333, %v4335
        %v4337 = vrot.slane %v4323, %v4336
        %v4338 = vcombine.low %v4305, %v4321
        %v4339 = vcombine.high %v4305, %v4321
        %v4341 = vunpack.c.l.s4 1934713408
        %v4342 = vunpack.c.0.s8 %v4341
        %v4343 = vlaneseq
        %v4344 = vshrl.u32 %v4343, 7
        %v4345 = vsub.s32 %v4342, %v4344
        %v4346 = vrot.slane %v4338, %v4345
        %v4348 = vunpack.c.l.s4 1934713408
        %v4349 = vunpack.c.0.s8 %v4348
        %v4350 = vlaneseq
        %v4351 = vshrl.u32 %v4350, 7
        %v4352 = vsub.s32 %v4349, %v4351
        %v4353 = vrot.slane %v4339, %v4352
        %v4354 = vcombine.high %v4330, 0.0
        %v4355 = vcombine.high %v4337, 0.0
        %v4356 = vcombine.high %v4346, 0.0
        %v4357 = vcombine.high %v4353, 0.0
        %v4358 = vcombine.low %v4330, %v4337
        %v4360 = vunpack.c.l.s4 1983009808
        %v4361 = vunpack.c.0.s8 %v4360
        %v4362 = vlaneseq
        %v4363 = vshrl.u32 %v4362, 7
        %v4364 = vsub.s32 %v4361, %v4363
        %v4365 = vrot.slane %v4358, %v4364
        %v4366 = vcombine.low %v4354, %v4355
        %v4368 = vunpack.c.l.s4 1983009808
        %v4369 = vunpack.c.0.s8 %v4368
        %v4370 = vlaneseq
        %v4371 = vshrl.u32 %v4370, 7
        %v4372 = vsub.s32 %v4369, %v4371
        %v4373 = vrot.slane %v4366, %v4372
        %v4374 = vcombine.low %v4346, %v4353
        %v4376 = vunpack.c.l.s4 1983009808
        %v4377 = vunpack.c.0.s8 %v4376
        %v4378 = vlaneseq
        %v4379 = vshrl.u32 %v4378, 7
        %v4380 = vsub.s32 %v4377, %v4379
        %v4381 = vrot.slane %v4374, %v4380
        %v4382 = vcombine.low %v4356, %v4357
        %v4384 = vunpack.c.l.s4 1983009808
        %v4385 = vunpack.c.0.s8 %v4384
        %v4386 = vlaneseq
        %v4387 = vshrl.u32 %v4386, 7
        %v4388 = vsub.s32 %v4385, %v4387
        %v4389 = vrot.slane %v4382, %v4388
        %v4390 = vcombine.low %v4365, %v4373
        %v4391 = vcombine.high %v4365, %v4373
        %v4393 = vunpack.c.l.s4 1934713408
        %v4394 = vunpack.c.0.s8 %v4393
        %v4395 = vlaneseq
        %v4396 = vshrl.u32 %v4395, 7
        %v4397 = vsub.s32 %v4394, %v4396
        %v4398 = vrot.slane %v4390, %v4397
        %v4400 = vunpack.c.l.s4 1934713408
        %v4401 = vunpack.c.0.s8 %v4400
        %v4402 = vlaneseq
        %v4403 = vshrl.u32 %v4402, 7
        %v4404 = vsub.s32 %v4401, %v4403
        %v4405 = vrot.slane %v4391, %v4404
        %v4406 = vcombine.low %v4381, %v4389
        %v4407 = vcombine.high %v4381, %v4389
        %v4409 = vunpack.c.l.s4 1934713408
        %v4410 = vunpack.c.0.s8 %v4409
        %v4411 = vlaneseq
        %v4412 = vshrl.u32 %v4411, 7
        %v4413 = vsub.s32 %v4410, %v4412
        %v4414 = vrot.slane %v4406, %v4413
        %v4416 = vunpack.c.l.s4 1934713408
        %v4417 = vunpack.c.0.s8 %v4416
        %v4418 = vlaneseq
        %v4419 = vshrl.u32 %v4418, 7
        %v4420 = vsub.s32 %v4417, %v4419
        %v4421 = vrot.slane %v4407, %v4420
        %v4422 = vcombine.low %v4398, %v4414
        %v4423 = vcombine.high %v4398, %v4414
        %v4424 = vcombine.low %v4405, %v4421
        %v4425 = vcombine.high %v4405, %v4421
        %4427 = vrot.lane.b32.xlu0 %v4423, 8
        %v4428 = vpop.permute.xlu0 %4427
        %4431 = vrot.lane.b32.xlu0 %v4424, 16
        %v4432 = vpop.permute.xlu0 %4431
        %4435 = vrot.lane.b32.xlu0 %v4425, 24
        %v4436 = vpop.permute.xlu0 %4435
        %v4438 = vsel %vm1132, %v4422, %v4428
        %v4439 = vsel %vm242, %v4438, %v4432
        %v4440 = vsel %vm2260, %v4439, %v4436
        %v4441 = vpack.c.bf16 %v4440, %v4440
        %v4443 = vsel %vm346, %v4441, 0
        %4445 = vmatprep.subr.bf16.mxu0 0
        %4446 = vmatpush1.bf16.msra.mxu0 %v2277
        %4447 = vmatprep.subr.bf16.mxu0 0
        %4448 = vmatpush1.bf16.msra.mxu0 %v2278
        %4449 = vmatprep.subr.bf16.mxu0 0
        %4450 = vmatpush1.bf16.msra.mxu0 0
        %4451 = vmatprep.subr.bf16.mxu0 0
        %4452 = vmatpush1.bf16.msra.mxu0 0
        %4453 = vmatprep.subr.bf16.mxu0 0
        %4454 = vmatpush1.bf16.msra.mxu0 0
        %4455 = vmatprep.subr.bf16.mxu0 0
        %4456 = vmatpush1.bf16.msra.mxu0 0
        %4457 = vmatprep.subr.bf16.mxu0 0
        %4458 = vmatpush1.bf16.msra.mxu0 0
        %4459 = vmatprep.subr.bf16.mxu0 0
        %4460 = vmatpush1.bf16.msra.mxu0 0
        %4461 = vmatprep.subr.bf16.mxu0 0
        %4462 = vmatpush1.bf16.msra.mxu0 0
        %4463 = vmatprep.subr.bf16.mxu0 0
        %4464 = vmatpush1.bf16.msra.mxu0 0
        %4465 = vmatprep.subr.bf16.mxu0 0
        %4466 = vmatpush1.bf16.msra.mxu0 0
        %4467 = vmatprep.subr.bf16.mxu0 0
        %4468 = vmatpush1.bf16.msra.mxu0 0
        %4469 = vmatprep.subr.bf16.mxu0 0
        %4470 = vmatpush1.bf16.msra.mxu0 0
        %4471 = vmatprep.subr.bf16.mxu0 0
        %4472 = vmatpush1.bf16.msra.mxu0 0
        %4473 = vmatprep.subr.bf16.mxu0 0
        %4474 = vmatpush1.bf16.msra.mxu0 0
        %4475 = vmatprep.subr.bf16.mxu0 0
        %4476 = vmatpush1.bf16.msra.mxu0 0
        %4477 = vmatprep.mubr.bf16.mxu0 0
        %4478 = vmatmul.mubr.bf16.gmra.mrb[0].mxu0 %v4443
        %v4479 = vpop.f32.mrb[0].mxu0
        %v4480 = vadd.f32 %v2267, %v4479
        %v4481 = vpop.f32.mrb[0].mxu0
        %v4482 = vpop.f32.mrb[0].mxu0
        %v4483 = vpop.f32.mrb[0].mxu0
        %4484 = vdwg.mxu0
        %v4485 = vadd.f32 %v2526, %v4480
        %v4486 = vsel %vm346, %v4485, 0.0
        %4487 = vadd.xlane.f32.xlu0 %v4486
        %v4488 = vpop.xlane.xlu0 %4487
        %v4489 = vmul.f32 %v4488, %v2328
        %v4490 = vsub.f32 %v4485, %v4489
        %v4491 = vmul.f32 %v4490, %v4490
        %v4492 = vsel %vm346, %v4491, 0.0
        %4493 = vadd.xlane.f32.xlu0 %v4492
        %v4494 = vpop.xlane.xlu0 %4493
        %v4495 = vmul.f32 %v4494, %v2328
        %v4496 = vadd.f32 %v4495, 1e-12
        %v4497 = vrsqrt.pop %v4496
        %v4498 = vmul.f32 %v4490, %v4497
        %v4499 = vmul.f32 %v4498, %v2343
        %v4500 = vadd.f32 %v4499, %v2350
        %v4501 = vpack.c.bf16 %v4500, %v4500
        %v4503 = vsel %vm346, %v4501, 0
        %4505 = vmatprep.subr.bf16.mxu0 0
        %4506 = vmatpush1.bf16.msra.mxu0 %v2368
        %4507 = vmatprep.subr.bf16.mxu0 0
        %4508 = vmatpush1.bf16.msra.mxu0 %v2369
        %4509 = vmatprep.subr.bf16.mxu0 0
        %4510 = vmatpush1.bf16.msra.mxu0 0
        %4511 = vmatprep.subr.bf16.mxu0 0
        %4512 = vmatpush1.bf16.msra.mxu0 0
        %4513 = vmatprep.subr.bf16.mxu0 0
        %4514 = vmatpush1.bf16.msra.mxu0 0
        %4515 = vmatprep.subr.bf16.mxu0 0
        %4516 = vmatpush1.bf16.msra.mxu0 0
        %4517 = vmatprep.subr.bf16.mxu0 0
        %4518 = vmatpush1.bf16.msra.mxu0 0
        %4519 = vmatprep.subr.bf16.mxu0 0
        %4520 = vmatpush1.bf16.msra.mxu0 0
        %4521 = vmatprep.subr.bf16.mxu0 0
        %4522 = vmatpush1.bf16.msra.mxu0 0
        %4523 = vmatprep.subr.bf16.mxu0 0
        %4524 = vmatpush1.bf16.msra.mxu0 0
        %4525 = vmatprep.subr.bf16.mxu0 0
        %4526 = vmatpush1.bf16.msra.mxu0 0
        %4527 = vmatprep.subr.bf16.mxu0 0
        %4528 = vmatpush1.bf16.msra.mxu0 0
        %4529 = vmatprep.subr.bf16.mxu0 0
        %4530 = vmatpush1.bf16.msra.mxu0 0
        %4531 = vmatprep.subr.bf16.mxu0 0
        %4532 = vmatpush1.bf16.msra.mxu0 0
        %4533 = vmatprep.subr.bf16.mxu0 0
        %4534 = vmatpush1.bf16.msra.mxu0 0
        %4535 = vmatprep.subr.bf16.mxu0 0
        %4536 = vmatpush1.bf16.msra.mxu0 0
        %4537 = vmatprep.mubr.bf16.mxu0 0
        %4538 = vmatmul.mubr.bf16.gmra.mrb[0].mxu0 %v4503
        %v4539 = vpop.f32.mrb[0].mxu0
        %v4540 = vadd.f32 %v2358, %v4539
        %v4541 = vpop.f32.mrb[0].mxu0
        %v4542 = vpop.f32.mrb[0].mxu0
        %v4543 = vpop.f32.mrb[0].mxu0
        %4544 = vdwg.mxu0
        %v4545 = vmul.f32 %v4540, %v4540
        %v4546 = vmul.f32 %v4540, %v4545
        %v4547 = vmul.f32 %v4546, 0.044715
        %v4548 = vadd.f32 %v4540, %v4547
        %v4549 = vmul.f32 %v4548, 0.7978846
        %v4550 = vtanh.pop %v4549
        %v4551 = vadd.f32 %v4550, 1.0
        %v4552 = vmul.f32 %v4551, 0.5
        %v4553 = vmul.f32 %v4540, %v4552
        %v4554 = vpack.c.bf16 %v4553, %v4553
        %v4556 = vsel %vm2455, %v4554, 0
        %4558 = vmatprep.subr.bf16.mxu0 0
        %4559 = vmatpush1.bf16.msra.mxu0 %v2447
        %4560 = vmatprep.subr.bf16.mxu0 0
        %4561 = vmatpush1.bf16.msra.mxu0 %v2448
        %4562 = vmatprep.subr.bf16.mxu0 0
        %4563 = vmatpush1.bf16.msra.mxu0 %v2449
        %4564 = vmatprep.subr.bf16.mxu0 0
        %4565 = vmatpush1.bf16.msra.mxu0 %v2450
        %4566 = vmatprep.subr.bf16.mxu0 0
        %4567 = vmatpush1.bf16.msra.mxu0 0
        %4568 = vmatprep.subr.bf16.mxu0 0
        %4569 = vmatpush1.bf16.msra.mxu0 0
        %4570 = vmatprep.subr.bf16.mxu0 0
        %4571 = vmatpush1.bf16.msra.mxu0 0
        %4572 = vmatprep.subr.bf16.mxu0 0
        %4573 = vmatpush1.bf16.msra.mxu0 0
        %4574 = vmatprep.subr.bf16.mxu0 0
        %4575 = vmatpush1.bf16.msra.mxu0 0
        %4576 = vmatprep.subr.bf16.mxu0 0
        %4577 = vmatpush1.bf16.msra.mxu0 0
        %4578 = vmatprep.subr.bf16.mxu0 0
        %4579 = vmatpush1.bf16.msra.mxu0 0
        %4580 = vmatprep.subr.bf16.mxu0 0
        %4581 = vmatpush1.bf16.msra.mxu0 0
        %4582 = vmatprep.subr.bf16.mxu0 0
        %4583 = vmatpush1.bf16.msra.mxu0 0
        %4584 = vmatprep.subr.bf16.mxu0 0
        %4585 = vmatpush1.bf16.msra.mxu0 0
        %4586 = vmatprep.subr.bf16.mxu0 0
        %4587 = vmatpush1.bf16.msra.mxu0 0
        %4588 = vmatprep.subr.bf16.mxu0 0
        %4589 = vmatpush1.bf16.msra.mxu0 0
        %4590 = vmatprep.mubr.bf16.mxu0 0
        %4591 = vmatmul.mubr.bf16.gmra.mrb[0].mxu0 %v4556
        %v4592 = vpop.f32.mrb[0].mxu0
        %v4593 = vadd.f32 %v2429, %v4592
        %v4594 = vpop.f32.mrb[0].mxu0
        %v4595 = vpop.f32.mrb[0].mxu0
        %v4596 = vpop.f32.mrb[0].mxu0
        %4597 = vdwg.mxu0
        %v4598 = vadd.f32 %v4500, %v4593
        %v4599 = vsel %vm346, %v4598, 0.0
        %4600 = vadd.xlane.f32.xlu0 %v4599
        %v4601 = vpop.xlane.xlu0 %4600
        %v4602 = vmul.f32 %v4601, %v2328
        %v4603 = vsub.f32 %v4598, %v4602
        %v4604 = vmul.f32 %v4603, %v4603
        %v4605 = vsel %vm346, %v4604, 0.0
        %4606 = vadd.xlane.f32.xlu0 %v4605
        %v4607 = vpop.xlane.xlu0 %4606
        %v4608 = vmul.f32 %v4607, %v2328
        %v4609 = vadd.f32 %v4608, 1e-12
        %v4610 = vrsqrt.pop %v4609
        %v4611 = vmul.f32 %v4603, %v4610
        %v4612 = vmul.f32 %v4611, %v2517
        %v4613 = vadd.f32 %v4612, %v2524
        %v4614 = vsel %vm346, %v4613, -inf
        %v4615 = vrot.slane %v4614, 4
        %v4616 = vmax.f32 %v4614, %v4615
        %v4617 = vrot.slane %v4616, 2
        %v4618 = vmax.f32 %v4616, %v4617
        %v4619 = vrot.slane %v4618, 1
        %v4620 = vmax.f32 %v4618, %v4619
        %4622 = vrot.lane.b32.xlu0 %v2533, 32
        %v4623 = vpop.permute.xlu0 %4622
        %v4625 = vsel %vm346, %v4620, %v4623
        %v4626 = vld [vmem:[%s3 + $0x58] sm:$0xf]
        %v4627 = vld [vmem:[%s3 + $0x5c] sm:$0xf]
        %v4628 = vld [vmem:[%s3 + $0x60] sm:$0xf]
        %v4629 = vld [vmem:[%s3 + $0x64] sm:$0xf]
        %v4630 = vld [vmem:[%s3 + $0x68] sm:$0xf]
        %v4631 = vld [vmem:[%s3 + $0x6c] sm:$0xf]
        %v4632 = vld [vmem:[%s3 + $0x70] sm:$0xf]
        %v4633 = vld [vmem:[%s3 + $0x74] sm:$0xf]
        %v4634 = vld [vmem:[%s2 + $0xb] sm:$0x1]
        %v4635 = vpack.c.bf16 %v4625, %v4625
        %v4644 = vunpack.c.l.b16 %v4626
        %v4645 = vunpack.c.l.b16 %v4627
        %v4646 = vunpack.c.l.b16 %v4628
        %v4647 = vunpack.c.l.b16 %v4629
        %v4648 = vunpack.c.l.b16 %v4630
        %v4649 = vunpack.c.l.b16 %v4631
        %v4650 = vunpack.c.l.b16 %v4632
        %v4651 = vunpack.c.l.b16 %v4633
        %v4652 = vpack.c.b16 %v4645, %v4644
        %v4653 = vpack.c.b16 %v4647, %v4646
        %v4654 = vpack.c.b16 %v4649, %v4648
        %v4655 = vpack.c.b16 %v4651, %v4650
        %v4661 = vsel %vm2455, %v4635, 0
        %4663 = vmatprep.subr.bf16.mxu0 0
        %4664 = vmatpush1.bf16.msra.mxu0 %v4652
        %4665 = vmatprep.subr.bf16.mxu0 0
        %4666 = vmatpush1.bf16.msra.mxu0 %v4653
        %4667 = vmatprep.subr.bf16.mxu0 0
        %4668 = vmatpush1.bf16.msra.mxu0 %v4654
        %4669 = vmatprep.subr.bf16.mxu0 0
        %4670 = vmatpush1.bf16.msra.mxu0 %v4655
        %4671 = vmatprep.subr.bf16.mxu0 0
        %4672 = vmatpush1.bf16.msra.mxu0 0
        %4673 = vmatprep.subr.bf16.mxu0 0
        %4674 = vmatpush1.bf16.msra.mxu0 0
        %4675 = vmatprep.subr.bf16.mxu0 0
        %4676 = vmatpush1.bf16.msra.mxu0 0
        %4677 = vmatprep.subr.bf16.mxu0 0
        %4678 = vmatpush1.bf16.msra.mxu0 0
        %4679 = vmatprep.subr.bf16.mxu0 0
        %4680 = vmatpush1.bf16.msra.mxu0 0
        %4681 = vmatprep.subr.bf16.mxu0 0
        %4682 = vmatpush1.bf16.msra.mxu0 0
        %4683 = vmatprep.subr.bf16.mxu0 0
        %4684 = vmatpush1.bf16.msra.mxu0 0
        %4685 = vmatprep.subr.bf16.mxu0 0
        %4686 = vmatpush1.bf16.msra.mxu0 0
        %4687 = vmatprep.subr.bf16.mxu0 0
        %4688 = vmatpush1.bf16.msra.mxu0 0
        %4689 = vmatprep.subr.bf16.mxu0 0
        %4690 = vmatpush1.bf16.msra.mxu0 0
        %4691 = vmatprep.subr.bf16.mxu0 0
        %4692 = vmatpush1.bf16.msra.mxu0 0
        %4693 = vmatprep.subr.bf16.mxu0 0
        %4694 = vmatpush1.bf16.msra.mxu0 0
        %4695 = vmatprep.mubr.bf16.mxu0 0
        %4696 = vmatmul.mubr.bf16.gmra.mrb[0].mxu0 %v4661
        %v4697 = vpop.f32.mrb[0].mxu0
        %v4698 = vadd.f32 %v4634, %v4697
        %v4699 = vpop.f32.mrb[0].mxu0
        %v4700 = vpop.f32.mrb[0].mxu0
        %v4701 = vpop.f32.mrb[0].mxu0
        %4702 = vdwg.mxu0
        %v4703 = vmax.f32 %v4698, 0.0
        %v4704 = vld [vmem:[%s3 + $0x78] sm:$0xf]
        %v4705 = vld [vmem:[%s3 + $0x7c] sm:$0xf]
        %v4706 = vld [vmem:[%s2 + $0xc] sm:$0x1]
        %v4707 = vpack.c.bf16 %v4703, %v4703
        %v4710 = vunpack.c.l.b16 %v4704
        %v4711 = vunpack.c.l.b16 %v4705
        %v4712 = vpack.c.b16 %v4711, %v4710
        %v4715 = vsel %vm242, %v4707, 0
        %4717 = vmatprep.subr.bf16.mxu0 0
        %4718 = vmatpush1.bf16.msra.mxu0 %v4712
        %4719 = vmatprep.subr.bf16.mxu0 0
        %4720 = vmatpush1.bf16.msra.mxu0 0
        %4721 = vmatprep.subr.bf16.mxu0 0
        %4722 = vmatpush1.bf16.msra.mxu0 0
        %4723 = vmatprep.subr.bf16.mxu0 0
        %4724 = vmatpush1.bf16.msra.mxu0 0
        %4725 = vmatprep.subr.bf16.mxu0 0
        %4726 = vmatpush1.bf16.msra.mxu0 0
        %4727 = vmatprep.subr.bf16.mxu0 0
        %4728 = vmatpush1.bf16.msra.mxu0 0
        %4729 = vmatprep.subr.bf16.mxu0 0
        %4730 = vmatpush1.bf16.msra.mxu0 0
        %4731 = vmatprep.subr.bf16.mxu0 0
        %4732 = vmatpush1.bf16.msra.mxu0 0
        %4733 = vmatprep.subr.bf16.mxu0 0
        %4734 = vmatpush1.bf16.msra.mxu0 0
        %4735 = vmatprep.subr.bf16.mxu0 0
        %4736 = vmatpush1.bf16.msra.mxu0 0
        %4737 = vmatprep.subr.bf16.mxu0 0
        %4738 = vmatpush1.bf16.msra.mxu0 0
        %4739 = vmatprep.subr.bf16.mxu0 0
        %4740 = vmatpush1.bf16.msra.mxu0 0
        %4741 = vmatprep.subr.bf16.mxu0 0
        %4742 = vmatpush1.bf16.msra.mxu0 0
        %4743 = vmatprep.subr.bf16.mxu0 0
        %4744 = vmatpush1.bf16.msra.mxu0 0
        %4745 = vmatprep.subr.bf16.mxu0 0
        %4746 = vmatpush1.bf16.msra.mxu0 0
        %4747 = vmatprep.subr.bf16.mxu0 0
        %4748 = vmatpush1.bf16.msra.mxu0 0
        %4749 = vmatprep.mubr.bf16.mxu0 0
        %4750 = vmatmul.mubr.bf16.gmra.mrb[0].mxu0 %v4715
        %v4751 = vpop.f32.mrb[0].mxu0
        %v4752 = vadd.f32 %v4706, %v4751
        %v4753 = vpop.f32.mrb[0].mxu0
        %v4754 = vpop.f32.mrb[0].mxu0
        %v4755 = vpop.f32.mrb[0].mxu0
        %4756 = vdwg.mxu0
        %vm4757 = vcmask 16384
        %4758 = vst.msk [vmem:[%s198] sm:$0x1] %vm4757, %v4752
        %s4759 = sand.u32 %s120, 1
        %s4760 = scalar_lea.sflag [#allocation3], %s4759
        %s4761 = sand.u32 %s120, 1
        %s4762 = scalar_lea.vmem [#allocation2], %s4761
        // Predicated region
        $region37: #{albert_forward.1} parent=35 // pred_check
          %p4763 = pneg %p130
        $region38: #{albert_forward.1} parent=35 // pred_check_branch
          %4765 = sbr.rel (%p4763) target = $region40
        $region39: #{albert_forward.1} parent=35 // pred_region
          %s4767 = ssub.s32 16, 16
          %4768 = vsyncadd %s4760, %s4767
          %s4769 = smul.addr %s18, 16
          %s4770 = scalar_lea.hbm %s4, %s4769
          %s4772 = sshll.u32 %s4762, 4
          %s4773 = int_to_ptr.vmem [resolvable:$true] %s4772
          %4775 = dma.vmem_to_hbm [thread:$0]  %s4773, 16, %s4770, %s4760
        $region40: #{albert_forward.1} parent=35 // pred_fallthru
          _
      $region36: #{albert_forward.1} parent=5 // pred_fallthru
        _
      %p4776 = scmp.le.s32.totalorder 2, %s13
      // Predicated region
      $region41: #{albert_forward.1} parent=5 // pred_check
        %p4777 = pneg %p4776
      $region42: #{albert_forward.1} parent=5 // pred_check_branch
        %4779 = sbr.rel (%p4777) target = $region44
      $region43: #{albert_forward.1} parent=5 // pred_region
        %s4780 = ssub.s32 %s13, 2
        // Predicated region
        $region45: #{albert_forward.1} parent=43 // pred_check
          %p4781 = pneg %p136
        $region46: #{albert_forward.1} parent=43 // pred_check_branch
          %4783 = sbr.rel (%p4781) target = $region48
        $region47: #{albert_forward.1} parent=43 // pred_region
          %s4784 = sand.u32 %s121, 1
          %s4785 = scalar_lea.sflag [#allocation3], %s4784
          %s4786 = sand.u32 %s121, 1
          %s4787 = scalar_lea.vmem [#allocation2], %s4786
          %4788 = dma.done %s4785, 16
        $region48: #{albert_forward.1} parent=43 // pred_fallthru
          _
      $region44: #{albert_forward.1} parent=5 // pred_fallthru
        _
    $region6: #{albert_forward.1} parent=1 // loop_footer
      %s17 = sadd.s32 1, %s13
    $region7: #{albert_forward.1} parent=1 // loop_footer_branch
      %12 = sbr.rel target = $region3
    $region8: #{albert_forward.1} parent=1 // loop_exit
      _
    %4789 = vsyncpa [#allocation3], 1
    %s4790 = scalar_lea.sflag [#allocation3], 1
    %4791 = vsyncpa %s4790, 1

</llo_original>
